<compile_context>
chip_gen: v7x
topology: tpu7x:2x2x1
jax: 0.10.0
libtpu: 0.0.40
codegen_flags: <defaults>
</compile_context>

<pallas_src>
import functools

import jax
import jax.numpy as jnp
import numpy as np
from jax.experimental import pallas as pl
from jax.experimental.pallas import tpu as pltpu


# --------------------------------------------------------------------------- #
# helpers                                                                     #
# --------------------------------------------------------------------------- #
def _layernorm(x, g, b, eps):
    mu = jnp.mean(x, axis=-1, keepdims=True)
    xc = x - mu
    var = jnp.mean(xc * xc, axis=-1, keepdims=True)
    return xc * jax.lax.rsqrt(var + eps) * g + b


def _vmem_limit_bytes():
    # ~50% of physical VMEM: ~64 MiB on v5e/v6e (128 MiB), ~32 MiB on v7x (64 MiB).
    try:
        cap = pltpu.get_tpu_info().vmem_capacity_bytes
    except Exception:
        cap = 64 * 1024 * 1024  # conservative fallback, safe on every generation
    return max(32 * 1024 * 1024, min(int(cap * 0.5), 96 * 1024 * 1024))


def _exp_dtype_for_device():
    # v6e/v7x EUP has a bf16 path (~2x exp throughput); v5e and older do not.
    try:
        kind = jax.devices()[0].device_kind.lower()
    except Exception:
        return jnp.float32
    if any(g in kind for g in ("v2", "v3", "v4", "v5")):
        return jnp.float32
    return jnp.bfloat16


def _const_spec(arr):
    """Full-array block whose index never changes; single-buffered (no pointless
    double buffering of multi-MiB constant weights)."""
    nd = arr.ndim
    return pl.BlockSpec(arr.shape, lambda *_, _nd=nd: (0,) * _nd,
                        pipeline_mode=pl.Buffered(1))


# --------------------------------------------------------------------------- #
# stage 1: LN1 + rotary + fused QKV projection -> (B, S, 3E) bf16             #
# --------------------------------------------------------------------------- #
def ln_rotary_qkv_kernel(x_ref, ln1_g_ref, ln1_b_ref, cos_ref, sin_ref,
                         wqkv_ref, bqkv_ref, qkv_ref, *, eps):
    x = x_ref[0]                                   # (TS, E) f32
    E = x.shape[-1]

    xn = _layernorm(x, ln1_g_ref[...], ln1_b_ref[...], eps)

    # rotary via a single lane rotation (no half-slices, no concat):
    #   xr = xn * [cos|cos] + roll(xn, E/2) * [-sin|sin]
    xr = xn * cos_ref[...] + pltpu.roll(xn, shift=E // 2, axis=1) * sin_ref[...]

    # fused QKV projection: bf16 operands, f32 accumulation.  The 1/sqrt(dh)
    # scale is already folded into the Q columns of wqkv/bqkv (offline prep).
    qkv = jnp.dot(xr.astype(jnp.bfloat16), wqkv_ref[...],
                  preferred_element_type=jnp.float32) + bqkv_ref[...]
    # single lane-dense store of the whole (TS, 3E) tile — no per-head slicing.
    qkv_ref[0] = qkv.astype(qkv_ref.dtype)


# --------------------------------------------------------------------------- #
# stage 2: flash attention (online softmax over KV tiles)                     #
# --------------------------------------------------------------------------- #
def flash_attention_kernel(q_ref, k_ref, v_ref, o_ref, m_sc, l_sc, acc_sc,
                           *, exp_dtype):
    kv = pl.program_id(3)

    @pl.when(kv == 0)
    def _():
        m_sc[...] = jnp.full(m_sc.shape, -jnp.inf, m_sc.dtype)
        l_sc[...] = jnp.zeros(l_sc.shape, l_sc.dtype)
        acc_sc[...] = jnp.zeros(acc_sc.shape, acc_sc.dtype)

    q = q_ref[0]                                   # (TQ, dh) bf16 (pre-scaled)
    k = k_ref[0]                                   # (TK, dh) bf16
    v = v_ref[0]                                   # (TK, dh) bf16

    s = jax.lax.dot_general(q, k, (((1,), (1,)), ((), ())),
                            preferred_element_type=jnp.float32)   # (TQ, TK)

    m_prev = m_sc[...]
    m_new = jnp.maximum(m_prev, jnp.max(s, axis=-1, keepdims=True))
    alpha = jnp.exp(m_prev - m_new)
    # exp in bf16 on v6e/v7x (bf16 EUP), f32 on v5e; row-sum / accumulate in f32.
    p = jnp.exp((s - m_new).astype(exp_dtype))

    l_sc[...] = alpha * l_sc[...] + jnp.sum(p.astype(jnp.float32), axis=-1,
                                            keepdims=True)
    acc_sc[...] = alpha * acc_sc[...] + jnp.dot(p.astype(jnp.bfloat16), v,
                                                preferred_element_type=jnp.float32)
    m_sc[...] = m_new

    @pl.when(kv == pl.num_programs(3) - 1)
    def _():
        # exact reciprocal: runs once per output tile, keeps normalization f32.
        inv_l = pl.reciprocal(l_sc[...], approx=False)
        o_ref[0] = (acc_sc[...] * inv_l).astype(o_ref.dtype)
    # TODO(synk): key_padding_mask / attn_mask path (add -inf masking and an
    #             l==0 guard) — not needed for the eval semantics used here.


# --------------------------------------------------------------------------- #
# stage 3: out-proj + residual + LN2 + SwiGLU FFN (F-tiled) + residual        #
# --------------------------------------------------------------------------- #
def out_ffn_kernel(x_ref, attn_ref, wo_ref, bo_ref, ln2_g_ref, ln2_b_ref,
                   wff1_ref, bff1_ref, wff2_ref, bff2_ref, out_ref,
                   x1_sc, xn2_sc, ff_sc, *, eps):
    f = pl.program_id(2)

    @pl.when(f == 0)
    def _():
        # single full-depth out-projection dot (K=E) — fills the 256-deep MXU.
        attn_o = jnp.dot(attn_ref[0], wo_ref[...],
                         preferred_element_type=jnp.float32) + bo_ref[...]
        x1 = x_ref[0] + attn_o
        x1_sc[...] = x1
        xn2_sc[...] = _layernorm(x1, ln2_g_ref[...], ln2_b_ref[...],
                                 eps).astype(jnp.bfloat16)
        ff_sc[...] = jnp.zeros(ff_sc.shape, ff_sc.dtype)

    # streamed FFN tile: wff1 tile columns are [values | gates] for this tile.
    h1 = jnp.dot(xn2_sc[...], wff1_ref[...],
                 preferred_element_type=jnp.float32) + bff1_ref[...]
    tfh = h1.shape[-1] // 2
    a, gate = h1[:, :tfh], h1[:, tfh:]
    act = a * (gate * jax.nn.sigmoid(gate))        # SwiGLU: value * silu(gate)
    ff_sc[...] += jnp.dot(act.astype(jnp.bfloat16), wff2_ref[...],
                          preferred_element_type=jnp.float32)

    @pl.when(f == pl.num_programs(2) - 1)
    def _():
        out_ref[0] = (x1_sc[...] + ff_sc[...] + bff2_ref[...]).astype(out_ref.dtype)
    # TODO(synk): dropout / need_weights return path omitted (eval semantics).


# --------------------------------------------------------------------------- #
# wrapper                                                                     #
# --------------------------------------------------------------------------- #
def dense_transformer_layer(x, p, *, num_heads, eps=1e-5,
                            seq_tile=None, q_tile=None, kv_tile=None):
    B, S, E = x.shape
    H = num_heads
    assert E % H == 0
    dh = E // H
    assert E % 128 == 0, "embed_dim must be a multiple of 128"
    assert dh % 128 == 0, ("head_dim must be a multiple of 128 (lane-dense "
                           "layout); see TODO for the head-grouped path")

    TS = seq_tile or min(S, 256)
    TQ = q_tile or min(S, 256)
    TK = kv_tile or min(S, 512)
    assert S % TS == 0 and S % TQ == 0 and S % TK == 0
    assert TS % 16 == 0 and TQ % 16 == 0 and TK % 16 == 0

    F_half = p['wff2'].shape[0]
    TFh = int(p['ffn_half_tile'])
    assert F_half % TFh == 0 and TFh % 128 == 0, "ffn_dim//2 tiling must be 128-aligned"
    NF = F_half // TFh
    assert p['cos_full'].shape[0] == S

    vmem_limit = _vmem_limit_bytes()
    exp_dtype = _exp_dtype_for_device()

    def cparams(sem):
        return pltpu.CompilerParams(dimension_semantics=sem,
                                    vmem_limit_bytes=vmem_limit)

    # ---- stage 1: LN1 + rotary + QKV projection -> (B, S, 3E) bf16 ----
    # grid is (seq tiles, batch) so cos/sin block indices only change on the
    # outer axis: no per-batch re-DMA of the rotary tables.
    qkv = pl.pallas_call(
        functools.partial(ln_rotary_qkv_kernel, eps=eps),
        out_shape=jax.ShapeDtypeStruct((B, S, 3 * E), jnp.bfloat16),
        grid=(S // TS, B),
        in_specs=[pl.BlockSpec((1, TS, E), lambda i, b: (b, i, 0)),
                  _const_spec(p['ln1_g']), _const_spec(p['ln1_b']),
                  pl.BlockSpec((TS, E), lambda i, b: (i, 0)),
                  pl.BlockSpec((TS, E), lambda i, b: (i, 0)),
                  _const_spec(p['wqkv']), _const_spec(p['bqkv'])],
        out_specs=pl.BlockSpec((1, TS, 3 * E), lambda i, b: (b, i, 0)),
        compiler_params=cparams(("parallel", "parallel")),
    )(x, p['ln1_g'], p['ln1_b'], p['cos_full'], p['sin_signed'],
      p['wqkv'], p['bqkv'])

    # ---- stage 2: flash attention; heads picked via lane-dense block index ----
    attn = pl.pallas_call(
        functools.partial(flash_attention_kernel, exp_dtype=exp_dtype),
        out_shape=jax.ShapeDtypeStruct((B, S, E), jnp.bfloat16),
        grid=(B, H, S // TQ, S // TK),
        in_specs=[pl.BlockSpec((1, TQ, dh), lambda b, h, i, j: (b, i, h)),
                  pl.BlockSpec((1, TK, dh), lambda b, h, i, j: (b, j, H + h)),
                  pl.BlockSpec((1, TK, dh), lambda b, h, i, j: (b, j, 2 * H + h))],
        out_specs=pl.BlockSpec((1, TQ, dh), lambda b, h, i, j: (b, i, h)),
        scratch_shapes=[pltpu.VMEM((TQ, 1), jnp.float32),
                        pltpu.VMEM((TQ, 1), jnp.float32),
                        pltpu.VMEM((TQ, dh), jnp.float32)],
        compiler_params=cparams(("parallel", "parallel", "parallel", "arbitrary")),
    )(qkv, qkv, qkv)

    # ---- stage 3: out-proj + residual + LN2 + SwiGLU FFN (streamed over F) ----
    out = pl.pallas_call(
        functools.partial(out_ffn_kernel, eps=eps),
        out_shape=jax.ShapeDtypeStruct((B, S, E), x.dtype),
        grid=(S // TS, B, NF),
        in_specs=[pl.BlockSpec((1, TS, E), lambda i, b, f: (b, i, 0)),   # residual x
                  pl.BlockSpec((1, TS, E), lambda i, b, f: (b, i, 0)),   # attn out
                  _const_spec(p['wo']), _const_spec(p['bo']),
                  _const_spec(p['ln2_g']), _const_spec(p['ln2_b']),
                  pl.BlockSpec((E, 2 * TFh), lambda i, b, f: (0, f)),    # wff1 tile
                  pl.BlockSpec((1, 2 * TFh), lambda i, b, f: (0, f)),    # bff1 tile
                  pl.BlockSpec((TFh, E), lambda i, b, f: (f, 0)),        # wff2 tile
                  _const_spec(p['bff2'])],
        out_specs=pl.BlockSpec((1, TS, E), lambda i, b, f: (b, i, 0)),
        scratch_shapes=[pltpu.VMEM((TS, E), jnp.float32),     # x1 (residual+attn)
                        pltpu.VMEM((TS, E), jnp.bfloat16),    # LN2 output (MXU lhs)
                        pltpu.VMEM((TS, E), jnp.float32)],    # FFN accumulator
        input_output_aliases={0: 0},
        compiler_params=cparams(("parallel", "parallel", "arbitrary")),
    )(x, attn, p['wo'], p['bo'], p['ln2_g'], p['ln2_b'],
      p['wff1'], p['bff1'], p['wff2'], p['bff2'])
    return out


# --------------------------------------------------------------------------- #
# parameters                                                                  #
# --------------------------------------------------------------------------- #
def init_params(key, embed_dim, ffn_dim, max_length, seq_len):
    """Raw (PyTorch-semantics) f32 parameters; linear weights stored (in, out)."""
    E, F = embed_dim, ffn_dim
    ks = jax.random.split(key, 8)

    inv_freq = 1.0 / (10000.0 ** (jnp.arange(0, E, 2, dtype=jnp.float32) / E))
    pos = jnp.arange(max_length, dtype=jnp.float32)
    ang = pos[:, None] * inv_freq[None, :]

    def lin_w(k, fan_in, fan_out):
        return jax.random.normal(k, (fan_in, fan_out), jnp.float32) * 0.02

    return dict(
        ln1_g=jnp.ones((1, E), jnp.float32), ln1_b=jnp.zeros((1, E), jnp.float32),
        ln2_g=jnp.ones((1, E), jnp.float32), ln2_b=jnp.zeros((1, E), jnp.float32),
        sin=jnp.sin(ang)[:seq_len], cos=jnp.cos(ang)[:seq_len],
        wqkv=lin_w(ks[0], E, 3 * E),
        bqkv=jax.random.normal(ks[1], (1, 3 * E), jnp.float32) * 0.02,
        wo=lin_w(ks[2], E, E),
        bo=jax.random.normal(ks[3], (1, E), jnp.float32) * 0.02,
        wff1=lin_w(ks[4], E, F),
        bff1=jax.random.normal(ks[5], (1, F), jnp.float32) * 0.02,
        wff2=lin_w(ks[6], F // 2, E),
        bff2=jax.random.normal(ks[7], (1, E), jnp.float32) * 0.02,
    )


def _interleave_value_gate(w, tile):
    """Reorder last dim from [values | gates] into per-tile [v_f | g_f] blocks of
    width 2*tile so each streamed FFN tile carries matching value/gate columns."""
    fh = w.shape[-1] // 2
    nt = fh // tile
    v = w[..., :fh].reshape(w.shape[:-1] + (nt, tile))
    g = w[..., fh:].reshape(w.shape[:-1] + (nt, tile))
    return jnp.concatenate([v, g], axis=-1).reshape(w.shape[:-1] + (2 * fh,))


def prepare_params(raw, num_heads, ffn_half_tile=None):
    """Offline weight prep: fold 1/sqrt(dh) into Q, bf16 weights, roll-form rotary
    tables, value/gate-interleaved FFN-1 weight for tile streaming."""
    E = raw['wo'].shape[0]
    F_half = raw['wff2'].shape[0]
    dh = E // num_heads
    scale = 1.0 / float(dh) ** 0.5

    if ffn_half_tile is None:
        ffn_half_tile = min(F_half, 512)
    assert F_half % ffn_half_tile == 0 and ffn_half_tile % 128 == 0

    wqkv = raw['wqkv'].at[:, :E].multiply(scale)
    bqkv = raw['bqkv'].at[:, :E].multiply(scale)
    cos_full = jnp.concatenate([raw['cos'], raw['cos']], axis=-1)
    sin_signed = jnp.concatenate([-raw['sin'], raw['sin']], axis=-1)

    return dict(
        ln1_g=raw['ln1_g'], ln1_b=raw['ln1_b'],
        cos_full=cos_full, sin_signed=sin_signed,
        wqkv=wqkv.astype(jnp.bfloat16), bqkv=bqkv,
        wo=raw['wo'].astype(jnp.bfloat16), bo=raw['bo'],
        ln2_g=raw['ln2_g'], ln2_b=raw['ln2_b'],
        wff1=_interleave_value_gate(raw['wff1'], ffn_half_tile).astype(jnp.bfloat16),
        bff1=_interleave_value_gate(raw['bff1'], ffn_half_tile),
        wff2=raw['wff2'].astype(jnp.bfloat16), bff2=raw['bff2'],
        ffn_half_tile=int(ffn_half_tile),
    )


# --------------------------------------------------------------------------- #
# pure-JAX f32 reference                                                      #
# --------------------------------------------------------------------------- #
def reference(x, raw, num_heads, eps=1e-5):
    B, S, E = x.shape
    H = num_heads
    dh = E // H

    def ln(v, g, b):
        mu = v.mean(-1, keepdims=True)
        var = ((v - mu) ** 2).mean(-1, keepdims=True)
        return (v - mu) * jax.lax.rsqrt(var + eps) * g + b

    residual = x
    xn = ln(x, raw['ln1_g'], raw['ln1_b'])
    half = E // 2
    x1, x2 = xn[..., :half], xn[..., half:]
    sin, cos = raw['sin'], raw['cos']
    xr = jnp.concatenate([x1 * cos - x2 * sin, x1 * sin + x2 * cos], axis=-1)

    qkv = xr @ raw['wqkv'] + raw['bqkv'][0]
    q, k, v = qkv[..., :E], qkv[..., E:2 * E], qkv[..., 2 * E:]
    q = q.reshape(B, S, H, dh) / jnp.sqrt(jnp.float32(dh))
    k = k.reshape(B, S, H, dh)
    v = v.reshape(B, S, H, dh)
    s = jnp.einsum('bqhd,bkhd->bhqk', q, k)
    p = jax.nn.softmax(s, axis=-1)
    o = jnp.einsum('bhqk,bkhd->bqhd', p, v).reshape(B, S, E)
    attn = o @ raw['wo'] + raw['bo'][0]
    x = residual + attn

    residual = x
    xn2 = ln(x, raw['ln2_g'], raw['ln2_b'])
    h1 = xn2 @ raw['wff1'] + raw['bff1'][0]
    F = h1.shape[-1]
    a, gate = h1[..., :F // 2], h1[..., F // 2:]
    ff = (a * jax.nn.silu(gate)) @ raw['wff2'] + raw['bff2'][0]
    return residual + ff


if __name__ == "__main__":
    # small but layout-representative shapes: head_dim = 128 (lane-dense per-head
    # blocks), S large enough that the default prod-style tiles (TQ/TS=256,
    # TK=512) give multiple q tiles and multiple KV steps, and ffn_half_tile=256
    # gives two streamed FFN tiles (exercising the reduction axis).
    B, S, E, H, FFN, MAX_LEN = 2, 1024, 256, 2, 1024, 2048

    key = jax.random.PRNGKey(0)
    kx, kp = jax.random.split(key)
    x = jax.random.normal(kx, (B, S, E), jnp.float32)

    raw = init_params(kp, E, FFN, MAX_LEN, S)
    prepared = prepare_params(raw, num_heads=H, ffn_half_tile=256)

    out = dense_transformer_layer(x, prepared, num_heads=H)
    out = jax.block_until_ready(out)

    ref = reference(x, raw, H)
    assert out.shape == (B, S, E)
    # bf16 MXU operands and bf16 intermediates -> looser tolerance than pure f32.
    np.testing.assert_allclose(np.asarray(out), np.asarray(ref),
                               rtol=2e-2, atol=2e-2)
    print("KERNEL_OK")
</pallas_src>

<mosaic_0001>
module attributes {stable_mosaic.version = 11 : i64} {
  func.func @ln_rotary_qkv_kernel(%arg0: i32, %arg1: i32, %arg2: memref<1x256x256xf32, #tpu.memory_space<vmem>>, %arg3: memref<1x256xf32, #tpu.memory_space<vmem>>, %arg4: memref<1x256xf32, #tpu.memory_space<vmem>>, %arg5: memref<256x256xf32, #tpu.memory_space<vmem>>, %arg6: memref<256x256xf32, #tpu.memory_space<vmem>>, %arg7: memref<256x768xbf16, #tpu.memory_space<vmem>>, %arg8: memref<1x768xf32, #tpu.memory_space<vmem>>, %arg9: memref<1x256x768xbf16, #tpu.memory_space<vmem>>) attributes {dimension_semantics = [#tpu.dimension_semantics<parallel>, #tpu.dimension_semantics<parallel>], iteration_bounds = array<i64: 4, 2>, scalar_prefetch = 0 : i64, scratch_operands = 0 : i64, tpu.core_type = #tpu.core_type<tc>, window_params = [{transform_indices = @transform_0, window_bounds = array<i64: 1, 256, 256>}, {pipeline_mode = #tpu.pipeline_mode<synchronous>, transform_indices = @transform_1, window_bounds = array<i64: 1, 256>}, {pipeline_mode = #tpu.pipeline_mode<synchronous>, transform_indices = @transform_2, window_bounds = array<i64: 1, 256>}, {transform_indices = @transform_3, window_bounds = array<i64: 256, 256>}, {transform_indices = @transform_4, window_bounds = array<i64: 256, 256>}, {pipeline_mode = #tpu.pipeline_mode<synchronous>, transform_indices = @transform_5, window_bounds = array<i64: 256, 768>}, {pipeline_mode = #tpu.pipeline_mode<synchronous>, transform_indices = @transform_6, window_bounds = array<i64: 1, 768>}, {transform_indices = @transform_7, window_bounds = array<i64: 1, 256, 768>}]} {
    %c0 = arith.constant 0 : index
    %c0_0 = arith.constant 0 : index
    %c0_1 = arith.constant 0 : index
    %0 = vector.load %arg2[%c0, %c0_0, %c0_1] : memref<1x256x256xf32, #tpu.memory_space<vmem>>, vector<1x256x256xf32>
    %1 = vector.shape_cast %0 : vector<1x256x256xf32> to vector<256x256xf32>
    %c0_2 = arith.constant 0 : index
    %c0_3 = arith.constant 0 : index
    %2 = vector.load %arg3[%c0_2, %c0_3] : memref<1x256xf32, #tpu.memory_space<vmem>>, vector<1x256xf32>
    %c0_4 = arith.constant 0 : index
    %c0_5 = arith.constant 0 : index
    %3 = vector.load %arg4[%c0_4, %c0_5] : memref<1x256xf32, #tpu.memory_space<vmem>>, vector<1x256xf32>
    %cst = arith.constant dense<0.000000e+00> : vector<256xf32>
    %4 = vector.multi_reduction <add>, %1, %cst [1] : vector<256x256xf32> to vector<256xf32>
    %5 = vector.shape_cast %4 : vector<256xf32> to vector<256x1xf32>
    %cst_6 = arith.constant 2.560000e+02 : f32
    %6 = vector.broadcast %cst_6 : f32 to vector<256x1xf32>
    %7 = arith.divf %5, %6 : vector<256x1xf32>
    %8 = vector.broadcast %7 : vector<256x1xf32> to vector<256x256xf32>
    %9 = arith.subf %1, %8 : vector<256x256xf32>
    %10 = arith.mulf %9, %9 : vector<256x256xf32>
    %cst_7 = arith.constant dense<0.000000e+00> : vector<256xf32>
    %11 = vector.multi_reduction <add>, %10, %cst_7 [1] : vector<256x256xf32> to vector<256xf32>
    %12 = vector.shape_cast %11 : vector<256xf32> to vector<256x1xf32>
    %cst_8 = arith.constant 2.560000e+02 : f32
    %13 = vector.broadcast %cst_8 : f32 to vector<256x1xf32>
    %14 = arith.divf %12, %13 : vector<256x1xf32>
    %cst_9 = arith.constant 9.99999974E-6 : f32
    %15 = vector.broadcast %cst_9 : f32 to vector<256x1xf32>
    %16 = arith.addf %14, %15 : vector<256x1xf32>
    %17 = math.rsqrt %16 : vector<256x1xf32>
    %18 = vector.broadcast %17 : vector<256x1xf32> to vector<256x256xf32>
    %19 = arith.mulf %9, %18 : vector<256x256xf32>
    %20 = vector.broadcast %2 : vector<1x256xf32> to vector<256x256xf32>
    %21 = arith.mulf %19, %20 : vector<256x256xf32>
    %22 = vector.broadcast %3 : vector<1x256xf32> to vector<256x256xf32>
    %23 = arith.addf %21, %22 : vector<256x256xf32>
    %c0_10 = arith.constant 0 : index
    %c0_11 = arith.constant 0 : index
    %24 = vector.load %arg5[%c0_10, %c0_11] : memref<256x256xf32, #tpu.memory_space<vmem>>, vector<256x256xf32>
    %25 = arith.mulf %23, %24 : vector<256x256xf32>
    %c128_i32 = arith.constant 128 : i32
    %26 = tpu.dynamic_rotate %23 by %c128_i32 dim 1 : vector<256x256xf32>, i32 -> vector<256x256xf32>
    %c0_12 = arith.constant 0 : index
    %c0_13 = arith.constant 0 : index
    %27 = vector.load %arg6[%c0_12, %c0_13] : memref<256x256xf32, #tpu.memory_space<vmem>>, vector<256x256xf32>
    %28 = arith.mulf %26, %27 : vector<256x256xf32>
    %29 = arith.addf %25, %28 : vector<256x256xf32>
    %30 = arith.truncf %29 : vector<256x256xf32> to vector<256x256xbf16>
    %c0_14 = arith.constant 0 : index
    %c0_15 = arith.constant 0 : index
    %31 = vector.load %arg7[%c0_14, %c0_15] : memref<256x768xbf16, #tpu.memory_space<vmem>>, vector<256x768xbf16>
    %cst_16 = arith.constant dense<0.000000e+00> : vector<256x768xf32>
    %32 = tpu.matmul %30, %31, %cst_16 {dimension_numbers = #tpu.dot_dimension_numbers<[1], [0], [0], [1], [0, 0, 1, 1], [], []>} : vector<256x256xbf16>, vector<256x768xbf16>, vector<256x768xf32> -> vector<256x768xf32>
    %c0_17 = arith.constant 0 : index
    %c0_18 = arith.constant 0 : index
    %33 = vector.load %arg8[%c0_17, %c0_18] : memref<1x768xf32, #tpu.memory_space<vmem>>, vector<1x768xf32>
    %34 = vector.broadcast %33 : vector<1x768xf32> to vector<256x768xf32>
    %35 = arith.addf %32, %34 : vector<256x768xf32>
    %36 = arith.truncf %35 : vector<256x768xf32> to vector<256x768xbf16>
    %c0_19 = arith.constant 0 : index
    %c0_20 = arith.constant 0 : index
    %c0_21 = arith.constant 0 : index
    %37 = vector.load %arg9[%c0_19, %c0_20, %c0_21] : memref<1x256x768xbf16, #tpu.memory_space<vmem>>, vector<1x256x768xbf16>
    %38 = vector.shape_cast %37 : vector<1x256x768xbf16> to vector<256x768xbf16>
    %39 = vector.shape_cast %36 : vector<256x768xbf16> to vector<1x256x768xbf16>
    tpu.vector_store %arg9[%c0_19, %c0_20, %c0_21], %39 {strides = array<i32>} : memref<1x256x768xbf16, #tpu.memory_space<vmem>>, vector<1x256x768xbf16>,
    return
  }
  func.func @transform_0(%arg0: i32, %arg1: i32) -> (i32, i32, i32) {
    %c0_i32 = arith.constant 0 : i32
    %c0_i32_0 = arith.constant 0 : i32
    return %arg1, %arg0, %c0_i32 : i32, i32, i32
  }
  func.func @transform_1(%arg0: i32, %arg1: i32) -> (i32, i32) {
    %c0_i32 = arith.constant 0 : i32
    %c0_i32_0 = arith.constant 0 : i32
    %c0_i32_1 = arith.constant 0 : i32
    return %c0_i32, %c0_i32_0 : i32, i32
  }
  func.func @transform_2(%arg0: i32, %arg1: i32) -> (i32, i32) {
    %c0_i32 = arith.constant 0 : i32
    %c0_i32_0 = arith.constant 0 : i32
    %c0_i32_1 = arith.constant 0 : i32
    return %c0_i32, %c0_i32_0 : i32, i32
  }
  func.func @transform_3(%arg0: i32, %arg1: i32) -> (i32, i32) {
    %c0_i32 = arith.constant 0 : i32
    %c0_i32_0 = arith.constant 0 : i32
    return %arg0, %c0_i32 : i32, i32
  }
  func.func @transform_4(%arg0: i32, %arg1: i32) -> (i32, i32) {
    %c0_i32 = arith.constant 0 : i32
    %c0_i32_0 = arith.constant 0 : i32
    return %arg0, %c0_i32 : i32, i32
  }
  func.func @transform_5(%arg0: i32, %arg1: i32) -> (i32, i32) {
    %c0_i32 = arith.constant 0 : i32
    %c0_i32_0 = arith.constant 0 : i32
    %c0_i32_1 = arith.constant 0 : i32
    return %c0_i32, %c0_i32_0 : i32, i32
  }
  func.func @transform_6(%arg0: i32, %arg1: i32) -> (i32, i32) {
    %c0_i32 = arith.constant 0 : i32
    %c0_i32_0 = arith.constant 0 : i32
    %c0_i32_1 = arith.constant 0 : i32
    return %c0_i32, %c0_i32_0 : i32, i32
  }
  func.func @transform_7(%arg0: i32, %arg1: i32) -> (i32, i32, i32) {
    %c0_i32 = arith.constant 0 : i32
    %c0_i32_0 = arith.constant 0 : i32
    return %arg1, %arg0, %c0_i32 : i32, i32, i32
  }
}

</mosaic_0001>

<llo_original>
// kernel: tpu_custom_call.1
$region0: #{tpu_custom_call.1}
  #allocation0 [shape = 'u32[]', space=smem, size = 0x4, offset = 0x4, fixed_abs, tag = 'smem constant byte address 0x4 - core index']
  #allocation1 [shape = 'u32[144,128]{1,0:T(1,128)}', space=vmem, size = 0x12000, scoped, tag = 'internal scratch']
  %s0 = inlined_call_operand.hbm [shape: f32[2,1024,256], index: 0, kind: input, shape index: {}]
  %s1 = inlined_call_operand.hbm [shape: f32[1,256], index: 1, kind: input, shape index: {}]
  %s2 = inlined_call_operand.hbm [shape: f32[1,256], index: 2, kind: input, shape index: {}]
  %s3 = inlined_call_operand.hbm [shape: f32[1024,256], index: 3, kind: input, shape index: {}]
  %s4 = inlined_call_operand.hbm [shape: f32[1024,256], index: 4, kind: input, shape index: {}]
  %s5 = inlined_call_operand.hbm [shape: bf16[256,768], index: 5, kind: input, shape index: {}]
  %s6 = inlined_call_operand.hbm [shape: f32[1,768], index: 6, kind: input, shape index: {}]
  %s7 = inlined_call_operand.hbm [shape: bf16[2,1024,768], index: 7, kind: output, shape index: {}]
  %s8 = sld [smem:[#allocation0]]
  $region89: #{tpu_custom_call.1} parent=0
    _
  %s10 = ssub.s32 1, %s8
  %s11 = scalar_select 0, %s10, %s8
  $region1: #{tpu_custom_call.1} parent=0
    #allocation2 [shape = 'u8[524288]{0}', space=vmem, size = 0x80000, scoped, tag = 'input window, operand 0']
    #allocation3 [shape = 's32[2]{0}', space=sflag, size = 0x8, scoped, tag = 'scoped memory for tpu_custom_call.1']
    #allocation4 [shape = 's32[2]{0}', space=sflag, size = 0x8, scoped, tag = 'scoped memory for tpu_custom_call.1']
    #allocation5 [shape = 'u8[1024]{0}', space=vmem, size = 0x400, scoped, tag = 'input window, operand 1, single buffered']
    #allocation6 [shape = 's32[1]{0}', space=sflag, size = 0x4, scoped, tag = 'scoped memory for tpu_custom_call.1']
    #allocation7 [shape = 'u8[1024]{0}', space=vmem, size = 0x400, scoped, tag = 'input window, operand 2, single buffered']
    #allocation8 [shape = 'u8[524288]{0}', space=vmem, size = 0x80000, scoped, tag = 'input window, operand 3']
    #allocation9 [shape = 's32[2]{0}', space=sflag, size = 0x8, scoped, tag = 'scoped memory for tpu_custom_call.1']
    #allocation10 [shape = 'u8[524288]{0}', space=vmem, size = 0x80000, scoped, tag = 'input window, operand 4']
    #allocation11 [shape = 'u8[393216]{0}', space=vmem, size = 0x60000, scoped, tag = 'input window, operand 5, single buffered']
    #allocation12 [shape = 's32[1]{0}', space=sflag, size = 0x4, scoped, tag = 'scoped memory for tpu_custom_call.1']
    #allocation13 [shape = 'u8[3072]{0}', space=vmem, size = 0xc00, scoped, tag = 'input window, operand 6, single buffered']
    #allocation14 [shape = 'u8[786432]{0}', space=vmem, size = 0xc0000, scoped, tag = 'output window, operand 0']
    %12 = vsyncpa [#allocation3], 0
    %s13 = scalar_lea.sflag [#allocation3], 1
    %14 = vsyncpa %s13, 0
    %15 = vsyncpa [#allocation6], 0
    %16 = vsyncpa [#allocation9], 0
    %s17 = scalar_lea.sflag [#allocation9], 1
    %18 = vsyncpa %s17, 0
    %19 = vsyncpa [#allocation12], 0
    %20 = vsyncpa [#allocation4], 0
    %s21 = scalar_lea.sflag [#allocation4], 1
    %22 = vsyncpa %s21, 0
    loop: start=0, step=1, limit=10
    $region2: #{tpu_custom_call.1} parent=1 // loop_pre_header
      _
    $region3: #{tpu_custom_call.1} parent=1 // loop_header
      %s24 = sphi 0, %s28
      %p25 = scmp.ge.s32.totalorder %s24, 10
      %s31 = sphi 0, %s43
      %s32 = sphi 0, %s39
      %s33 = sphi 0, %s31
      %s34 = sphi 0, %s32
      %s35 = sphi 0, %s33
      %s36 = sphi 0, %s34
      %s48 = sphi 0, %s50
      %s51 = sphi 0, %s48
      %s52 = sphi 0, %s51
      %s68 = sphi 0, %s52
      %s72 = sphi 0, %s72
      %s74 = sphi 0, %s72
      %s75 = sphi 0, %s74
      %s89 = sphi 0, %s75
      %s93 = sphi 0, %s93
      %s95 = sphi 0, %s93
      %s96 = sphi 0, %s95
      %s110 = sphi 0, %s96
      %s116 = sphi 0, %s118
      %s119 = sphi 0, %s116
      %s120 = sphi 0, %s119
      %s136 = sphi 0, %s120
      %s142 = sphi 0, %s144
      %s145 = sphi 0, %s142
      %s146 = sphi 0, %s145
      %s162 = sphi 0, %s146
      %s166 = sphi 0, %s166
      %s168 = sphi 0, %s166
      %s169 = sphi 0, %s168
      %s183 = sphi 0, %s169
      %s187 = sphi 0, %s187
      %s189 = sphi 0, %s187
      %s190 = sphi 0, %s189
      %s204 = sphi 0, %s190
      %s212 = sphi 0, %s214
      %s215 = sphi 0, %s212
      %s216 = sphi 0, %s215
      %s232 = sphi 0, %s216
    $region4: #{tpu_custom_call.1} parent=1 // loop_header_branch
      %27 = sbr.rel (%p25) target = $region8
    $region5: #{tpu_custom_call.1} parent=1 // loop_body
      %s29 = ssub.s32 %s24, 1
      %s30 = ssub.s32 %s24, 2
      %s37 = sadd.s32 1, %s32
      %p38 = scmp.ge.s32.totalorder %s37, 2
      %s39 = scalar_select %p38, 0, %s37
      %s40 = sadd.s32 1, %s31
      %s41 = scalar_select %p38, %s40, %s31
      %p42 = scmp.ge.s32.totalorder %s41, 4
      %s43 = scalar_select %p42, 0, %s41
      %s44 = ssub.s32 %s32, %s39
      %s45 = ssub.s32 %s31, %s43
      %s46 = sor.u32 %s44, %s45
      %p47 = scmp.eq.s32.totalorder %s46, 0
      %s49 = sadd.s32 %s48, 1
      %s50 = scalar_select %p47, %s48, %s49
      %p53 = pneg %p47
      %p54 = scmp.eq.s32.totalorder %s24, 7
      %p55 = por %p53, %p54
      %p56 = scmp.ne.s32.totalorder %s48, %s51
      %p57 = scmp.eq.s32.totalorder %s24, 0
      %p58 = por %p56, %p57
      %p59 = scmp.ne.s32.totalorder %s48, %s51
      %p60 = scmp.eq.s32.totalorder %s29, 7
      %p61 = por %p59, %p60
      %p62 = scmp.ne.s32.totalorder %s51, %s52
      %p63 = scmp.eq.s32.totalorder %s29, 0
      %p64 = por %p62, %p63
      %p65 = scmp.ne.s32.totalorder %s51, %s52
      %p66 = scmp.eq.s32.totalorder %s30, 7
      %p67 = por %p65, %p66
      %p69 = scmp.ne.s32.totalorder %s52, %s68
      %p70 = scmp.eq.s32.totalorder %s30, 0
      %p71 = por %p69, %p70
      %s73 = sadd.s32 %s72, 1
      %p76 = scmp.eq.s32.totalorder %s24, 7
      %p77 = scmp.ne.s32.totalorder %s72, %s74
      %p78 = scmp.eq.s32.totalorder %s24, 0
      %p79 = por %p77, %p78
      %p80 = scmp.ne.s32.totalorder %s72, %s74
      %p81 = scmp.eq.s32.totalorder %s29, 7
      %p82 = por %p80, %p81
      %p83 = scmp.ne.s32.totalorder %s74, %s75
      %p84 = scmp.eq.s32.totalorder %s29, 0
      %p85 = por %p83, %p84
      %p86 = scmp.ne.s32.totalorder %s74, %s75
      %p87 = scmp.eq.s32.totalorder %s30, 7
      %p88 = por %p86, %p87
      %p90 = scmp.ne.s32.totalorder %s75, %s89
      %p91 = scmp.eq.s32.totalorder %s30, 0
      %p92 = por %p90, %p91
      %s94 = sadd.s32 %s93, 1
      %p97 = scmp.eq.s32.totalorder %s24, 7
      %p98 = scmp.ne.s32.totalorder %s93, %s95
      %p99 = scmp.eq.s32.totalorder %s24, 0
      %p100 = por %p98, %p99
      %p101 = scmp.ne.s32.totalorder %s93, %s95
      %p102 = scmp.eq.s32.totalorder %s29, 7
      %p103 = por %p101, %p102
      %p104 = scmp.ne.s32.totalorder %s95, %s96
      %p105 = scmp.eq.s32.totalorder %s29, 0
      %p106 = por %p104, %p105
      %p107 = scmp.ne.s32.totalorder %s95, %s96
      %p108 = scmp.eq.s32.totalorder %s30, 7
      %p109 = por %p107, %p108
      %p111 = scmp.ne.s32.totalorder %s96, %s110
      %p112 = scmp.eq.s32.totalorder %s30, 0
      %p113 = por %p111, %p112
      %s114 = ssub.s32 %s31, %s43
      %p115 = scmp.eq.s32.totalorder %s114, 0
      %s117 = sadd.s32 %s116, 1
      %s118 = scalar_select %p115, %s116, %s117
      %p121 = pneg %p115
      %p122 = scmp.eq.s32.totalorder %s24, 7
      %p123 = por %p121, %p122
      %p124 = scmp.ne.s32.totalorder %s116, %s119
      %p125 = scmp.eq.s32.totalorder %s24, 0
      %p126 = por %p124, %p125
      %p127 = scmp.ne.s32.totalorder %s116, %s119
      %p128 = scmp.eq.s32.totalorder %s29, 7
      %p129 = por %p127, %p128
      %p130 = scmp.ne.s32.totalorder %s119, %s120
      %p131 = scmp.eq.s32.totalorder %s29, 0
      %p132 = por %p130, %p131
      %p133 = scmp.ne.s32.totalorder %s119, %s120
      %p134 = scmp.eq.s32.totalorder %s30, 7
      %p135 = por %p133, %p134
      %p137 = scmp.ne.s32.totalorder %s120, %s136
      %p138 = scmp.eq.s32.totalorder %s30, 0
      %p139 = por %p137, %p138
      %s140 = ssub.s32 %s31, %s43
      %p141 = scmp.eq.s32.totalorder %s140, 0
      %s143 = sadd.s32 %s142, 1
      %s144 = scalar_select %p141, %s142, %s143
      %p147 = pneg %p141
      %p148 = scmp.eq.s32.totalorder %s24, 7
      %p149 = por %p147, %p148
      %p150 = scmp.ne.s32.totalorder %s142, %s145
      %p151 = scmp.eq.s32.totalorder %s24, 0
      %p152 = por %p150, %p151
      %p153 = scmp.ne.s32.totalorder %s142, %s145
      %p154 = scmp.eq.s32.totalorder %s29, 7
      %p155 = por %p153, %p154
      %p156 = scmp.ne.s32.totalorder %s145, %s146
      %p157 = scmp.eq.s32.totalorder %s29, 0
      %p158 = por %p156, %p157
      %p159 = scmp.ne.s32.totalorder %s145, %s146
      %p160 = scmp.eq.s32.totalorder %s30, 7
      %p161 = por %p159, %p160
      %p163 = scmp.ne.s32.totalorder %s146, %s162
      %p164 = scmp.eq.s32.totalorder %s30, 0
      %p165 = por %p163, %p164
      %s167 = sadd.s32 %s166, 1
      %p170 = scmp.eq.s32.totalorder %s24, 7
      %p171 = scmp.ne.s32.totalorder %s166, %s168
      %p172 = scmp.eq.s32.totalorder %s24, 0
      %p173 = por %p171, %p172
      %p174 = scmp.ne.s32.totalorder %s166, %s168
      %p175 = scmp.eq.s32.totalorder %s29, 7
      %p176 = por %p174, %p175
      %p177 = scmp.ne.s32.totalorder %s168, %s169
      %p178 = scmp.eq.s32.totalorder %s29, 0
      %p179 = por %p177, %p178
      %p180 = scmp.ne.s32.totalorder %s168, %s169
      %p181 = scmp.eq.s32.totalorder %s30, 7
      %p182 = por %p180, %p181
      %p184 = scmp.ne.s32.totalorder %s169, %s183
      %p185 = scmp.eq.s32.totalorder %s30, 0
      %p186 = por %p184, %p185
      %s188 = sadd.s32 %s187, 1
      %p191 = scmp.eq.s32.totalorder %s24, 7
      %p192 = scmp.ne.s32.totalorder %s187, %s189
      %p193 = scmp.eq.s32.totalorder %s24, 0
      %p194 = por %p192, %p193
      %p195 = scmp.ne.s32.totalorder %s187, %s189
      %p196 = scmp.eq.s32.totalorder %s29, 7
      %p197 = por %p195, %p196
      %p198 = scmp.ne.s32.totalorder %s189, %s190
      %p199 = scmp.eq.s32.totalorder %s29, 0
      %p200 = por %p198, %p199
      %p201 = scmp.ne.s32.totalorder %s189, %s190
      %p202 = scmp.eq.s32.totalorder %s30, 7
      %p203 = por %p201, %p202
      %p205 = scmp.ne.s32.totalorder %s190, %s204
      %p206 = scmp.eq.s32.totalorder %s30, 0
      %p207 = por %p205, %p206
      %s208 = ssub.s32 %s32, %s39
      %s209 = ssub.s32 %s31, %s43
      %s210 = sor.u32 %s208, %s209
      %p211 = scmp.eq.s32.totalorder %s210, 0
      %s213 = sadd.s32 %s212, 1
      %s214 = scalar_select %p211, %s212, %s213
      %p217 = pneg %p211
      %p218 = scmp.eq.s32.totalorder %s24, 7
      %p219 = por %p217, %p218
      %p220 = scmp.ne.s32.totalorder %s212, %s215
      %p221 = scmp.eq.s32.totalorder %s24, 0
      %p222 = por %p220, %p221
      %p223 = scmp.ne.s32.totalorder %s212, %s215
      %p224 = scmp.eq.s32.totalorder %s29, 7
      %p225 = por %p223, %p224
      %p226 = scmp.ne.s32.totalorder %s215, %s216
      %p227 = scmp.eq.s32.totalorder %s29, 0
      %p228 = por %p226, %p227
      %p229 = scmp.ne.s32.totalorder %s215, %s216
      %p230 = scmp.eq.s32.totalorder %s30, 7
      %p231 = por %p229, %p230
      %p233 = scmp.ne.s32.totalorder %s216, %s232
      %p234 = scmp.eq.s32.totalorder %s30, 0
      %p235 = por %p233, %p234
      %p236 = scmp.le.s32.totalorder 1, %s24
      %p237 = scmp.lt.s32.totalorder %s24, 9
      %p238 = pnand %p236, %p237
      %p239 = pneg %p238
      // Predicated region
      $region9: #{tpu_custom_call.1} parent=5 // pred_check
        _
      $region10: #{tpu_custom_call.1} parent=5 // pred_check_branch
        %241 = sbr.rel (%p238) target = $region12
      $region11: #{tpu_custom_call.1} parent=5 // pred_region
        %s242 = ssub.s32 %s24, 1
        // Predicated region
        $region13: #{tpu_custom_call.1} parent=11 // pred_check
          %p243 = pneg %p85
        $region14: #{tpu_custom_call.1} parent=11 // pred_check_branch
          %245 = sbr.rel (%p243) target = $region16
        $region15: #{tpu_custom_call.1} parent=11 // pred_region
          %s247 = ssub.s32 32, 32
          %248 = vsyncadd [#allocation6], %s247
          %s250 = sshll.u32 [#allocation5], 4
          %s251 = int_to_ptr.vmem [resolvable:$true] %s250
          %253 = dma.hbm_to_vmem [thread:$0]  %s1, 32, %s251, [#allocation6]
        $region16: #{tpu_custom_call.1} parent=11 // pred_fallthru
          _
        // Predicated region
        $region17: #{tpu_custom_call.1} parent=11 // pred_check
          %p254 = pneg %p106
        $region18: #{tpu_custom_call.1} parent=11 // pred_check_branch
          %256 = sbr.rel (%p254) target = $region20
        $region19: #{tpu_custom_call.1} parent=11 // pred_region
          %s258 = ssub.s32 32, 32
          %259 = vsyncadd [#allocation6], %s258
          %s261 = sshll.u32 [#allocation7], 4
          %s262 = int_to_ptr.vmem [resolvable:$true] %s261
          %264 = dma.hbm_to_vmem [thread:$0]  %s2, 32, %s262, [#allocation6]
        $region20: #{tpu_custom_call.1} parent=11 // pred_fallthru
          _
        // Predicated region
        $region21: #{tpu_custom_call.1} parent=11 // pred_check
          %p265 = pneg %p179
        $region22: #{tpu_custom_call.1} parent=11 // pred_check_branch
          %267 = sbr.rel (%p265) target = $region24
        $region23: #{tpu_custom_call.1} parent=11 // pred_region
          %s269 = ssub.s32 12288, 12288
          %270 = vsyncadd [#allocation12], %s269
          %s271 = sshll.u32 [#allocation11], 4
          %s272 = int_to_ptr.vmem [resolvable:$true] %s271
          %277 = dma.hbm_to_vmem [thread:$0]  %s5, 12288, %s272, [#allocation12], 384, 384, 24
        $region24: #{tpu_custom_call.1} parent=11 // pred_fallthru
          _
        // Predicated region
        $region25: #{tpu_custom_call.1} parent=11 // pred_check
          %p278 = pneg %p200
        $region26: #{tpu_custom_call.1} parent=11 // pred_check_branch
          %280 = sbr.rel (%p278) target = $region28
        $region27: #{tpu_custom_call.1} parent=11 // pred_region
          %s282 = ssub.s32 96, 96
          %283 = vsyncadd [#allocation12], %s282
          %s285 = sshll.u32 [#allocation13], 4
          %s286 = int_to_ptr.vmem [resolvable:$true] %s285
          %288 = dma.hbm_to_vmem [thread:$0]  %s6, 96, %s286, [#allocation12]
        $region28: #{tpu_custom_call.1} parent=11 // pred_fallthru
          _
      $region12: #{tpu_custom_call.1} parent=5 // pred_fallthru
        _
      %p289 = scmp.lt.s32.totalorder %s24, 8
      // Predicated region
      $region29: #{tpu_custom_call.1} parent=5 // pred_check
        %p290 = pneg %p289
      $region30: #{tpu_custom_call.1} parent=5 // pred_check_branch
        %292 = sbr.rel (%p290) target = $region32
      $region31: #{tpu_custom_call.1} parent=5 // pred_region
        // Predicated region
        $region33: #{tpu_custom_call.1} parent=31 // pred_check
          %p293 = pneg %p58
        $region34: #{tpu_custom_call.1} parent=31 // pred_check_branch
          %295 = sbr.rel (%p293) target = $region36
        $region35: #{tpu_custom_call.1} parent=31 // pred_region
          %s296 = sand.u32 %s48, 1
          %s297 = scalar_lea.sflag [#allocation3], %s296
          %s298 = sand.u32 %s48, 1
          %s299 = smul.addr %s298, 512
          %s300 = scalar_lea.vmem [#allocation2], %s299
          %s301 = smul.u32 32, %s31
          %s303 = ssub.s32 8192, 8192
          %304 = vsyncadd %s297, %s303
          %s305 = smul.addr %s301, 2
          %s306 = smul.addr %s32, 256
          %s307 = sadd.s32 %s305, %s306
          %s308 = smul.addr %s307, 128
          %s309 = scalar_lea.hbm %s0, %s308
          %s310 = sshll.u32 %s300, 4
          %s311 = int_to_ptr.vmem [resolvable:$true] %s310
          %316 = dma.hbm_to_vmem [thread:$0]  %s309, 8192, %s311, %s297, 256, 256, 16
        $region36: #{tpu_custom_call.1} parent=31 // pred_fallthru
          _
        // Predicated region
        $region37: #{tpu_custom_call.1} parent=31 // pred_check
          %p317 = pneg %p126
        $region38: #{tpu_custom_call.1} parent=31 // pred_check_branch
          %319 = sbr.rel (%p317) target = $region40
        $region39: #{tpu_custom_call.1} parent=31 // pred_region
          %s320 = sand.u32 %s24, 1
          %s321 = scalar_lea.sflag [#allocation9], %s320
          %s322 = sand.u32 %s116, 1
          %s323 = smul.addr %s322, 512
          %s324 = scalar_lea.vmem [#allocation8], %s323
          %s325 = smul.u32 32, %s31
          %s327 = ssub.s32 8192, 8192
          %328 = vsyncadd %s321, %s327
          %s329 = smul.addr %s325, 2
          %s330 = smul.addr %s329, 128
          %s331 = scalar_lea.hbm %s3, %s330
          %s332 = sshll.u32 %s324, 4
          %s333 = int_to_ptr.vmem [resolvable:$true] %s332
          %338 = dma.hbm_to_vmem [thread:$0]  %s331, 8192, %s333, %s321, 256, 256, 16
        $region40: #{tpu_custom_call.1} parent=31 // pred_fallthru
          _
        // Predicated region
        $region41: #{tpu_custom_call.1} parent=31 // pred_check
          %p339 = pneg %p152
        $region42: #{tpu_custom_call.1} parent=31 // pred_check_branch
          %341 = sbr.rel (%p339) target = $region44
        $region43: #{tpu_custom_call.1} parent=31 // pred_region
          %s342 = sand.u32 %s24, 1
          %s343 = scalar_lea.sflag [#allocation9], %s342
          %s344 = sand.u32 %s142, 1
          %s345 = smul.addr %s344, 512
          %s346 = scalar_lea.vmem [#allocation10], %s345
          %s347 = smul.u32 32, %s31
          %s349 = ssub.s32 8192, 8192
          %350 = vsyncadd %s343, %s349
          %s351 = smul.addr %s347, 2
          %s352 = smul.addr %s351, 128
          %s353 = scalar_lea.hbm %s4, %s352
          %s354 = sshll.u32 %s346, 4
          %s355 = int_to_ptr.vmem [resolvable:$true] %s354
          %360 = dma.hbm_to_vmem [thread:$0]  %s353, 8192, %s355, %s343, 256, 256, 16
        $region44: #{tpu_custom_call.1} parent=31 // pred_fallthru
          _
      $region32: #{tpu_custom_call.1} parent=5 // pred_fallthru
        _
      %p361 = scmp.le.s32.totalorder 1, %s24
      %p362 = scmp.lt.s32.totalorder %s24, 9
      %p363 = pnand %p361, %p362
      %p364 = pneg %p363
      // Predicated region
      $region45: #{tpu_custom_call.1} parent=5 // pred_check
        _
      $region46: #{tpu_custom_call.1} parent=5 // pred_check_branch
        %366 = sbr.rel (%p363) target = $region48
      $region47: #{tpu_custom_call.1} parent=5 // pred_region
        %s367 = ssub.s32 %s24, 1
        %s368 = sand.u32 %s51, 1
        %s369 = scalar_lea.sflag [#allocation3], %s368
        %s370 = sand.u32 %s51, 1
        %s371 = smul.addr %s370, 512
        %s372 = scalar_lea.vmem [#allocation2], %s371
        // Predicated region
        $region49: #{tpu_custom_call.1} parent=47 // pred_check
          %p373 = pneg %p64
        $region50: #{tpu_custom_call.1} parent=47 // pred_check_branch
          %375 = sbr.rel (%p373) target = $region52
        $region51: #{tpu_custom_call.1} parent=47 // pred_region
          %376 = dma.done %s369, 8192
        $region52: #{tpu_custom_call.1} parent=47 // pred_fallthru
          _
        // Predicated region
        $region53: #{tpu_custom_call.1} parent=47 // pred_check
          %p377 = pneg %p85
        $region54: #{tpu_custom_call.1} parent=47 // pred_check_branch
          %379 = sbr.rel (%p377) target = $region56
        $region55: #{tpu_custom_call.1} parent=47 // pred_region
          %380 = dma.done [#allocation6], 32
        $region56: #{tpu_custom_call.1} parent=47 // pred_fallthru
          _
        // Predicated region
        $region57: #{tpu_custom_call.1} parent=47 // pred_check
          %p381 = pneg %p106
        $region58: #{tpu_custom_call.1} parent=47 // pred_check_branch
          %383 = sbr.rel (%p381) target = $region60
        $region59: #{tpu_custom_call.1} parent=47 // pred_region
          %384 = dma.done [#allocation6], 32
        $region60: #{tpu_custom_call.1} parent=47 // pred_fallthru
          _
        %s385 = sand.u32 %s29, 1
        %s386 = scalar_lea.sflag [#allocation9], %s385
        %s387 = sand.u32 %s119, 1
        %s388 = smul.addr %s387, 512
        %s389 = scalar_lea.vmem [#allocation8], %s388
        // Predicated region
        $region61: #{tpu_custom_call.1} parent=47 // pred_check
          %p390 = pneg %p132
        $region62: #{tpu_custom_call.1} parent=47 // pred_check_branch
          %392 = sbr.rel (%p390) target = $region64
        $region63: #{tpu_custom_call.1} parent=47 // pred_region
          %393 = dma.done %s386, 8192
        $region64: #{tpu_custom_call.1} parent=47 // pred_fallthru
          _
        %s394 = sand.u32 %s29, 1
        %s395 = scalar_lea.sflag [#allocation9], %s394
        %s396 = sand.u32 %s145, 1
        %s397 = smul.addr %s396, 512
        %s398 = scalar_lea.vmem [#allocation10], %s397
        // Predicated region
        $region65: #{tpu_custom_call.1} parent=47 // pred_check
          %p399 = pneg %p158
        $region66: #{tpu_custom_call.1} parent=47 // pred_check_branch
          %401 = sbr.rel (%p399) target = $region68
        $region67: #{tpu_custom_call.1} parent=47 // pred_region
          %402 = dma.done %s395, 8192
        $region68: #{tpu_custom_call.1} parent=47 // pred_fallthru
          _
        // Predicated region
        $region69: #{tpu_custom_call.1} parent=47 // pred_check
          %p403 = pneg %p179
        $region70: #{tpu_custom_call.1} parent=47 // pred_check_branch
          %405 = sbr.rel (%p403) target = $region72
        $region71: #{tpu_custom_call.1} parent=47 // pred_region
          %406 = dma.done [#allocation12], 12288
        $region72: #{tpu_custom_call.1} parent=47 // pred_fallthru
          _
        // Predicated region
        $region73: #{tpu_custom_call.1} parent=47 // pred_check
          %p407 = pneg %p200
        $region74: #{tpu_custom_call.1} parent=47 // pred_check_branch
          %409 = sbr.rel (%p407) target = $region76
        $region75: #{tpu_custom_call.1} parent=47 // pred_region
          %410 = dma.done [#allocation12], 96
        $region76: #{tpu_custom_call.1} parent=47 // pred_fallthru
          _
        %s411 = sand.u32 %s51, 1
        %s412 = scalar_lea.sflag [#allocation3], %s411
        %s413 = sand.u32 %s51, 1
        %s414 = smul.addr %s413, 512
        %s415 = scalar_lea.vmem [#allocation2], %s414
        %p416 = pneg %p64
        %p417 = pneg %p61
        %p418 = pneg %p85
        %p419 = pneg %p82
        %p420 = pneg %p106
        %p421 = pneg %p103
        %s422 = sand.u32 %s29, 1
        %s423 = scalar_lea.sflag [#allocation9], %s422
        %s424 = sand.u32 %s119, 1
        %s425 = smul.addr %s424, 512
        %s426 = scalar_lea.vmem [#allocation8], %s425
        %p427 = pneg %p132
        %p428 = pneg %p129
        %s429 = sand.u32 %s29, 1
        %s430 = scalar_lea.sflag [#allocation9], %s429
        %s431 = sand.u32 %s145, 1
        %s432 = smul.addr %s431, 512
        %s433 = scalar_lea.vmem [#allocation10], %s432
        %p434 = pneg %p158
        %p435 = pneg %p155
        %p436 = pneg %p179
        %p437 = pneg %p176
        %p438 = pneg %p200
        %p439 = pneg %p197
        %p440 = pneg %p228
        %p441 = pneg %p225
        %s442 = sand.u32 %s215, 1
        %s443 = scalar_lea.sflag [#allocation4], %s442
        %s444 = sand.u32 %s215, 1
        %s445 = smul.addr %s444, 768
        %s446 = scalar_lea.vmem [#allocation14], %s445
        %s447 = smul.u32 32, %s33
        %s448 = smul.u32 32, %s33
        %s449 = smul.u32 32, %s33
        %s450 = smul.u32 32, %s33
        %v451 = vld [vmem:[%s372] sm:$0xff]
        %v452 = vld [vmem:[%s372 + $0x8] sm:$0xff]
        %v453 = vld [vmem:[%s372 + $0x10] sm:$0xff]
        %v454 = vld [vmem:[%s372 + $0x18] sm:$0xff]
        %v455 = vld [vmem:[%s372 + $0x20] sm:$0xff]
        %v456 = vld [vmem:[%s372 + $0x28] sm:$0xff]
        %v457 = vld [vmem:[%s372 + $0x30] sm:$0xff]
        %v458 = vld [vmem:[%s372 + $0x38] sm:$0xff]
        %v459 = vld [vmem:[%s372 + $0x40] sm:$0xff]
        %v460 = vld [vmem:[%s372 + $0x48] sm:$0xff]
        %v461 = vld [vmem:[%s372 + $0x50] sm:$0xff]
        %v462 = vld [vmem:[%s372 + $0x58] sm:$0xff]
        %v463 = vld [vmem:[%s372 + $0x60] sm:$0xff]
        %v464 = vld [vmem:[%s372 + $0x68] sm:$0xff]
        %v465 = vld [vmem:[%s372 + $0x70] sm:$0xff]
        %v466 = vld [vmem:[%s372 + $0x78] sm:$0xff]
        %v467 = vld [vmem:[%s372 + $0x80] sm:$0xff]
        %v468 = vld [vmem:[%s372 + $0x88] sm:$0xff]
        %v469 = vld [vmem:[%s372 + $0x90] sm:$0xff]
        %v470 = vld [vmem:[%s372 + $0x98] sm:$0xff]
        %v471 = vld [vmem:[%s372 + $0xa0] sm:$0xff]
        %v472 = vld [vmem:[%s372 + $0xa8] sm:$0xff]
        %v473 = vld [vmem:[%s372 + $0xb0] sm:$0xff]
        %v474 = vld [vmem:[%s372 + $0xb8] sm:$0xff]
        %v475 = vld [vmem:[%s372 + $0xc0] sm:$0xff]
        %v476 = vld [vmem:[%s372 + $0xc8] sm:$0xff]
        %v477 = vld [vmem:[%s372 + $0xd0] sm:$0xff]
        %v478 = vld [vmem:[%s372 + $0xd8] sm:$0xff]
        %v479 = vld [vmem:[%s372 + $0xe0] sm:$0xff]
        %v480 = vld [vmem:[%s372 + $0xe8] sm:$0xff]
        %v481 = vld [vmem:[%s372 + $0xf0] sm:$0xff]
        %v482 = vld [vmem:[%s372 + $0xf8] sm:$0xff]
        %v483 = vld [vmem:[%s372 + $0x100] sm:$0xff]
        %v484 = vld [vmem:[%s372 + $0x108] sm:$0xff]
        %v485 = vld [vmem:[%s372 + $0x110] sm:$0xff]
        %v486 = vld [vmem:[%s372 + $0x118] sm:$0xff]
        %v487 = vld [vmem:[%s372 + $0x120] sm:$0xff]
        %v488 = vld [vmem:[%s372 + $0x128] sm:$0xff]
        %v489 = vld [vmem:[%s372 + $0x130] sm:$0xff]
        %v490 = vld [vmem:[%s372 + $0x138] sm:$0xff]
        %v491 = vld [vmem:[%s372 + $0x140] sm:$0xff]
        %v492 = vld [vmem:[%s372 + $0x148] sm:$0xff]
        %v493 = vld [vmem:[%s372 + $0x150] sm:$0xff]
        %v494 = vld [vmem:[%s372 + $0x158] sm:$0xff]
        %v495 = vld [vmem:[%s372 + $0x160] sm:$0xff]
        %v496 = vld [vmem:[%s372 + $0x168] sm:$0xff]
        %v497 = vld [vmem:[%s372 + $0x170] sm:$0xff]
        %v498 = vld [vmem:[%s372 + $0x178] sm:$0xff]
        %v499 = vld [vmem:[%s372 + $0x180] sm:$0xff]
        %v500 = vld [vmem:[%s372 + $0x188] sm:$0xff]
        %v501 = vld [vmem:[%s372 + $0x190] sm:$0xff]
        %v502 = vld [vmem:[%s372 + $0x198] sm:$0xff]
        %v503 = vld [vmem:[%s372 + $0x1a0] sm:$0xff]
        %v504 = vld [vmem:[%s372 + $0x1a8] sm:$0xff]
        %v505 = vld [vmem:[%s372 + $0x1b0] sm:$0xff]
        %v506 = vld [vmem:[%s372 + $0x1b8] sm:$0xff]
        %v507 = vld [vmem:[%s372 + $0x1c0] sm:$0xff]
        %v508 = vld [vmem:[%s372 + $0x1c8] sm:$0xff]
        %v509 = vld [vmem:[%s372 + $0x1d0] sm:$0xff]
        %v510 = vld [vmem:[%s372 + $0x1d8] sm:$0xff]
        %v511 = vld [vmem:[%s372 + $0x1e0] sm:$0xff]
        %v512 = vld [vmem:[%s372 + $0x1e8] sm:$0xff]
        %v513 = vld [vmem:[%s372 + $0x1f0] sm:$0xff]
        %v514 = vld [vmem:[%s372 + $0x1f8] sm:$0xff]
        %v515 = vld [vmem:[#allocation5] sm:$0x3]
        %v516 = vld [vmem:[#allocation7] sm:$0x3]
        %v517 = vadd.f32 %v451, %v452
        %518 = vadd.xlane.f32.xlu0 %v517
        %v519 = vpop.xlane.xlu0 %518
        %v520 = vadd.f32 %v453, %v454
        %521 = vadd.xlane.f32.xlu0 %v520
        %v522 = vpop.xlane.xlu0 %521
        %v523 = vadd.f32 %v455, %v456
        %524 = vadd.xlane.f32.xlu0 %v523
        %v525 = vpop.xlane.xlu0 %524
        %v526 = vadd.f32 %v457, %v458
        %527 = vadd.xlane.f32.xlu0 %v526
        %v528 = vpop.xlane.xlu0 %527
        %v529 = vadd.f32 %v459, %v460
        %530 = vadd.xlane.f32.xlu0 %v529
        %v531 = vpop.xlane.xlu0 %530
        %v532 = vadd.f32 %v461, %v462
        %533 = vadd.xlane.f32.xlu0 %v532
        %v534 = vpop.xlane.xlu0 %533
        %v535 = vadd.f32 %v463, %v464
        %536 = vadd.xlane.f32.xlu0 %v535
        %v537 = vpop.xlane.xlu0 %536
        %v538 = vadd.f32 %v465, %v466
        %539 = vadd.xlane.f32.xlu0 %v538
        %v540 = vpop.xlane.xlu0 %539
        %v541 = vadd.f32 %v467, %v468
        %542 = vadd.xlane.f32.xlu0 %v541
        %v543 = vpop.xlane.xlu0 %542
        %v544 = vadd.f32 %v469, %v470
        %545 = vadd.xlane.f32.xlu0 %v544
        %v546 = vpop.xlane.xlu0 %545
        %v547 = vadd.f32 %v471, %v472
        %548 = vadd.xlane.f32.xlu0 %v547
        %v549 = vpop.xlane.xlu0 %548
        %v550 = vadd.f32 %v473, %v474
        %551 = vadd.xlane.f32.xlu0 %v550
        %v552 = vpop.xlane.xlu0 %551
        %v553 = vadd.f32 %v475, %v476
        %554 = vadd.xlane.f32.xlu0 %v553
        %v555 = vpop.xlane.xlu0 %554
        %v556 = vadd.f32 %v477, %v478
        %557 = vadd.xlane.f32.xlu0 %v556
        %v558 = vpop.xlane.xlu0 %557
        %v559 = vadd.f32 %v479, %v480
        %560 = vadd.xlane.f32.xlu0 %v559
        %v561 = vpop.xlane.xlu0 %560
        %v562 = vadd.f32 %v481, %v482
        %563 = vadd.xlane.f32.xlu0 %v562
        %v564 = vpop.xlane.xlu0 %563
        %v565 = vadd.f32 %v483, %v484
        %566 = vadd.xlane.f32.xlu0 %v565
        %v567 = vpop.xlane.xlu0 %566
        %v568 = vadd.f32 %v485, %v486
        %569 = vadd.xlane.f32.xlu0 %v568
        %v570 = vpop.xlane.xlu0 %569
        %v571 = vadd.f32 %v487, %v488
        %572 = vadd.xlane.f32.xlu0 %v571
        %v573 = vpop.xlane.xlu0 %572
        %v574 = vadd.f32 %v489, %v490
        %575 = vadd.xlane.f32.xlu0 %v574
        %v576 = vpop.xlane.xlu0 %575
        %v577 = vadd.f32 %v491, %v492
        %578 = vadd.xlane.f32.xlu0 %v577
        %v579 = vpop.xlane.xlu0 %578
        %v580 = vadd.f32 %v493, %v494
        %581 = vadd.xlane.f32.xlu0 %v580
        %v582 = vpop.xlane.xlu0 %581
        %v583 = vadd.f32 %v495, %v496
        %584 = vadd.xlane.f32.xlu0 %v583
        %v585 = vpop.xlane.xlu0 %584
        %v586 = vadd.f32 %v497, %v498
        %587 = vadd.xlane.f32.xlu0 %v586
        %v588 = vpop.xlane.xlu0 %587
        %v589 = vadd.f32 %v499, %v500
        %590 = vadd.xlane.f32.xlu0 %v589
        %v591 = vpop.xlane.xlu0 %590
        %v592 = vadd.f32 %v501, %v502
        %593 = vadd.xlane.f32.xlu0 %v592
        %v594 = vpop.xlane.xlu0 %593
        %v595 = vadd.f32 %v503, %v504
        %596 = vadd.xlane.f32.xlu0 %v595
        %v597 = vpop.xlane.xlu0 %596
        %v598 = vadd.f32 %v505, %v506
        %599 = vadd.xlane.f32.xlu0 %v598
        %v600 = vpop.xlane.xlu0 %599
        %v601 = vadd.f32 %v507, %v508
        %602 = vadd.xlane.f32.xlu0 %v601
        %v603 = vpop.xlane.xlu0 %602
        %v604 = vadd.f32 %v509, %v510
        %605 = vadd.xlane.f32.xlu0 %v604
        %v606 = vpop.xlane.xlu0 %605
        %v607 = vadd.f32 %v511, %v512
        %608 = vadd.xlane.f32.xlu0 %v607
        %v609 = vpop.xlane.xlu0 %608
        %v610 = vadd.f32 %v513, %v514
        %611 = vadd.xlane.f32.xlu0 %v610
        %v612 = vpop.xlane.xlu0 %611
        %v613 = vrcp.pop 256.0
        %v614 = vmul.f32 %v519, %v613
        %v615 = vmul.f32 %v522, %v613
        %v616 = vmul.f32 %v525, %v613
        %v617 = vmul.f32 %v528, %v613
        %v618 = vmul.f32 %v531, %v613
        %v619 = vmul.f32 %v534, %v613
        %v620 = vmul.f32 %v537, %v613
        %v621 = vmul.f32 %v540, %v613
        %v622 = vmul.f32 %v543, %v613
        %v623 = vmul.f32 %v546, %v613
        %v624 = vmul.f32 %v549, %v613
        %v625 = vmul.f32 %v552, %v613
        %v626 = vmul.f32 %v555, %v613
        %v627 = vmul.f32 %v558, %v613
        %v628 = vmul.f32 %v561, %v613
        %v629 = vmul.f32 %v564, %v613
        %v630 = vmul.f32 %v567, %v613
        %v631 = vmul.f32 %v570, %v613
        %v632 = vmul.f32 %v573, %v613
        %v633 = vmul.f32 %v576, %v613
        %v634 = vmul.f32 %v579, %v613
        %v635 = vmul.f32 %v582, %v613
        %v636 = vmul.f32 %v585, %v613
        %v637 = vmul.f32 %v588, %v613
        %v638 = vmul.f32 %v591, %v613
        %v639 = vmul.f32 %v594, %v613
        %v640 = vmul.f32 %v597, %v613
        %v641 = vmul.f32 %v600, %v613
        %v642 = vmul.f32 %v603, %v613
        %v643 = vmul.f32 %v606, %v613
        %v644 = vmul.f32 %v609, %v613
        %v645 = vmul.f32 %v612, %v613
        %v646 = vsub.f32 %v451, %v614
        %v647 = vsub.f32 %v452, %v614
        %v648 = vsub.f32 %v453, %v615
        %v649 = vsub.f32 %v454, %v615
        %v650 = vsub.f32 %v455, %v616
        %v651 = vsub.f32 %v456, %v616
        %v652 = vsub.f32 %v457, %v617
        %v653 = vsub.f32 %v458, %v617
        %v654 = vsub.f32 %v459, %v618
        %v655 = vsub.f32 %v460, %v618
        %v656 = vsub.f32 %v461, %v619
        %v657 = vsub.f32 %v462, %v619
        %v658 = vsub.f32 %v463, %v620
        %v659 = vsub.f32 %v464, %v620
        %v660 = vsub.f32 %v465, %v621
        %v661 = vsub.f32 %v466, %v621
        %v662 = vsub.f32 %v467, %v622
        %v663 = vsub.f32 %v468, %v622
        %v664 = vsub.f32 %v469, %v623
        %v665 = vsub.f32 %v470, %v623
        %v666 = vsub.f32 %v471, %v624
        %v667 = vsub.f32 %v472, %v624
        %v668 = vsub.f32 %v473, %v625
        %v669 = vsub.f32 %v474, %v625
        %v670 = vsub.f32 %v475, %v626
        %v671 = vsub.f32 %v476, %v626
        %v672 = vsub.f32 %v477, %v627
        %v673 = vsub.f32 %v478, %v627
        %v674 = vsub.f32 %v479, %v628
        %v675 = vsub.f32 %v480, %v628
        %v676 = vsub.f32 %v481, %v629
        %v677 = vsub.f32 %v482, %v629
        %v678 = vsub.f32 %v483, %v630
        %v679 = vsub.f32 %v484, %v630
        %v680 = vsub.f32 %v485, %v631
        %v681 = vsub.f32 %v486, %v631
        %v682 = vsub.f32 %v487, %v632
        %v683 = vsub.f32 %v488, %v632
        %v684 = vsub.f32 %v489, %v633
        %v685 = vsub.f32 %v490, %v633
        %v686 = vsub.f32 %v491, %v634
        %v687 = vsub.f32 %v492, %v634
        %v688 = vsub.f32 %v493, %v635
        %v689 = vsub.f32 %v494, %v635
        %v690 = vsub.f32 %v495, %v636
        %v691 = vsub.f32 %v496, %v636
        %v692 = vsub.f32 %v497, %v637
        %v693 = vsub.f32 %v498, %v637
        %v694 = vsub.f32 %v499, %v638
        %v695 = vsub.f32 %v500, %v638
        %v696 = vsub.f32 %v501, %v639
        %v697 = vsub.f32 %v502, %v639
        %v698 = vsub.f32 %v503, %v640
        %v699 = vsub.f32 %v504, %v640
        %v700 = vsub.f32 %v505, %v641
        %v701 = vsub.f32 %v506, %v641
        %v702 = vsub.f32 %v507, %v642
        %v703 = vsub.f32 %v508, %v642
        %v704 = vsub.f32 %v509, %v643
        %v705 = vsub.f32 %v510, %v643
        %v706 = vsub.f32 %v511, %v644
        %v707 = vsub.f32 %v512, %v644
        %v708 = vsub.f32 %v513, %v645
        %v709 = vsub.f32 %v514, %v645
        %v710 = vmul.f32 %v646, %v646
        %v711 = vmul.f32 %v647, %v647
        %v712 = vmul.f32 %v648, %v648
        %v713 = vmul.f32 %v649, %v649
        %v714 = vmul.f32 %v650, %v650
        %v715 = vmul.f32 %v651, %v651
        %v716 = vmul.f32 %v652, %v652
        %v717 = vmul.f32 %v653, %v653
        %v718 = vmul.f32 %v654, %v654
        %v719 = vmul.f32 %v655, %v655
        %v720 = vmul.f32 %v656, %v656
        %v721 = vmul.f32 %v657, %v657
        %v722 = vmul.f32 %v658, %v658
        %v723 = vmul.f32 %v659, %v659
        %v724 = vmul.f32 %v660, %v660
        %v725 = vmul.f32 %v661, %v661
        %v726 = vmul.f32 %v662, %v662
        %v727 = vmul.f32 %v663, %v663
        %v728 = vmul.f32 %v664, %v664
        %v729 = vmul.f32 %v665, %v665
        %v730 = vmul.f32 %v666, %v666
        %v731 = vmul.f32 %v667, %v667
        %v732 = vmul.f32 %v668, %v668
        %v733 = vmul.f32 %v669, %v669
        %v734 = vmul.f32 %v670, %v670
        %v735 = vmul.f32 %v671, %v671
        %v736 = vmul.f32 %v672, %v672
        %v737 = vmul.f32 %v673, %v673
        %v738 = vmul.f32 %v674, %v674
        %v739 = vmul.f32 %v675, %v675
        %v740 = vmul.f32 %v676, %v676
        %v741 = vmul.f32 %v677, %v677
        %v742 = vmul.f32 %v678, %v678
        %v743 = vmul.f32 %v679, %v679
        %v744 = vmul.f32 %v680, %v680
        %v745 = vmul.f32 %v681, %v681
        %v746 = vmul.f32 %v682, %v682
        %v747 = vmul.f32 %v683, %v683
        %v748 = vmul.f32 %v684, %v684
        %v749 = vmul.f32 %v685, %v685
        %v750 = vmul.f32 %v686, %v686
        %v751 = vmul.f32 %v687, %v687
        %v752 = vmul.f32 %v688, %v688
        %v753 = vmul.f32 %v689, %v689
        %v754 = vmul.f32 %v690, %v690
        %v755 = vmul.f32 %v691, %v691
        %v756 = vmul.f32 %v692, %v692
        %v757 = vmul.f32 %v693, %v693
        %v758 = vmul.f32 %v694, %v694
        %v759 = vmul.f32 %v695, %v695
        %v760 = vmul.f32 %v696, %v696
        %v761 = vmul.f32 %v697, %v697
        %v762 = vmul.f32 %v698, %v698
        %v763 = vmul.f32 %v699, %v699
        %v764 = vmul.f32 %v700, %v700
        %v765 = vmul.f32 %v701, %v701
        %v766 = vmul.f32 %v702, %v702
        %v767 = vmul.f32 %v703, %v703
        %v768 = vmul.f32 %v704, %v704
        %v769 = vmul.f32 %v705, %v705
        %v770 = vmul.f32 %v706, %v706
        %v771 = vmul.f32 %v707, %v707
        %v772 = vmul.f32 %v708, %v708
        %v773 = vmul.f32 %v709, %v709
        %v774 = vadd.f32 %v710, %v711
        %775 = vadd.xlane.f32.xlu0 %v774
        %v776 = vpop.xlane.xlu0 %775
        %v777 = vadd.f32 %v712, %v713
        %778 = vadd.xlane.f32.xlu0 %v777
        %v779 = vpop.xlane.xlu0 %778
        %v780 = vadd.f32 %v714, %v715
        %781 = vadd.xlane.f32.xlu0 %v780
        %v782 = vpop.xlane.xlu0 %781
        %v783 = vadd.f32 %v716, %v717
        %784 = vadd.xlane.f32.xlu0 %v783
        %v785 = vpop.xlane.xlu0 %784
        %v786 = vadd.f32 %v718, %v719
        %787 = vadd.xlane.f32.xlu0 %v786
        %v788 = vpop.xlane.xlu0 %787
        %v789 = vadd.f32 %v720, %v721
        %790 = vadd.xlane.f32.xlu0 %v789
        %v791 = vpop.xlane.xlu0 %790
        %v792 = vadd.f32 %v722, %v723
        %793 = vadd.xlane.f32.xlu0 %v792
        %v794 = vpop.xlane.xlu0 %793
        %v795 = vadd.f32 %v724, %v725
        %796 = vadd.xlane.f32.xlu0 %v795
        %v797 = vpop.xlane.xlu0 %796
        %v798 = vadd.f32 %v726, %v727
        %799 = vadd.xlane.f32.xlu0 %v798
        %v800 = vpop.xlane.xlu0 %799
        %v801 = vadd.f32 %v728, %v729
        %802 = vadd.xlane.f32.xlu0 %v801
        %v803 = vpop.xlane.xlu0 %802
        %v804 = vadd.f32 %v730, %v731
        %805 = vadd.xlane.f32.xlu0 %v804
        %v806 = vpop.xlane.xlu0 %805
        %v807 = vadd.f32 %v732, %v733
        %808 = vadd.xlane.f32.xlu0 %v807
        %v809 = vpop.xlane.xlu0 %808
        %v810 = vadd.f32 %v734, %v735
        %811 = vadd.xlane.f32.xlu0 %v810
        %v812 = vpop.xlane.xlu0 %811
        %v813 = vadd.f32 %v736, %v737
        %814 = vadd.xlane.f32.xlu0 %v813
        %v815 = vpop.xlane.xlu0 %814
        %v816 = vadd.f32 %v738, %v739
        %817 = vadd.xlane.f32.xlu0 %v816
        %v818 = vpop.xlane.xlu0 %817
        %v819 = vadd.f32 %v740, %v741
        %820 = vadd.xlane.f32.xlu0 %v819
        %v821 = vpop.xlane.xlu0 %820
        %v822 = vadd.f32 %v742, %v743
        %823 = vadd.xlane.f32.xlu0 %v822
        %v824 = vpop.xlane.xlu0 %823
        %v825 = vadd.f32 %v744, %v745
        %826 = vadd.xlane.f32.xlu0 %v825
        %v827 = vpop.xlane.xlu0 %826
        %v828 = vadd.f32 %v746, %v747
        %829 = vadd.xlane.f32.xlu0 %v828
        %v830 = vpop.xlane.xlu0 %829
        %v831 = vadd.f32 %v748, %v749
        %832 = vadd.xlane.f32.xlu0 %v831
        %v833 = vpop.xlane.xlu0 %832
        %v834 = vadd.f32 %v750, %v751
        %835 = vadd.xlane.f32.xlu0 %v834
        %v836 = vpop.xlane.xlu0 %835
        %v837 = vadd.f32 %v752, %v753
        %838 = vadd.xlane.f32.xlu0 %v837
        %v839 = vpop.xlane.xlu0 %838
        %v840 = vadd.f32 %v754, %v755
        %841 = vadd.xlane.f32.xlu0 %v840
        %v842 = vpop.xlane.xlu0 %841
        %v843 = vadd.f32 %v756, %v757
        %844 = vadd.xlane.f32.xlu0 %v843
        %v845 = vpop.xlane.xlu0 %844
        %v846 = vadd.f32 %v758, %v759
        %847 = vadd.xlane.f32.xlu0 %v846
        %v848 = vpop.xlane.xlu0 %847
        %v849 = vadd.f32 %v760, %v761
        %850 = vadd.xlane.f32.xlu0 %v849
        %v851 = vpop.xlane.xlu0 %850
        %v852 = vadd.f32 %v762, %v763
        %853 = vadd.xlane.f32.xlu0 %v852
        %v854 = vpop.xlane.xlu0 %853
        %v855 = vadd.f32 %v764, %v765
        %856 = vadd.xlane.f32.xlu0 %v855
        %v857 = vpop.xlane.xlu0 %856
        %v858 = vadd.f32 %v766, %v767
        %859 = vadd.xlane.f32.xlu0 %v858
        %v860 = vpop.xlane.xlu0 %859
        %v861 = vadd.f32 %v768, %v769
        %862 = vadd.xlane.f32.xlu0 %v861
        %v863 = vpop.xlane.xlu0 %862
        %v864 = vadd.f32 %v770, %v771
        %865 = vadd.xlane.f32.xlu0 %v864
        %v866 = vpop.xlane.xlu0 %865
        %v867 = vadd.f32 %v772, %v773
        %868 = vadd.xlane.f32.xlu0 %v867
        %v869 = vpop.xlane.xlu0 %868
        %v870 = vmul.f32 %v776, %v613
        %v871 = vmul.f32 %v779, %v613
        %v872 = vmul.f32 %v782, %v613
        %v873 = vmul.f32 %v785, %v613
        %v874 = vmul.f32 %v788, %v613
        %v875 = vmul.f32 %v791, %v613
        %v876 = vmul.f32 %v794, %v613
        %v877 = vmul.f32 %v797, %v613
        %v878 = vmul.f32 %v800, %v613
        %v879 = vmul.f32 %v803, %v613
        %v880 = vmul.f32 %v806, %v613
        %v881 = vmul.f32 %v809, %v613
        %v882 = vmul.f32 %v812, %v613
        %v883 = vmul.f32 %v815, %v613
        %v884 = vmul.f32 %v818, %v613
        %v885 = vmul.f32 %v821, %v613
        %v886 = vmul.f32 %v824, %v613
        %v887 = vmul.f32 %v827, %v613
        %v888 = vmul.f32 %v830, %v613
        %v889 = vmul.f32 %v833, %v613
        %v890 = vmul.f32 %v836, %v613
        %v891 = vmul.f32 %v839, %v613
        %v892 = vmul.f32 %v842, %v613
        %v893 = vmul.f32 %v845, %v613
        %v894 = vmul.f32 %v848, %v613
        %v895 = vmul.f32 %v851, %v613
        %v896 = vmul.f32 %v854, %v613
        %v897 = vmul.f32 %v857, %v613
        %v898 = vmul.f32 %v860, %v613
        %v899 = vmul.f32 %v863, %v613
        %v900 = vmul.f32 %v866, %v613
        %v901 = vmul.f32 %v869, %v613
        %v902 = vadd.f32 %v870, 1e-05
        %v903 = vadd.f32 %v871, 1e-05
        %v904 = vadd.f32 %v872, 1e-05
        %v905 = vadd.f32 %v873, 1e-05
        %v906 = vadd.f32 %v874, 1e-05
        %v907 = vadd.f32 %v875, 1e-05
        %v908 = vadd.f32 %v876, 1e-05
        %v909 = vadd.f32 %v877, 1e-05
        %v910 = vadd.f32 %v878, 1e-05
        %v911 = vadd.f32 %v879, 1e-05
        %v912 = vadd.f32 %v880, 1e-05
        %v913 = vadd.f32 %v881, 1e-05
        %v914 = vadd.f32 %v882, 1e-05
        %v915 = vadd.f32 %v883, 1e-05
        %v916 = vadd.f32 %v884, 1e-05
        %v917 = vadd.f32 %v885, 1e-05
        %v918 = vadd.f32 %v886, 1e-05
        %v919 = vadd.f32 %v887, 1e-05
        %v920 = vadd.f32 %v888, 1e-05
        %v921 = vadd.f32 %v889, 1e-05
        %v922 = vadd.f32 %v890, 1e-05
        %v923 = vadd.f32 %v891, 1e-05
        %v924 = vadd.f32 %v892, 1e-05
        %v925 = vadd.f32 %v893, 1e-05
        %v926 = vadd.f32 %v894, 1e-05
        %v927 = vadd.f32 %v895, 1e-05
        %v928 = vadd.f32 %v896, 1e-05
        %v929 = vadd.f32 %v897, 1e-05
        %v930 = vadd.f32 %v898, 1e-05
        %v931 = vadd.f32 %v899, 1e-05
        %v932 = vadd.f32 %v900, 1e-05
        %v933 = vadd.f32 %v901, 1e-05
        %v934 = vrsqrt.pop %v902
        %v935 = vrsqrt.pop %v903
        %v936 = vrsqrt.pop %v904
        %v937 = vrsqrt.pop %v905
        %v938 = vrsqrt.pop %v906
        %v939 = vrsqrt.pop %v907
        %v940 = vrsqrt.pop %v908
        %v941 = vrsqrt.pop %v909
        %v942 = vrsqrt.pop %v910
        %v943 = vrsqrt.pop %v911
        %v944 = vrsqrt.pop %v912
        %v945 = vrsqrt.pop %v913
        %v946 = vrsqrt.pop %v914
        %v947 = vrsqrt.pop %v915
        %v948 = vrsqrt.pop %v916
        %v949 = vrsqrt.pop %v917
        %v950 = vrsqrt.pop %v918
        %v951 = vrsqrt.pop %v919
        %v952 = vrsqrt.pop %v920
        %v953 = vrsqrt.pop %v921
        %v954 = vrsqrt.pop %v922
        %v955 = vrsqrt.pop %v923
        %v956 = vrsqrt.pop %v924
        %v957 = vrsqrt.pop %v925
        %v958 = vrsqrt.pop %v926
        %v959 = vrsqrt.pop %v927
        %v960 = vrsqrt.pop %v928
        %v961 = vrsqrt.pop %v929
        %v962 = vrsqrt.pop %v930
        %v963 = vrsqrt.pop %v931
        %v964 = vrsqrt.pop %v932
        %v965 = vrsqrt.pop %v933
        %v966 = vmul.f32 %v646, %v934
        %v967 = vmul.f32 %v647, %v934
        %v968 = vmul.f32 %v648, %v935
        %v969 = vmul.f32 %v649, %v935
        %v970 = vmul.f32 %v650, %v936
        %v971 = vmul.f32 %v651, %v936
        %v972 = vmul.f32 %v652, %v937
        %v973 = vmul.f32 %v653, %v937
        %v974 = vmul.f32 %v654, %v938
        %v975 = vmul.f32 %v655, %v938
        %v976 = vmul.f32 %v656, %v939
        %v977 = vmul.f32 %v657, %v939
        %v978 = vmul.f32 %v658, %v940
        %v979 = vmul.f32 %v659, %v940
        %v980 = vmul.f32 %v660, %v941
        %v981 = vmul.f32 %v661, %v941
        %v982 = vmul.f32 %v662, %v942
        %v983 = vmul.f32 %v663, %v942
        %v984 = vmul.f32 %v664, %v943
        %v985 = vmul.f32 %v665, %v943
        %v986 = vmul.f32 %v666, %v944
        %v987 = vmul.f32 %v667, %v944
        %v988 = vmul.f32 %v668, %v945
        %v989 = vmul.f32 %v669, %v945
        %v990 = vmul.f32 %v670, %v946
        %v991 = vmul.f32 %v671, %v946
        %v992 = vmul.f32 %v672, %v947
        %v993 = vmul.f32 %v673, %v947
        %v994 = vmul.f32 %v674, %v948
        %v995 = vmul.f32 %v675, %v948
        %v996 = vmul.f32 %v676, %v949
        %v997 = vmul.f32 %v677, %v949
        %v998 = vmul.f32 %v678, %v950
        %v999 = vmul.f32 %v679, %v950
        %v1000 = vmul.f32 %v680, %v951
        %v1001 = vmul.f32 %v681, %v951
        %v1002 = vmul.f32 %v682, %v952
        %v1003 = vmul.f32 %v683, %v952
        %v1004 = vmul.f32 %v684, %v953
        %v1005 = vmul.f32 %v685, %v953
        %v1006 = vmul.f32 %v686, %v954
        %v1007 = vmul.f32 %v687, %v954
        %v1008 = vmul.f32 %v688, %v955
        %v1009 = vmul.f32 %v689, %v955
        %v1010 = vmul.f32 %v690, %v956
        %v1011 = vmul.f32 %v691, %v956
        %v1012 = vmul.f32 %v692, %v957
        %v1013 = vmul.f32 %v693, %v957
        %v1014 = vmul.f32 %v694, %v958
        %v1015 = vmul.f32 %v695, %v958
        %v1016 = vmul.f32 %v696, %v959
        %v1017 = vmul.f32 %v697, %v959
        %v1018 = vmul.f32 %v698, %v960
        %v1019 = vmul.f32 %v699, %v960
        %v1020 = vmul.f32 %v700, %v961
        %v1021 = vmul.f32 %v701, %v961
        %v1022 = vmul.f32 %v702, %v962
        %v1023 = vmul.f32 %v703, %v962
        %v1024 = vmul.f32 %v704, %v963
        %v1025 = vmul.f32 %v705, %v963
        %v1026 = vmul.f32 %v706, %v964
        %v1027 = vmul.f32 %v707, %v964
        %v1028 = vmul.f32 %v708, %v965
        %v1029 = vmul.f32 %v709, %v965
        %v1031 = vlaneseq
        %v1032 = vshrl.u32 %v1031, 7
        %v1033 = vsub.s32 0, %v1032
        %v1034 = vrot.slane %v515, %v1033
        %v1035 = vlaneseq
        %v1036 = vshrl.u32 %v1035, 7
        %v1037 = vsub.s32 1, %v1036
        %v1038 = vrot.slane %v515, %v1037
        %v1041 = vmul.f32 %v966, %v1034
        %v1042 = vmul.f32 %v967, %v1038
        %v1043 = vmul.f32 %v968, %v1034
        %v1044 = vmul.f32 %v969, %v1038
        %v1045 = vmul.f32 %v970, %v1034
        %v1046 = vmul.f32 %v971, %v1038
        %v1047 = vmul.f32 %v972, %v1034
        %v1048 = vmul.f32 %v973, %v1038
        %v1049 = vmul.f32 %v974, %v1034
        %v1050 = vmul.f32 %v975, %v1038
        %v1051 = vmul.f32 %v976, %v1034
        %v1052 = vmul.f32 %v977, %v1038
        %v1053 = vmul.f32 %v978, %v1034
        %v1054 = vmul.f32 %v979, %v1038
        %v1055 = vmul.f32 %v980, %v1034
        %v1056 = vmul.f32 %v981, %v1038
        %v1057 = vmul.f32 %v982, %v1034
        %v1058 = vmul.f32 %v983, %v1038
        %v1059 = vmul.f32 %v984, %v1034
        %v1060 = vmul.f32 %v985, %v1038
        %v1061 = vmul.f32 %v986, %v1034
        %v1062 = vmul.f32 %v987, %v1038
        %v1063 = vmul.f32 %v988, %v1034
        %v1064 = vmul.f32 %v989, %v1038
        %v1065 = vmul.f32 %v990, %v1034
        %v1066 = vmul.f32 %v991, %v1038
        %v1067 = vmul.f32 %v992, %v1034
        %v1068 = vmul.f32 %v993, %v1038
        %v1069 = vmul.f32 %v994, %v1034
        %v1070 = vmul.f32 %v995, %v1038
        %v1071 = vmul.f32 %v996, %v1034
        %v1072 = vmul.f32 %v997, %v1038
        %v1073 = vmul.f32 %v998, %v1034
        %v1074 = vmul.f32 %v999, %v1038
        %v1075 = vmul.f32 %v1000, %v1034
        %v1076 = vmul.f32 %v1001, %v1038
        %v1077 = vmul.f32 %v1002, %v1034
        %v1078 = vmul.f32 %v1003, %v1038
        %v1079 = vmul.f32 %v1004, %v1034
        %v1080 = vmul.f32 %v1005, %v1038
        %v1081 = vmul.f32 %v1006, %v1034
        %v1082 = vmul.f32 %v1007, %v1038
        %v1083 = vmul.f32 %v1008, %v1034
        %v1084 = vmul.f32 %v1009, %v1038
        %v1085 = vmul.f32 %v1010, %v1034
        %v1086 = vmul.f32 %v1011, %v1038
        %v1087 = vmul.f32 %v1012, %v1034
        %v1088 = vmul.f32 %v1013, %v1038
        %v1089 = vmul.f32 %v1014, %v1034
        %v1090 = vmul.f32 %v1015, %v1038
        %v1091 = vmul.f32 %v1016, %v1034
        %v1092 = vmul.f32 %v1017, %v1038
        %v1093 = vmul.f32 %v1018, %v1034
        %v1094 = vmul.f32 %v1019, %v1038
        %v1095 = vmul.f32 %v1020, %v1034
        %v1096 = vmul.f32 %v1021, %v1038
        %v1097 = vmul.f32 %v1022, %v1034
        %v1098 = vmul.f32 %v1023, %v1038
        %v1099 = vmul.f32 %v1024, %v1034
        %v1100 = vmul.f32 %v1025, %v1038
        %v1101 = vmul.f32 %v1026, %v1034
        %v1102 = vmul.f32 %v1027, %v1038
        %v1103 = vmul.f32 %v1028, %v1034
        %v1104 = vmul.f32 %v1029, %v1038
        %v1106 = vlaneseq
        %v1107 = vshrl.u32 %v1106, 7
        %v1108 = vsub.s32 0, %v1107
        %v1109 = vrot.slane %v516, %v1108
        %v1110 = vlaneseq
        %v1111 = vshrl.u32 %v1110, 7
        %v1112 = vsub.s32 1, %v1111
        %v1113 = vrot.slane %v516, %v1112
        %v1116 = vadd.f32 %v1041, %v1109
        %v1117 = vadd.f32 %v1042, %v1113
        %v1118 = vadd.f32 %v1043, %v1109
        %v1119 = vadd.f32 %v1044, %v1113
        %v1120 = vadd.f32 %v1045, %v1109
        %v1121 = vadd.f32 %v1046, %v1113
        %v1122 = vadd.f32 %v1047, %v1109
        %v1123 = vadd.f32 %v1048, %v1113
        %v1124 = vadd.f32 %v1049, %v1109
        %v1125 = vadd.f32 %v1050, %v1113
        %v1126 = vadd.f32 %v1051, %v1109
        %v1127 = vadd.f32 %v1052, %v1113
        %v1128 = vadd.f32 %v1053, %v1109
        %v1129 = vadd.f32 %v1054, %v1113
        %v1130 = vadd.f32 %v1055, %v1109
        %v1131 = vadd.f32 %v1056, %v1113
        %v1132 = vadd.f32 %v1057, %v1109
        %v1133 = vadd.f32 %v1058, %v1113
        %v1134 = vadd.f32 %v1059, %v1109
        %v1135 = vadd.f32 %v1060, %v1113
        %v1136 = vadd.f32 %v1061, %v1109
        %v1137 = vadd.f32 %v1062, %v1113
        %v1138 = vadd.f32 %v1063, %v1109
        %v1139 = vadd.f32 %v1064, %v1113
        %v1140 = vadd.f32 %v1065, %v1109
        %v1141 = vadd.f32 %v1066, %v1113
        %v1142 = vadd.f32 %v1067, %v1109
        %v1143 = vadd.f32 %v1068, %v1113
        %v1144 = vadd.f32 %v1069, %v1109
        %v1145 = vadd.f32 %v1070, %v1113
        %v1146 = vadd.f32 %v1071, %v1109
        %v1147 = vadd.f32 %v1072, %v1113
        %v1148 = vadd.f32 %v1073, %v1109
        %v1149 = vadd.f32 %v1074, %v1113
        %v1150 = vadd.f32 %v1075, %v1109
        %v1151 = vadd.f32 %v1076, %v1113
        %v1152 = vadd.f32 %v1077, %v1109
        %v1153 = vadd.f32 %v1078, %v1113
        %v1154 = vadd.f32 %v1079, %v1109
        %v1155 = vadd.f32 %v1080, %v1113
        %v1156 = vadd.f32 %v1081, %v1109
        %v1157 = vadd.f32 %v1082, %v1113
        %v1158 = vadd.f32 %v1083, %v1109
        %v1159 = vadd.f32 %v1084, %v1113
        %v1160 = vadd.f32 %v1085, %v1109
        %v1161 = vadd.f32 %v1086, %v1113
        %v1162 = vadd.f32 %v1087, %v1109
        %v1163 = vadd.f32 %v1088, %v1113
        %v1164 = vadd.f32 %v1089, %v1109
        %v1165 = vadd.f32 %v1090, %v1113
        %v1166 = vadd.f32 %v1091, %v1109
        %v1167 = vadd.f32 %v1092, %v1113
        %v1168 = vadd.f32 %v1093, %v1109
        %v1169 = vadd.f32 %v1094, %v1113
        %v1170 = vadd.f32 %v1095, %v1109
        %v1171 = vadd.f32 %v1096, %v1113
        %v1172 = vadd.f32 %v1097, %v1109
        %v1173 = vadd.f32 %v1098, %v1113
        %v1174 = vadd.f32 %v1099, %v1109
        %v1175 = vadd.f32 %v1100, %v1113
        %v1176 = vadd.f32 %v1101, %v1109
        %v1177 = vadd.f32 %v1102, %v1113
        %v1178 = vadd.f32 %v1103, %v1109
        %v1179 = vadd.f32 %v1104, %v1113
        %v1180 = vld [vmem:[%s389] sm:$0xff]
        %v1181 = vld [vmem:[%s389 + $0x8] sm:$0xff]
        %v1182 = vld [vmem:[%s389 + $0x10] sm:$0xff]
        %v1183 = vld [vmem:[%s389 + $0x18] sm:$0xff]
        %v1184 = vld [vmem:[%s389 + $0x20] sm:$0xff]
        %v1185 = vld [vmem:[%s389 + $0x28] sm:$0xff]
        %v1186 = vld [vmem:[%s389 + $0x30] sm:$0xff]
        %v1187 = vld [vmem:[%s389 + $0x38] sm:$0xff]
        %v1188 = vld [vmem:[%s389 + $0x40] sm:$0xff]
        %v1189 = vld [vmem:[%s389 + $0x48] sm:$0xff]
        %v1190 = vld [vmem:[%s389 + $0x50] sm:$0xff]
        %v1191 = vld [vmem:[%s389 + $0x58] sm:$0xff]
        %v1192 = vld [vmem:[%s389 + $0x60] sm:$0xff]
        %v1193 = vld [vmem:[%s389 + $0x68] sm:$0xff]
        %v1194 = vld [vmem:[%s389 + $0x70] sm:$0xff]
        %v1195 = vld [vmem:[%s389 + $0x78] sm:$0xff]
        %v1196 = vld [vmem:[%s389 + $0x80] sm:$0xff]
        %v1197 = vld [vmem:[%s389 + $0x88] sm:$0xff]
        %v1198 = vld [vmem:[%s389 + $0x90] sm:$0xff]
        %v1199 = vld [vmem:[%s389 + $0x98] sm:$0xff]
        %v1200 = vld [vmem:[%s389 + $0xa0] sm:$0xff]
        %v1201 = vld [vmem:[%s389 + $0xa8] sm:$0xff]
        %v1202 = vld [vmem:[%s389 + $0xb0] sm:$0xff]
        %v1203 = vld [vmem:[%s389 + $0xb8] sm:$0xff]
        %v1204 = vld [vmem:[%s389 + $0xc0] sm:$0xff]
        %v1205 = vld [vmem:[%s389 + $0xc8] sm:$0xff]
        %v1206 = vld [vmem:[%s389 + $0xd0] sm:$0xff]
        %v1207 = vld [vmem:[%s389 + $0xd8] sm:$0xff]
        %v1208 = vld [vmem:[%s389 + $0xe0] sm:$0xff]
        %v1209 = vld [vmem:[%s389 + $0xe8] sm:$0xff]
        %v1210 = vld [vmem:[%s389 + $0xf0] sm:$0xff]
        %v1211 = vld [vmem:[%s389 + $0xf8] sm:$0xff]
        %v1212 = vld [vmem:[%s389 + $0x100] sm:$0xff]
        %v1213 = vld [vmem:[%s389 + $0x108] sm:$0xff]
        %v1214 = vld [vmem:[%s389 + $0x110] sm:$0xff]
        %v1215 = vld [vmem:[%s389 + $0x118] sm:$0xff]
        %v1216 = vld [vmem:[%s389 + $0x120] sm:$0xff]
        %v1217 = vld [vmem:[%s389 + $0x128] sm:$0xff]
        %v1218 = vld [vmem:[%s389 + $0x130] sm:$0xff]
        %v1219 = vld [vmem:[%s389 + $0x138] sm:$0xff]
        %v1220 = vld [vmem:[%s389 + $0x140] sm:$0xff]
        %v1221 = vld [vmem:[%s389 + $0x148] sm:$0xff]
        %v1222 = vld [vmem:[%s389 + $0x150] sm:$0xff]
        %v1223 = vld [vmem:[%s389 + $0x158] sm:$0xff]
        %v1224 = vld [vmem:[%s389 + $0x160] sm:$0xff]
        %v1225 = vld [vmem:[%s389 + $0x168] sm:$0xff]
        %v1226 = vld [vmem:[%s389 + $0x170] sm:$0xff]
        %v1227 = vld [vmem:[%s389 + $0x178] sm:$0xff]
        %v1228 = vld [vmem:[%s389 + $0x180] sm:$0xff]
        %v1229 = vld [vmem:[%s389 + $0x188] sm:$0xff]
        %v1230 = vld [vmem:[%s389 + $0x190] sm:$0xff]
        %v1231 = vld [vmem:[%s389 + $0x198] sm:$0xff]
        %v1232 = vld [vmem:[%s389 + $0x1a0] sm:$0xff]
        %v1233 = vld [vmem:[%s389 + $0x1a8] sm:$0xff]
        %v1234 = vld [vmem:[%s389 + $0x1b0] sm:$0xff]
        %v1235 = vld [vmem:[%s389 + $0x1b8] sm:$0xff]
        %v1236 = vld [vmem:[%s389 + $0x1c0] sm:$0xff]
        %v1237 = vld [vmem:[%s389 + $0x1c8] sm:$0xff]
        %v1238 = vld [vmem:[%s389 + $0x1d0] sm:$0xff]
        %v1239 = vld [vmem:[%s389 + $0x1d8] sm:$0xff]
        %v1240 = vld [vmem:[%s389 + $0x1e0] sm:$0xff]
        %v1241 = vld [vmem:[%s389 + $0x1e8] sm:$0xff]
        %v1242 = vld [vmem:[%s389 + $0x1f0] sm:$0xff]
        %v1243 = vld [vmem:[%s389 + $0x1f8] sm:$0xff]
        %v1244 = vmul.f32 %v1116, %v1180
        %v1245 = vmul.f32 %v1117, %v1181
        %v1246 = vmul.f32 %v1118, %v1182
        %v1247 = vmul.f32 %v1119, %v1183
        %v1248 = vmul.f32 %v1120, %v1184
        %v1249 = vmul.f32 %v1121, %v1185
        %v1250 = vmul.f32 %v1122, %v1186
        %v1251 = vmul.f32 %v1123, %v1187
        %v1252 = vmul.f32 %v1124, %v1188
        %v1253 = vmul.f32 %v1125, %v1189
        %v1254 = vmul.f32 %v1126, %v1190
        %v1255 = vmul.f32 %v1127, %v1191
        %v1256 = vmul.f32 %v1128, %v1192
        %v1257 = vmul.f32 %v1129, %v1193
        %v1258 = vmul.f32 %v1130, %v1194
        %v1259 = vmul.f32 %v1131, %v1195
        %v1260 = vmul.f32 %v1132, %v1196
        %v1261 = vmul.f32 %v1133, %v1197
        %v1262 = vmul.f32 %v1134, %v1198
        %v1263 = vmul.f32 %v1135, %v1199
        %v1264 = vmul.f32 %v1136, %v1200
        %v1265 = vmul.f32 %v1137, %v1201
        %v1266 = vmul.f32 %v1138, %v1202
        %v1267 = vmul.f32 %v1139, %v1203
        %v1268 = vmul.f32 %v1140, %v1204
        %v1269 = vmul.f32 %v1141, %v1205
        %v1270 = vmul.f32 %v1142, %v1206
        %v1271 = vmul.f32 %v1143, %v1207
        %v1272 = vmul.f32 %v1144, %v1208
        %v1273 = vmul.f32 %v1145, %v1209
        %v1274 = vmul.f32 %v1146, %v1210
        %v1275 = vmul.f32 %v1147, %v1211
        %v1276 = vmul.f32 %v1148, %v1212
        %v1277 = vmul.f32 %v1149, %v1213
        %v1278 = vmul.f32 %v1150, %v1214
        %v1279 = vmul.f32 %v1151, %v1215
        %v1280 = vmul.f32 %v1152, %v1216
        %v1281 = vmul.f32 %v1153, %v1217
        %v1282 = vmul.f32 %v1154, %v1218
        %v1283 = vmul.f32 %v1155, %v1219
        %v1284 = vmul.f32 %v1156, %v1220
        %v1285 = vmul.f32 %v1157, %v1221
        %v1286 = vmul.f32 %v1158, %v1222
        %v1287 = vmul.f32 %v1159, %v1223
        %v1288 = vmul.f32 %v1160, %v1224
        %v1289 = vmul.f32 %v1161, %v1225
        %v1290 = vmul.f32 %v1162, %v1226
        %v1291 = vmul.f32 %v1163, %v1227
        %v1292 = vmul.f32 %v1164, %v1228
        %v1293 = vmul.f32 %v1165, %v1229
        %v1294 = vmul.f32 %v1166, %v1230
        %v1295 = vmul.f32 %v1167, %v1231
        %v1296 = vmul.f32 %v1168, %v1232
        %v1297 = vmul.f32 %v1169, %v1233
        %v1298 = vmul.f32 %v1170, %v1234
        %v1299 = vmul.f32 %v1171, %v1235
        %v1300 = vmul.f32 %v1172, %v1236
        %v1301 = vmul.f32 %v1173, %v1237
        %v1302 = vmul.f32 %v1174, %v1238
        %v1303 = vmul.f32 %v1175, %v1239
        %v1304 = vmul.f32 %v1176, %v1240
        %v1305 = vmul.f32 %v1177, %v1241
        %v1306 = vmul.f32 %v1178, %v1242
        %v1307 = vmul.f32 %v1179, %v1243
        %v1308 = vld [vmem:[%s398] sm:$0xff]
        %v1309 = vld [vmem:[%s398 + $0x8] sm:$0xff]
        %v1310 = vld [vmem:[%s398 + $0x10] sm:$0xff]
        %v1311 = vld [vmem:[%s398 + $0x18] sm:$0xff]
        %v1312 = vld [vmem:[%s398 + $0x20] sm:$0xff]
        %v1313 = vld [vmem:[%s398 + $0x28] sm:$0xff]
        %v1314 = vld [vmem:[%s398 + $0x30] sm:$0xff]
        %v1315 = vld [vmem:[%s398 + $0x38] sm:$0xff]
        %v1316 = vld [vmem:[%s398 + $0x40] sm:$0xff]
        %v1317 = vld [vmem:[%s398 + $0x48] sm:$0xff]
        %v1318 = vld [vmem:[%s398 + $0x50] sm:$0xff]
        %v1319 = vld [vmem:[%s398 + $0x58] sm:$0xff]
        %v1320 = vld [vmem:[%s398 + $0x60] sm:$0xff]
        %v1321 = vld [vmem:[%s398 + $0x68] sm:$0xff]
        %v1322 = vld [vmem:[%s398 + $0x70] sm:$0xff]
        %v1323 = vld [vmem:[%s398 + $0x78] sm:$0xff]
        %v1324 = vld [vmem:[%s398 + $0x80] sm:$0xff]
        %v1325 = vld [vmem:[%s398 + $0x88] sm:$0xff]
        %v1326 = vld [vmem:[%s398 + $0x90] sm:$0xff]
        %v1327 = vld [vmem:[%s398 + $0x98] sm:$0xff]
        %v1328 = vld [vmem:[%s398 + $0xa0] sm:$0xff]
        %v1329 = vld [vmem:[%s398 + $0xa8] sm:$0xff]
        %v1330 = vld [vmem:[%s398 + $0xb0] sm:$0xff]
        %v1331 = vld [vmem:[%s398 + $0xb8] sm:$0xff]
        %v1332 = vld [vmem:[%s398 + $0xc0] sm:$0xff]
        %v1333 = vld [vmem:[%s398 + $0xc8] sm:$0xff]
        %v1334 = vld [vmem:[%s398 + $0xd0] sm:$0xff]
        %v1335 = vld [vmem:[%s398 + $0xd8] sm:$0xff]
        %v1336 = vld [vmem:[%s398 + $0xe0] sm:$0xff]
        %v1337 = vld [vmem:[%s398 + $0xe8] sm:$0xff]
        %v1338 = vld [vmem:[%s398 + $0xf0] sm:$0xff]
        %v1339 = vld [vmem:[%s398 + $0xf8] sm:$0xff]
        %v1340 = vld [vmem:[%s398 + $0x100] sm:$0xff]
        %v1341 = vld [vmem:[%s398 + $0x108] sm:$0xff]
        %v1342 = vld [vmem:[%s398 + $0x110] sm:$0xff]
        %v1343 = vld [vmem:[%s398 + $0x118] sm:$0xff]
        %v1344 = vld [vmem:[%s398 + $0x120] sm:$0xff]
        %v1345 = vld [vmem:[%s398 + $0x128] sm:$0xff]
        %v1346 = vld [vmem:[%s398 + $0x130] sm:$0xff]
        %v1347 = vld [vmem:[%s398 + $0x138] sm:$0xff]
        %v1348 = vld [vmem:[%s398 + $0x140] sm:$0xff]
        %v1349 = vld [vmem:[%s398 + $0x148] sm:$0xff]
        %v1350 = vld [vmem:[%s398 + $0x150] sm:$0xff]
        %v1351 = vld [vmem:[%s398 + $0x158] sm:$0xff]
        %v1352 = vld [vmem:[%s398 + $0x160] sm:$0xff]
        %v1353 = vld [vmem:[%s398 + $0x168] sm:$0xff]
        %v1354 = vld [vmem:[%s398 + $0x170] sm:$0xff]
        %v1355 = vld [vmem:[%s398 + $0x178] sm:$0xff]
        %v1356 = vld [vmem:[%s398 + $0x180] sm:$0xff]
        %v1357 = vld [vmem:[%s398 + $0x188] sm:$0xff]
        %v1358 = vld [vmem:[%s398 + $0x190] sm:$0xff]
        %v1359 = vld [vmem:[%s398 + $0x198] sm:$0xff]
        %v1360 = vld [vmem:[%s398 + $0x1a0] sm:$0xff]
        %v1361 = vld [vmem:[%s398 + $0x1a8] sm:$0xff]
        %v1362 = vld [vmem:[%s398 + $0x1b0] sm:$0xff]
        %v1363 = vld [vmem:[%s398 + $0x1b8] sm:$0xff]
        %v1364 = vld [vmem:[%s398 + $0x1c0] sm:$0xff]
        %v1365 = vld [vmem:[%s398 + $0x1c8] sm:$0xff]
        %v1366 = vld [vmem:[%s398 + $0x1d0] sm:$0xff]
        %v1367 = vld [vmem:[%s398 + $0x1d8] sm:$0xff]
        %v1368 = vld [vmem:[%s398 + $0x1e0] sm:$0xff]
        %v1369 = vld [vmem:[%s398 + $0x1e8] sm:$0xff]
        %v1370 = vld [vmem:[%s398 + $0x1f0] sm:$0xff]
        %v1371 = vld [vmem:[%s398 + $0x1f8] sm:$0xff]
        %v1372 = vmul.f32 %v1117, %v1308
        %v1373 = vmul.f32 %v1116, %v1309
        %v1374 = vmul.f32 %v1119, %v1310
        %v1375 = vmul.f32 %v1118, %v1311
        %v1376 = vmul.f32 %v1121, %v1312
        %v1377 = vmul.f32 %v1120, %v1313
        %v1378 = vmul.f32 %v1123, %v1314
        %v1379 = vmul.f32 %v1122, %v1315
        %v1380 = vmul.f32 %v1125, %v1316
        %v1381 = vmul.f32 %v1124, %v1317
        %v1382 = vmul.f32 %v1127, %v1318
        %v1383 = vmul.f32 %v1126, %v1319
        %v1384 = vmul.f32 %v1129, %v1320
        %v1385 = vmul.f32 %v1128, %v1321
        %v1386 = vmul.f32 %v1131, %v1322
        %v1387 = vmul.f32 %v1130, %v1323
        %v1388 = vmul.f32 %v1133, %v1324
        %v1389 = vmul.f32 %v1132, %v1325
        %v1390 = vmul.f32 %v1135, %v1326
        %v1391 = vmul.f32 %v1134, %v1327
        %v1392 = vmul.f32 %v1137, %v1328
        %v1393 = vmul.f32 %v1136, %v1329
        %v1394 = vmul.f32 %v1139, %v1330
        %v1395 = vmul.f32 %v1138, %v1331
        %v1396 = vmul.f32 %v1141, %v1332
        %v1397 = vmul.f32 %v1140, %v1333
        %v1398 = vmul.f32 %v1143, %v1334
        %v1399 = vmul.f32 %v1142, %v1335
        %v1400 = vmul.f32 %v1145, %v1336
        %v1401 = vmul.f32 %v1144, %v1337
        %v1402 = vmul.f32 %v1147, %v1338
        %v1403 = vmul.f32 %v1146, %v1339
        %v1404 = vmul.f32 %v1149, %v1340
        %v1405 = vmul.f32 %v1148, %v1341
        %v1406 = vmul.f32 %v1151, %v1342
        %v1407 = vmul.f32 %v1150, %v1343
        %v1408 = vmul.f32 %v1153, %v1344
        %v1409 = vmul.f32 %v1152, %v1345
        %v1410 = vmul.f32 %v1155, %v1346
        %v1411 = vmul.f32 %v1154, %v1347
        %v1412 = vmul.f32 %v1157, %v1348
        %v1413 = vmul.f32 %v1156, %v1349
        %v1414 = vmul.f32 %v1159, %v1350
        %v1415 = vmul.f32 %v1158, %v1351
        %v1416 = vmul.f32 %v1161, %v1352
        %v1417 = vmul.f32 %v1160, %v1353
        %v1418 = vmul.f32 %v1163, %v1354
        %v1419 = vmul.f32 %v1162, %v1355
        %v1420 = vmul.f32 %v1165, %v1356
        %v1421 = vmul.f32 %v1164, %v1357
        %v1422 = vmul.f32 %v1167, %v1358
        %v1423 = vmul.f32 %v1166, %v1359
        %v1424 = vmul.f32 %v1169, %v1360
        %v1425 = vmul.f32 %v1168, %v1361
        %v1426 = vmul.f32 %v1171, %v1362
        %v1427 = vmul.f32 %v1170, %v1363
        %v1428 = vmul.f32 %v1173, %v1364
        %v1429 = vmul.f32 %v1172, %v1365
        %v1430 = vmul.f32 %v1175, %v1366
        %v1431 = vmul.f32 %v1174, %v1367
        %v1432 = vmul.f32 %v1177, %v1368
        %v1433 = vmul.f32 %v1176, %v1369
        %v1434 = vmul.f32 %v1179, %v1370
        %v1435 = vmul.f32 %v1178, %v1371
        %v1436 = vadd.f32 %v1244, %v1372
        %v1437 = vadd.f32 %v1245, %v1373
        %v1438 = vadd.f32 %v1246, %v1374
        %v1439 = vadd.f32 %v1247, %v1375
        %v1440 = vadd.f32 %v1248, %v1376
        %v1441 = vadd.f32 %v1249, %v1377
        %v1442 = vadd.f32 %v1250, %v1378
        %v1443 = vadd.f32 %v1251, %v1379
        %v1444 = vadd.f32 %v1252, %v1380
        %v1445 = vadd.f32 %v1253, %v1381
        %v1446 = vadd.f32 %v1254, %v1382
        %v1447 = vadd.f32 %v1255, %v1383
        %v1448 = vadd.f32 %v1256, %v1384
        %v1449 = vadd.f32 %v1257, %v1385
        %v1450 = vadd.f32 %v1258, %v1386
        %v1451 = vadd.f32 %v1259, %v1387
        %v1452 = vadd.f32 %v1260, %v1388
        %v1453 = vadd.f32 %v1261, %v1389
        %v1454 = vadd.f32 %v1262, %v1390
        %v1455 = vadd.f32 %v1263, %v1391
        %v1456 = vadd.f32 %v1264, %v1392
        %v1457 = vadd.f32 %v1265, %v1393
        %v1458 = vadd.f32 %v1266, %v1394
        %v1459 = vadd.f32 %v1267, %v1395
        %v1460 = vadd.f32 %v1268, %v1396
        %v1461 = vadd.f32 %v1269, %v1397
        %v1462 = vadd.f32 %v1270, %v1398
        %v1463 = vadd.f32 %v1271, %v1399
        %v1464 = vadd.f32 %v1272, %v1400
        %v1465 = vadd.f32 %v1273, %v1401
        %v1466 = vadd.f32 %v1274, %v1402
        %v1467 = vadd.f32 %v1275, %v1403
        %v1468 = vadd.f32 %v1276, %v1404
        %v1469 = vadd.f32 %v1277, %v1405
        %v1470 = vadd.f32 %v1278, %v1406
        %v1471 = vadd.f32 %v1279, %v1407
        %v1472 = vadd.f32 %v1280, %v1408
        %v1473 = vadd.f32 %v1281, %v1409
        %v1474 = vadd.f32 %v1282, %v1410
        %v1475 = vadd.f32 %v1283, %v1411
        %v1476 = vadd.f32 %v1284, %v1412
        %v1477 = vadd.f32 %v1285, %v1413
        %v1478 = vadd.f32 %v1286, %v1414
        %v1479 = vadd.f32 %v1287, %v1415
        %v1480 = vadd.f32 %v1288, %v1416
        %v1481 = vadd.f32 %v1289, %v1417
        %v1482 = vadd.f32 %v1290, %v1418
        %v1483 = vadd.f32 %v1291, %v1419
        %v1484 = vadd.f32 %v1292, %v1420
        %v1485 = vadd.f32 %v1293, %v1421
        %v1486 = vadd.f32 %v1294, %v1422
        %v1487 = vadd.f32 %v1295, %v1423
        %v1488 = vadd.f32 %v1296, %v1424
        %v1489 = vadd.f32 %v1297, %v1425
        %v1490 = vadd.f32 %v1298, %v1426
        %v1491 = vadd.f32 %v1299, %v1427
        %v1492 = vadd.f32 %v1300, %v1428
        %v1493 = vadd.f32 %v1301, %v1429
        %v1494 = vadd.f32 %v1302, %v1430
        %v1495 = vadd.f32 %v1303, %v1431
        %v1496 = vadd.f32 %v1304, %v1432
        %v1497 = vadd.f32 %v1305, %v1433
        %v1498 = vadd.f32 %v1306, %v1434
        %v1499 = vadd.f32 %v1307, %v1435
        %v1500 = vpack.c.bf16 %v1438, %v1436
        %v1501 = vpack.c.bf16 %v1439, %v1437
        %v1502 = vpack.c.bf16 %v1442, %v1440
        %v1503 = vpack.c.bf16 %v1443, %v1441
        %v1504 = vpack.c.bf16 %v1446, %v1444
        %v1505 = vpack.c.bf16 %v1447, %v1445
        %v1506 = vpack.c.bf16 %v1450, %v1448
        %v1507 = vpack.c.bf16 %v1451, %v1449
        %v1508 = vpack.c.bf16 %v1454, %v1452
        %v1509 = vpack.c.bf16 %v1455, %v1453
        %v1510 = vpack.c.bf16 %v1458, %v1456
        %v1511 = vpack.c.bf16 %v1459, %v1457
        %v1512 = vpack.c.bf16 %v1462, %v1460
        %v1513 = vpack.c.bf16 %v1463, %v1461
        %v1514 = vpack.c.bf16 %v1466, %v1464
        %v1515 = vpack.c.bf16 %v1467, %v1465
        %v1516 = vpack.c.bf16 %v1470, %v1468
        %v1517 = vpack.c.bf16 %v1471, %v1469
        %v1518 = vpack.c.bf16 %v1474, %v1472
        %v1519 = vpack.c.bf16 %v1475, %v1473
        %v1520 = vpack.c.bf16 %v1478, %v1476
        %v1521 = vpack.c.bf16 %v1479, %v1477
        %v1522 = vpack.c.bf16 %v1482, %v1480
        %v1523 = vpack.c.bf16 %v1483, %v1481
        %v1524 = vpack.c.bf16 %v1486, %v1484
        %v1525 = vpack.c.bf16 %v1487, %v1485
        %v1526 = vpack.c.bf16 %v1490, %v1488
        %v1527 = vpack.c.bf16 %v1491, %v1489
        %v1528 = vpack.c.bf16 %v1494, %v1492
        %v1529 = vpack.c.bf16 %v1495, %v1493
        %v1530 = vpack.c.bf16 %v1498, %v1496
        %v1531 = vpack.c.bf16 %v1499, %v1497
        %v1532 = vld [vmem:[#allocation11] sm:$0xff]
        %v1533 = vld [vmem:[#allocation11 + $0x8] sm:$0xff]
        %v1534 = vld [vmem:[#allocation11 + $0x10] sm:$0xff]
        %v1535 = vld [vmem:[#allocation11 + $0x18] sm:$0xff]
        %v1536 = vld [vmem:[#allocation11 + $0x20] sm:$0xff]
        %v1537 = vld [vmem:[#allocation11 + $0x28] sm:$0xff]
        %v1538 = vld [vmem:[#allocation11 + $0x30] sm:$0xff]
        %v1539 = vld [vmem:[#allocation11 + $0x38] sm:$0xff]
        %v1540 = vld [vmem:[#allocation11 + $0x40] sm:$0xff]
        %v1541 = vld [vmem:[#allocation11 + $0x48] sm:$0xff]
        %v1542 = vld [vmem:[#allocation11 + $0x50] sm:$0xff]
        %v1543 = vld [vmem:[#allocation11 + $0x58] sm:$0xff]
        %v1544 = vld [vmem:[#allocation11 + $0x60] sm:$0xff]
        %v1545 = vld [vmem:[#allocation11 + $0x68] sm:$0xff]
        %v1546 = vld [vmem:[#allocation11 + $0x70] sm:$0xff]
        %v1547 = vld [vmem:[#allocation11 + $0x78] sm:$0xff]
        %v1548 = vld [vmem:[#allocation11 + $0x80] sm:$0xff]
        %v1549 = vld [vmem:[#allocation11 + $0x88] sm:$0xff]
        %v1550 = vld [vmem:[#allocation11 + $0x90] sm:$0xff]
        %v1551 = vld [vmem:[#allocation11 + $0x98] sm:$0xff]
        %v1552 = vld [vmem:[#allocation11 + $0xa0] sm:$0xff]
        %v1553 = vld [vmem:[#allocation11 + $0xa8] sm:$0xff]
        %v1554 = vld [vmem:[#allocation11 + $0xb0] sm:$0xff]
        %v1555 = vld [vmem:[#allocation11 + $0xb8] sm:$0xff]
        %v1556 = vld [vmem:[#allocation11 + $0xc0] sm:$0xff]
        %v1557 = vld [vmem:[#allocation11 + $0xc8] sm:$0xff]
        %v1558 = vld [vmem:[#allocation11 + $0xd0] sm:$0xff]
        %v1559 = vld [vmem:[#allocation11 + $0xd8] sm:$0xff]
        %v1560 = vld [vmem:[#allocation11 + $0xe0] sm:$0xff]
        %v1561 = vld [vmem:[#allocation11 + $0xe8] sm:$0xff]
        %v1562 = vld [vmem:[#allocation11 + $0xf0] sm:$0xff]
        %v1563 = vld [vmem:[#allocation11 + $0xf8] sm:$0xff]
        %v1564 = vld [vmem:[#allocation11 + $0x100] sm:$0xff]
        %v1565 = vld [vmem:[#allocation11 + $0x108] sm:$0xff]
        %v1566 = vld [vmem:[#allocation11 + $0x110] sm:$0xff]
        %v1567 = vld [vmem:[#allocation11 + $0x118] sm:$0xff]
        %v1568 = vld [vmem:[#allocation11 + $0x120] sm:$0xff]
        %v1569 = vld [vmem:[#allocation11 + $0x128] sm:$0xff]
        %v1570 = vld [vmem:[#allocation11 + $0x130] sm:$0xff]
        %v1571 = vld [vmem:[#allocation11 + $0x138] sm:$0xff]
        %v1572 = vld [vmem:[#allocation11 + $0x140] sm:$0xff]
        %v1573 = vld [vmem:[#allocation11 + $0x148] sm:$0xff]
        %v1574 = vld [vmem:[#allocation11 + $0x150] sm:$0xff]
        %v1575 = vld [vmem:[#allocation11 + $0x158] sm:$0xff]
        %v1576 = vld [vmem:[#allocation11 + $0x160] sm:$0xff]
        %v1577 = vld [vmem:[#allocation11 + $0x168] sm:$0xff]
        %v1578 = vld [vmem:[#allocation11 + $0x170] sm:$0xff]
        %v1579 = vld [vmem:[#allocation11 + $0x178] sm:$0xff]
        %v1580 = vld [vmem:[#allocation11 + $0x180] sm:$0xff]
        %v1581 = vld [vmem:[#allocation11 + $0x188] sm:$0xff]
        %v1582 = vld [vmem:[#allocation11 + $0x190] sm:$0xff]
        %v1583 = vld [vmem:[#allocation11 + $0x198] sm:$0xff]
        %v1584 = vld [vmem:[#allocation11 + $0x1a0] sm:$0xff]
        %v1585 = vld [vmem:[#allocation11 + $0x1a8] sm:$0xff]
        %v1586 = vld [vmem:[#allocation11 + $0x1b0] sm:$0xff]
        %v1587 = vld [vmem:[#allocation11 + $0x1b8] sm:$0xff]
        %v1588 = vld [vmem:[#allocation11 + $0x1c0] sm:$0xff]
        %v1589 = vld [vmem:[#allocation11 + $0x1c8] sm:$0xff]
        %v1590 = vld [vmem:[#allocation11 + $0x1d0] sm:$0xff]
        %v1591 = vld [vmem:[#allocation11 + $0x1d8] sm:$0xff]
        %v1592 = vld [vmem:[#allocation11 + $0x1e0] sm:$0xff]
        %v1593 = vld [vmem:[#allocation11 + $0x1e8] sm:$0xff]
        %v1594 = vld [vmem:[#allocation11 + $0x1f0] sm:$0xff]
        %v1595 = vld [vmem:[#allocation11 + $0x1f8] sm:$0xff]
        %v1596 = vld [vmem:[#allocation11 + $0x200] sm:$0xff]
        %v1597 = vld [vmem:[#allocation11 + $0x208] sm:$0xff]
        %v1598 = vld [vmem:[#allocation11 + $0x210] sm:$0xff]
        %v1599 = vld [vmem:[#allocation11 + $0x218] sm:$0xff]
        %v1600 = vld [vmem:[#allocation11 + $0x220] sm:$0xff]
        %v1601 = vld [vmem:[#allocation11 + $0x228] sm:$0xff]
        %v1602 = vld [vmem:[#allocation11 + $0x230] sm:$0xff]
        %v1603 = vld [vmem:[#allocation11 + $0x238] sm:$0xff]
        %v1604 = vld [vmem:[#allocation11 + $0x240] sm:$0xff]
        %v1605 = vld [vmem:[#allocation11 + $0x248] sm:$0xff]
        %v1606 = vld [vmem:[#allocation11 + $0x250] sm:$0xff]
        %v1607 = vld [vmem:[#allocation11 + $0x258] sm:$0xff]
        %v1608 = vld [vmem:[#allocation11 + $0x260] sm:$0xff]
        %v1609 = vld [vmem:[#allocation11 + $0x268] sm:$0xff]
        %v1610 = vld [vmem:[#allocation11 + $0x270] sm:$0xff]
        %v1611 = vld [vmem:[#allocation11 + $0x278] sm:$0xff]
        %v1612 = vld [vmem:[#allocation11 + $0x280] sm:$0xff]
        %v1613 = vld [vmem:[#allocation11 + $0x288] sm:$0xff]
        %v1614 = vld [vmem:[#allocation11 + $0x290] sm:$0xff]
        %v1615 = vld [vmem:[#allocation11 + $0x298] sm:$0xff]
        %v1616 = vld [vmem:[#allocation11 + $0x2a0] sm:$0xff]
        %v1617 = vld [vmem:[#allocation11 + $0x2a8] sm:$0xff]
        %v1618 = vld [vmem:[#allocation11 + $0x2b0] sm:$0xff]
        %v1619 = vld [vmem:[#allocation11 + $0x2b8] sm:$0xff]
        %v1620 = vld [vmem:[#allocation11 + $0x2c0] sm:$0xff]
        %v1621 = vld [vmem:[#allocation11 + $0x2c8] sm:$0xff]
        %v1622 = vld [vmem:[#allocation11 + $0x2d0] sm:$0xff]
        %v1623 = vld [vmem:[#allocation11 + $0x2d8] sm:$0xff]
        %v1624 = vld [vmem:[#allocation11 + $0x2e0] sm:$0xff]
        %v1625 = vld [vmem:[#allocation11 + $0x2e8] sm:$0xff]
        %v1626 = vld [vmem:[#allocation11 + $0x2f0] sm:$0xff]
        %v1627 = vld [vmem:[#allocation11 + $0x2f8] sm:$0xff]
        %v1628 = vld [vmem:[#allocation13] sm:$0x3f]
        %v1630 = vlaneseq
        %v1631 = vshrl.u32 %v1630, 7
        %v1632 = vsub.s32 0, %v1631
        %v1633 = vrot.slane %v1628, %v1632
        %v1634 = vlaneseq
        %v1635 = vshrl.u32 %v1634, 7
        %v1636 = vsub.s32 1, %v1635
        %v1637 = vrot.slane %v1628, %v1636
        %v1638 = vlaneseq
        %v1639 = vshrl.u32 %v1638, 7
        %v1640 = vsub.s32 2, %v1639
        %v1641 = vrot.slane %v1628, %v1640
        %v1642 = vlaneseq
        %v1643 = vshrl.u32 %v1642, 7
        %v1644 = vsub.s32 3, %v1643
        %v1645 = vrot.slane %v1628, %v1644
        %v1646 = vlaneseq
        %v1647 = vshrl.u32 %v1646, 7
        %v1648 = vsub.s32 4, %v1647
        %v1649 = vrot.slane %v1628, %v1648
        %v1650 = vlaneseq
        %v1651 = vshrl.u32 %v1650, 7
        %v1652 = vsub.s32 5, %v1651
        %v1653 = vrot.slane %v1628, %v1652
        %v1756 = vunpack.c.l.b16 %v1532
        %v1757 = vunpack.c.h.b16 %v1532
        %v1758 = vunpack.c.l.b16 %v1533
        %v1759 = vunpack.c.h.b16 %v1533
        %v1760 = vunpack.c.l.b16 %v1534
        %v1761 = vunpack.c.h.b16 %v1534
        %v1762 = vunpack.c.l.b16 %v1535
        %v1763 = vunpack.c.h.b16 %v1535
        %v1764 = vunpack.c.l.b16 %v1536
        %v1765 = vunpack.c.h.b16 %v1536
        %v1766 = vunpack.c.l.b16 %v1537
        %v1767 = vunpack.c.h.b16 %v1537
        %v1768 = vunpack.c.l.b16 %v1538
        %v1769 = vunpack.c.h.b16 %v1538
        %v1770 = vunpack.c.l.b16 %v1539
        %v1771 = vunpack.c.h.b16 %v1539
        %v1772 = vunpack.c.l.b16 %v1540
        %v1773 = vunpack.c.h.b16 %v1540
        %v1774 = vunpack.c.l.b16 %v1541
        %v1775 = vunpack.c.h.b16 %v1541
        %v1776 = vunpack.c.l.b16 %v1542
        %v1777 = vunpack.c.h.b16 %v1542
        %v1778 = vunpack.c.l.b16 %v1543
        %v1779 = vunpack.c.h.b16 %v1543
        %v1780 = vunpack.c.l.b16 %v1544
        %v1781 = vunpack.c.h.b16 %v1544
        %v1782 = vunpack.c.l.b16 %v1545
        %v1783 = vunpack.c.h.b16 %v1545
        %v1784 = vunpack.c.l.b16 %v1546
        %v1785 = vunpack.c.h.b16 %v1546
        %v1786 = vunpack.c.l.b16 %v1547
        %v1787 = vunpack.c.h.b16 %v1547
        %v1788 = vunpack.c.l.b16 %v1548
        %v1789 = vunpack.c.h.b16 %v1548
        %v1790 = vunpack.c.l.b16 %v1549
        %v1791 = vunpack.c.h.b16 %v1549
        %v1792 = vunpack.c.l.b16 %v1550
        %v1793 = vunpack.c.h.b16 %v1550
        %v1794 = vunpack.c.l.b16 %v1551
        %v1795 = vunpack.c.h.b16 %v1551
        %v1796 = vunpack.c.l.b16 %v1552
        %v1797 = vunpack.c.h.b16 %v1552
        %v1798 = vunpack.c.l.b16 %v1553
        %v1799 = vunpack.c.h.b16 %v1553
        %v1800 = vunpack.c.l.b16 %v1554
        %v1801 = vunpack.c.h.b16 %v1554
        %v1802 = vunpack.c.l.b16 %v1555
        %v1803 = vunpack.c.h.b16 %v1555
        %v1804 = vunpack.c.l.b16 %v1556
        %v1805 = vunpack.c.h.b16 %v1556
        %v1806 = vunpack.c.l.b16 %v1557
        %v1807 = vunpack.c.h.b16 %v1557
        %v1808 = vunpack.c.l.b16 %v1558
        %v1809 = vunpack.c.h.b16 %v1558
        %v1810 = vunpack.c.l.b16 %v1559
        %v1811 = vunpack.c.h.b16 %v1559
        %v1812 = vunpack.c.l.b16 %v1560
        %v1813 = vunpack.c.h.b16 %v1560
        %v1814 = vunpack.c.l.b16 %v1561
        %v1815 = vunpack.c.h.b16 %v1561
        %v1816 = vunpack.c.l.b16 %v1562
        %v1817 = vunpack.c.h.b16 %v1562
        %v1818 = vunpack.c.l.b16 %v1563
        %v1819 = vunpack.c.h.b16 %v1563
        %v1820 = vunpack.c.l.b16 %v1564
        %v1821 = vunpack.c.h.b16 %v1564
        %v1822 = vunpack.c.l.b16 %v1565
        %v1823 = vunpack.c.h.b16 %v1565
        %v1824 = vunpack.c.l.b16 %v1566
        %v1825 = vunpack.c.h.b16 %v1566
        %v1826 = vunpack.c.l.b16 %v1567
        %v1827 = vunpack.c.h.b16 %v1567
        %v1828 = vunpack.c.l.b16 %v1568
        %v1829 = vunpack.c.h.b16 %v1568
        %v1830 = vunpack.c.l.b16 %v1569
        %v1831 = vunpack.c.h.b16 %v1569
        %v1832 = vunpack.c.l.b16 %v1570
        %v1833 = vunpack.c.h.b16 %v1570
        %v1834 = vunpack.c.l.b16 %v1571
        %v1835 = vunpack.c.h.b16 %v1571
        %v1836 = vunpack.c.l.b16 %v1572
        %v1837 = vunpack.c.h.b16 %v1572
        %v1838 = vunpack.c.l.b16 %v1573
        %v1839 = vunpack.c.h.b16 %v1573
        %v1840 = vunpack.c.l.b16 %v1574
        %v1841 = vunpack.c.h.b16 %v1574
        %v1842 = vunpack.c.l.b16 %v1575
        %v1843 = vunpack.c.h.b16 %v1575
        %v1844 = vunpack.c.l.b16 %v1576
        %v1845 = vunpack.c.h.b16 %v1576
        %v1846 = vunpack.c.l.b16 %v1577
        %v1847 = vunpack.c.h.b16 %v1577
        %v1848 = vunpack.c.l.b16 %v1578
        %v1849 = vunpack.c.h.b16 %v1578
        %v1850 = vunpack.c.l.b16 %v1579
        %v1851 = vunpack.c.h.b16 %v1579
        %v1852 = vunpack.c.l.b16 %v1580
        %v1853 = vunpack.c.h.b16 %v1580
        %v1854 = vunpack.c.l.b16 %v1581
        %v1855 = vunpack.c.h.b16 %v1581
        %v1856 = vunpack.c.l.b16 %v1582
        %v1857 = vunpack.c.h.b16 %v1582
        %v1858 = vunpack.c.l.b16 %v1583
        %v1859 = vunpack.c.h.b16 %v1583
        %v1860 = vunpack.c.l.b16 %v1584
        %v1861 = vunpack.c.h.b16 %v1584
        %v1862 = vunpack.c.l.b16 %v1585
        %v1863 = vunpack.c.h.b16 %v1585
        %v1864 = vunpack.c.l.b16 %v1586
        %v1865 = vunpack.c.h.b16 %v1586
        %v1866 = vunpack.c.l.b16 %v1587
        %v1867 = vunpack.c.h.b16 %v1587
        %v1868 = vunpack.c.l.b16 %v1588
        %v1869 = vunpack.c.h.b16 %v1588
        %v1870 = vunpack.c.l.b16 %v1589
        %v1871 = vunpack.c.h.b16 %v1589
        %v1872 = vunpack.c.l.b16 %v1590
        %v1873 = vunpack.c.h.b16 %v1590
        %v1874 = vunpack.c.l.b16 %v1591
        %v1875 = vunpack.c.h.b16 %v1591
        %v1876 = vunpack.c.l.b16 %v1592
        %v1877 = vunpack.c.h.b16 %v1592
        %v1878 = vunpack.c.l.b16 %v1593
        %v1879 = vunpack.c.h.b16 %v1593
        %v1880 = vunpack.c.l.b16 %v1594
        %v1881 = vunpack.c.h.b16 %v1594
        %v1882 = vunpack.c.l.b16 %v1595
        %v1883 = vunpack.c.h.b16 %v1595
        %v1884 = vunpack.c.l.b16 %v1596
        %v1885 = vunpack.c.h.b16 %v1596
        %v1886 = vunpack.c.l.b16 %v1597
        %v1887 = vunpack.c.h.b16 %v1597
        %v1888 = vunpack.c.l.b16 %v1598
        %v1889 = vunpack.c.h.b16 %v1598
        %v1890 = vunpack.c.l.b16 %v1599
        %v1891 = vunpack.c.h.b16 %v1599
        %v1892 = vunpack.c.l.b16 %v1600
        %v1893 = vunpack.c.h.b16 %v1600
        %v1894 = vunpack.c.l.b16 %v1601
        %v1895 = vunpack.c.h.b16 %v1601
        %v1896 = vunpack.c.l.b16 %v1602
        %v1897 = vunpack.c.h.b16 %v1602
        %v1898 = vunpack.c.l.b16 %v1603
        %v1899 = vunpack.c.h.b16 %v1603
        %v1900 = vunpack.c.l.b16 %v1604
        %v1901 = vunpack.c.h.b16 %v1604
        %v1902 = vunpack.c.l.b16 %v1605
        %v1903 = vunpack.c.h.b16 %v1605
        %v1904 = vunpack.c.l.b16 %v1606
        %v1905 = vunpack.c.h.b16 %v1606
        %v1906 = vunpack.c.l.b16 %v1607
        %v1907 = vunpack.c.h.b16 %v1607
        %v1908 = vunpack.c.l.b16 %v1608
        %v1909 = vunpack.c.h.b16 %v1608
        %v1910 = vunpack.c.l.b16 %v1609
        %v1911 = vunpack.c.h.b16 %v1609
        %v1912 = vunpack.c.l.b16 %v1610
        %v1913 = vunpack.c.h.b16 %v1610
        %v1914 = vunpack.c.l.b16 %v1611
        %v1915 = vunpack.c.h.b16 %v1611
        %v1916 = vunpack.c.l.b16 %v1612
        %v1917 = vunpack.c.h.b16 %v1612
        %v1918 = vunpack.c.l.b16 %v1613
        %v1919 = vunpack.c.h.b16 %v1613
        %v1920 = vunpack.c.l.b16 %v1614
        %v1921 = vunpack.c.h.b16 %v1614
        %v1922 = vunpack.c.l.b16 %v1615
        %v1923 = vunpack.c.h.b16 %v1615
        %v1924 = vunpack.c.l.b16 %v1616
        %v1925 = vunpack.c.h.b16 %v1616
        %v1926 = vunpack.c.l.b16 %v1617
        %v1927 = vunpack.c.h.b16 %v1617
        %v1928 = vunpack.c.l.b16 %v1618
        %v1929 = vunpack.c.h.b16 %v1618
        %v1930 = vunpack.c.l.b16 %v1619
        %v1931 = vunpack.c.h.b16 %v1619
        %v1932 = vunpack.c.l.b16 %v1620
        %v1933 = vunpack.c.h.b16 %v1620
        %v1934 = vunpack.c.l.b16 %v1621
        %v1935 = vunpack.c.h.b16 %v1621
        %v1936 = vunpack.c.l.b16 %v1622
        %v1937 = vunpack.c.h.b16 %v1622
        %v1938 = vunpack.c.l.b16 %v1623
        %v1939 = vunpack.c.h.b16 %v1623
        %v1940 = vunpack.c.l.b16 %v1624
        %v1941 = vunpack.c.h.b16 %v1624
        %v1942 = vunpack.c.l.b16 %v1625
        %v1943 = vunpack.c.h.b16 %v1625
        %v1944 = vunpack.c.l.b16 %v1626
        %v1945 = vunpack.c.h.b16 %v1626
        %v1946 = vunpack.c.l.b16 %v1627
        %v1947 = vunpack.c.h.b16 %v1627
        %v1948 = vpack.c.b16 %v1762, %v1756
        %v1949 = vpack.c.b16 %v1763, %v1757
        %v1950 = vpack.c.b16 %v1764, %v1758
        %v1951 = vpack.c.b16 %v1765, %v1759
        %v1952 = vpack.c.b16 %v1766, %v1760
        %v1953 = vpack.c.b16 %v1767, %v1761
        %v1954 = vpack.c.b16 %v1774, %v1768
        %v1955 = vpack.c.b16 %v1775, %v1769
        %v1956 = vpack.c.b16 %v1776, %v1770
        %v1957 = vpack.c.b16 %v1777, %v1771
        %v1958 = vpack.c.b16 %v1778, %v1772
        %v1959 = vpack.c.b16 %v1779, %v1773
        %v1960 = vpack.c.b16 %v1786, %v1780
        %v1961 = vpack.c.b16 %v1787, %v1781
        %v1962 = vpack.c.b16 %v1788, %v1782
        %v1963 = vpack.c.b16 %v1789, %v1783
        %v1964 = vpack.c.b16 %v1790, %v1784
        %v1965 = vpack.c.b16 %v1791, %v1785
        %v1966 = vpack.c.b16 %v1798, %v1792
        %v1967 = vpack.c.b16 %v1799, %v1793
        %v1968 = vpack.c.b16 %v1800, %v1794
        %v1969 = vpack.c.b16 %v1801, %v1795
        %v1970 = vpack.c.b16 %v1802, %v1796
        %v1971 = vpack.c.b16 %v1803, %v1797
        %v1972 = vpack.c.b16 %v1810, %v1804
        %v1973 = vpack.c.b16 %v1811, %v1805
        %v1974 = vpack.c.b16 %v1812, %v1806
        %v1975 = vpack.c.b16 %v1813, %v1807
        %v1976 = vpack.c.b16 %v1814, %v1808
        %v1977 = vpack.c.b16 %v1815, %v1809
        %v1978 = vpack.c.b16 %v1822, %v1816
        %v1979 = vpack.c.b16 %v1823, %v1817
        %v1980 = vpack.c.b16 %v1824, %v1818
        %v1981 = vpack.c.b16 %v1825, %v1819
        %v1982 = vpack.c.b16 %v1826, %v1820
        %v1983 = vpack.c.b16 %v1827, %v1821
        %v1984 = vpack.c.b16 %v1834, %v1828
        %v1985 = vpack.c.b16 %v1835, %v1829
        %v1986 = vpack.c.b16 %v1836, %v1830
        %v1987 = vpack.c.b16 %v1837, %v1831
        %v1988 = vpack.c.b16 %v1838, %v1832
        %v1989 = vpack.c.b16 %v1839, %v1833
        %v1990 = vpack.c.b16 %v1846, %v1840
        %v1991 = vpack.c.b16 %v1847, %v1841
        %v1992 = vpack.c.b16 %v1848, %v1842
        %v1993 = vpack.c.b16 %v1849, %v1843
        %v1994 = vpack.c.b16 %v1850, %v1844
        %v1995 = vpack.c.b16 %v1851, %v1845
        %v1996 = vpack.c.b16 %v1858, %v1852
        %v1997 = vpack.c.b16 %v1859, %v1853
        %v1998 = vpack.c.b16 %v1860, %v1854
        %v1999 = vpack.c.b16 %v1861, %v1855
        %v2000 = vpack.c.b16 %v1862, %v1856
        %v2001 = vpack.c.b16 %v1863, %v1857
        %v2002 = vpack.c.b16 %v1870, %v1864
        %v2003 = vpack.c.b16 %v1871, %v1865
        %v2004 = vpack.c.b16 %v1872, %v1866
        %v2005 = vpack.c.b16 %v1873, %v1867
        %v2006 = vpack.c.b16 %v1874, %v1868
        %v2007 = vpack.c.b16 %v1875, %v1869
        %v2008 = vpack.c.b16 %v1882, %v1876
        %v2009 = vpack.c.b16 %v1883, %v1877
        %v2010 = vpack.c.b16 %v1884, %v1878
        %v2011 = vpack.c.b16 %v1885, %v1879
        %v2012 = vpack.c.b16 %v1886, %v1880
        %v2013 = vpack.c.b16 %v1887, %v1881
        %v2014 = vpack.c.b16 %v1894, %v1888
        %v2015 = vpack.c.b16 %v1895, %v1889
        %v2016 = vpack.c.b16 %v1896, %v1890
        %v2017 = vpack.c.b16 %v1897, %v1891
        %v2018 = vpack.c.b16 %v1898, %v1892
        %v2019 = vpack.c.b16 %v1899, %v1893
        %v2020 = vpack.c.b16 %v1906, %v1900
        %v2021 = vpack.c.b16 %v1907, %v1901
        %v2022 = vpack.c.b16 %v1908, %v1902
        %v2023 = vpack.c.b16 %v1909, %v1903
        %v2024 = vpack.c.b16 %v1910, %v1904
        %v2025 = vpack.c.b16 %v1911, %v1905
        %v2026 = vpack.c.b16 %v1918, %v1912
        %v2027 = vpack.c.b16 %v1919, %v1913
        %v2028 = vpack.c.b16 %v1920, %v1914
        %v2029 = vpack.c.b16 %v1921, %v1915
        %v2030 = vpack.c.b16 %v1922, %v1916
        %v2031 = vpack.c.b16 %v1923, %v1917
        %v2032 = vpack.c.b16 %v1930, %v1924
        %v2033 = vpack.c.b16 %v1931, %v1925
        %v2034 = vpack.c.b16 %v1932, %v1926
        %v2035 = vpack.c.b16 %v1933, %v1927
        %v2036 = vpack.c.b16 %v1934, %v1928
        %v2037 = vpack.c.b16 %v1935, %v1929
        %v2038 = vpack.c.b16 %v1942, %v1936
        %v2039 = vpack.c.b16 %v1943, %v1937
        %v2040 = vpack.c.b16 %v1944, %v1938
        %v2041 = vpack.c.b16 %v1945, %v1939
        %v2042 = vpack.c.b16 %v1946, %v1940
        %v2043 = vpack.c.b16 %v1947, %v1941
        %2140 = vmatprep.subr.bf16.mxu0 %v1949
        %2141 = vmatpush1.bf16.msra.mxu0 %v1948
        %2142 = vmatprep.subr.bf16.mxu0 %v1955
        %2143 = vmatpush1.bf16.msra.mxu0 %v1954
        %2144 = vmatprep.subr.bf16.mxu0 %v1961
        %2145 = vmatpush1.bf16.msra.mxu0 %v1960
        %2146 = vmatprep.subr.bf16.mxu0 %v1967
        %2147 = vmatpush1.bf16.msra.mxu0 %v1966
        %2148 = vmatprep.subr.bf16.mxu0 %v1973
        %2149 = vmatpush1.bf16.msra.mxu0 %v1972
        %2150 = vmatprep.subr.bf16.mxu0 %v1979
        %2151 = vmatpush1.bf16.msra.mxu0 %v1978
        %2152 = vmatprep.subr.bf16.mxu0 %v1985
        %2153 = vmatpush1.bf16.msra.mxu0 %v1984
        %2154 = vmatprep.subr.bf16.mxu0 %v1991
        %2155 = vmatpush1.bf16.msra.mxu0 %v1990
        %2156 = vmatprep.subr.bf16.mxu0 %v1997
        %2157 = vmatpush1.bf16.msra.mxu0 %v1996
        %2158 = vmatprep.subr.bf16.mxu0 %v2003
        %2159 = vmatpush1.bf16.msra.mxu0 %v2002
        %2160 = vmatprep.subr.bf16.mxu0 %v2009
        %2161 = vmatpush1.bf16.msra.mxu0 %v2008
        %2162 = vmatprep.subr.bf16.mxu0 %v2015
        %2163 = vmatpush1.bf16.msra.mxu0 %v2014
        %2164 = vmatprep.subr.bf16.mxu0 %v2021
        %2165 = vmatpush1.bf16.msra.mxu0 %v2020
        %2166 = vmatprep.subr.bf16.mxu0 %v2027
        %2167 = vmatpush1.bf16.msra.mxu0 %v2026
        %2168 = vmatprep.subr.bf16.mxu0 %v2033
        %2169 = vmatpush1.bf16.msra.mxu0 %v2032
        %2170 = vmatprep.subr.bf16.mxu0 %v2039
        %2171 = vmatpush1.bf16.msra.mxu0 %v2038
        %2172 = vmatprep.mubr.bf16.mxu0 %v1501
        %2173 = vmatmul.mubr.bf16.gmra.mrb[0].mxu0 %v1500
        %v2174 = vpop.f32.mrb[0].mxu0
        %v2175 = vadd.f32 %v1633, %v2174
        %v2176 = vpop.f32.mrb[0].mxu0
        %v2177 = vadd.f32 %v1637, %v2176
        %v2178 = vpop.f32.mrb[0].mxu0
        %v2179 = vadd.f32 %v1633, %v2178
        %v2180 = vpop.f32.mrb[0].mxu0
        %v2181 = vadd.f32 %v1637, %v2180
        %2182 = vmatprep.mubr.bf16.mxu0 %v1503
        %2183 = vmatmul.mubr.bf16.gmra.mrb[0].mxu0 %v1502
        %v2184 = vpop.f32.mrb[0].mxu0
        %v2185 = vadd.f32 %v1633, %v2184
        %v2186 = vpop.f32.mrb[0].mxu0
        %v2187 = vadd.f32 %v1637, %v2186
        %v2188 = vpop.f32.mrb[0].mxu0
        %v2189 = vadd.f32 %v1633, %v2188
        %v2190 = vpop.f32.mrb[0].mxu0
        %v2191 = vadd.f32 %v1637, %v2190
        %2192 = vmatprep.mubr.bf16.mxu0 %v1505
        %2193 = vmatmul.mubr.bf16.gmra.mrb[0].mxu0 %v1504
        %v2194 = vpop.f32.mrb[0].mxu0
        %v2195 = vadd.f32 %v1633, %v2194
        %v2196 = vpop.f32.mrb[0].mxu0
        %v2197 = vadd.f32 %v1637, %v2196
        %v2198 = vpop.f32.mrb[0].mxu0
        %v2199 = vadd.f32 %v1633, %v2198
        %v2200 = vpop.f32.mrb[0].mxu0
        %v2201 = vadd.f32 %v1637, %v2200
        %2202 = vmatprep.mubr.bf16.mxu0 %v1507
        %2203 = vmatmul.mubr.bf16.gmra.mrb[0].mxu0 %v1506
        %v2204 = vpop.f32.mrb[0].mxu0
        %v2205 = vadd.f32 %v1633, %v2204
        %v2206 = vpop.f32.mrb[0].mxu0
        %v2207 = vadd.f32 %v1637, %v2206
        %v2208 = vpop.f32.mrb[0].mxu0
        %v2209 = vadd.f32 %v1633, %v2208
        %v2210 = vpop.f32.mrb[0].mxu0
        %v2211 = vadd.f32 %v1637, %v2210
        %2212 = vmatprep.mubr.bf16.mxu0 %v1509
        %2213 = vmatmul.mubr.bf16.gmra.mrb[0].mxu0 %v1508
        %v2214 = vpop.f32.mrb[0].mxu0
        %v2215 = vadd.f32 %v1633, %v2214
        %v2216 = vpop.f32.mrb[0].mxu0
        %v2217 = vadd.f32 %v1637, %v2216
        %v2218 = vpop.f32.mrb[0].mxu0
        %v2219 = vadd.f32 %v1633, %v2218
        %v2220 = vpop.f32.mrb[0].mxu0
        %v2221 = vadd.f32 %v1637, %v2220
        %2222 = vmatprep.mubr.bf16.mxu0 %v1511
        %2223 = vmatmul.mubr.bf16.gmra.mrb[0].mxu0 %v1510
        %v2224 = vpop.f32.mrb[0].mxu0
        %v2225 = vadd.f32 %v1633, %v2224
        %v2226 = vpop.f32.mrb[0].mxu0
        %v2227 = vadd.f32 %v1637, %v2226
        %v2228 = vpop.f32.mrb[0].mxu0
        %v2229 = vadd.f32 %v1633, %v2228
        %v2230 = vpop.f32.mrb[0].mxu0
        %v2231 = vadd.f32 %v1637, %v2230
        %2232 = vmatprep.mubr.bf16.mxu0 %v1513
        %2233 = vmatmul.mubr.bf16.gmra.mrb[0].mxu0 %v1512
        %v2234 = vpop.f32.mrb[0].mxu0
        %v2235 = vadd.f32 %v1633, %v2234
        %v2236 = vpop.f32.mrb[0].mxu0
        %v2237 = vadd.f32 %v1637, %v2236
        %v2238 = vpop.f32.mrb[0].mxu0
        %v2239 = vadd.f32 %v1633, %v2238
        %v2240 = vpop.f32.mrb[0].mxu0
        %v2241 = vadd.f32 %v1637, %v2240
        %2242 = vmatprep.mubr.bf16.mxu0 %v1515
        %2243 = vmatmul.mubr.bf16.gmra.mrb[0].mxu0 %v1514
        %v2244 = vpop.f32.mrb[0].mxu0
        %v2245 = vadd.f32 %v1633, %v2244
        %v2246 = vpop.f32.mrb[0].mxu0
        %v2247 = vadd.f32 %v1637, %v2246
        %v2248 = vpop.f32.mrb[0].mxu0
        %v2249 = vadd.f32 %v1633, %v2248
        %v2250 = vpop.f32.mrb[0].mxu0
        %v2251 = vadd.f32 %v1637, %v2250
        %2252 = vmatprep.mubr.bf16.mxu0 %v1517
        %2253 = vmatmul.mubr.bf16.gmra.mrb[0].mxu0 %v1516
        %v2254 = vpop.f32.mrb[0].mxu0
        %v2255 = vadd.f32 %v1633, %v2254
        %v2256 = vpop.f32.mrb[0].mxu0
        %v2257 = vadd.f32 %v1637, %v2256
        %v2258 = vpop.f32.mrb[0].mxu0
        %v2259 = vadd.f32 %v1633, %v2258
        %v2260 = vpop.f32.mrb[0].mxu0
        %v2261 = vadd.f32 %v1637, %v2260
        %2262 = vmatprep.mubr.bf16.mxu0 %v1519
        %2263 = vmatmul.mubr.bf16.gmra.mrb[0].mxu0 %v1518
        %v2264 = vpop.f32.mrb[0].mxu0
        %v2265 = vadd.f32 %v1633, %v2264
        %v2266 = vpop.f32.mrb[0].mxu0
        %v2267 = vadd.f32 %v1637, %v2266
        %v2268 = vpop.f32.mrb[0].mxu0
        %v2269 = vadd.f32 %v1633, %v2268
        %v2270 = vpop.f32.mrb[0].mxu0
        %v2271 = vadd.f32 %v1637, %v2270
        %2272 = vmatprep.mubr.bf16.mxu0 %v1521
        %2273 = vmatmul.mubr.bf16.gmra.mrb[0].mxu0 %v1520
        %v2274 = vpop.f32.mrb[0].mxu0
        %v2275 = vadd.f32 %v1633, %v2274
        %v2276 = vpop.f32.mrb[0].mxu0
        %v2277 = vadd.f32 %v1637, %v2276
        %v2278 = vpop.f32.mrb[0].mxu0
        %v2279 = vadd.f32 %v1633, %v2278
        %v2280 = vpop.f32.mrb[0].mxu0
        %v2281 = vadd.f32 %v1637, %v2280
        %2282 = vmatprep.mubr.bf16.mxu0 %v1523
        %2283 = vmatmul.mubr.bf16.gmra.mrb[0].mxu0 %v1522
        %v2284 = vpop.f32.mrb[0].mxu0
        %v2285 = vadd.f32 %v1633, %v2284
        %v2286 = vpop.f32.mrb[0].mxu0
        %v2287 = vadd.f32 %v1637, %v2286
        %v2288 = vpop.f32.mrb[0].mxu0
        %v2289 = vadd.f32 %v1633, %v2288
        %v2290 = vpop.f32.mrb[0].mxu0
        %v2291 = vadd.f32 %v1637, %v2290
        %2292 = vmatprep.mubr.bf16.mxu0 %v1525
        %2293 = vmatmul.mubr.bf16.gmra.mrb[0].mxu0 %v1524
        %v2294 = vpop.f32.mrb[0].mxu0
        %v2295 = vadd.f32 %v1633, %v2294
        %v2296 = vpop.f32.mrb[0].mxu0
        %v2297 = vadd.f32 %v1637, %v2296
        %v2298 = vpop.f32.mrb[0].mxu0
        %v2299 = vadd.f32 %v1633, %v2298
        %v2300 = vpop.f32.mrb[0].mxu0
        %v2301 = vadd.f32 %v1637, %v2300
        %2302 = vmatprep.mubr.bf16.mxu0 %v1527
        %2303 = vmatmul.mubr.bf16.gmra.mrb[0].mxu0 %v1526
        %v2304 = vpop.f32.mrb[0].mxu0
        %v2305 = vadd.f32 %v1633, %v2304
        %v2306 = vpop.f32.mrb[0].mxu0
        %v2307 = vadd.f32 %v1637, %v2306
        %v2308 = vpop.f32.mrb[0].mxu0
        %v2309 = vadd.f32 %v1633, %v2308
        %v2310 = vpop.f32.mrb[0].mxu0
        %v2311 = vadd.f32 %v1637, %v2310
        %2312 = vmatprep.mubr.bf16.mxu0 %v1529
        %2313 = vmatmul.mubr.bf16.gmra.mrb[0].mxu0 %v1528
        %v2314 = vpop.f32.mrb[0].mxu0
        %v2315 = vadd.f32 %v1633, %v2314
        %v2316 = vpop.f32.mrb[0].mxu0
        %v2317 = vadd.f32 %v1637, %v2316
        %v2318 = vpop.f32.mrb[0].mxu0
        %v2319 = vadd.f32 %v1633, %v2318
        %v2320 = vpop.f32.mrb[0].mxu0
        %v2321 = vadd.f32 %v1637, %v2320
        %2322 = vmatprep.mubr.bf16.mxu0 %v1531
        %2323 = vmatmul.mubr.bf16.gmra.mrb[0].mxu0 %v1530
        %v2324 = vpop.f32.mrb[0].mxu0
        %v2325 = vadd.f32 %v1633, %v2324
        %v2326 = vpop.f32.mrb[0].mxu0
        %v2327 = vadd.f32 %v1637, %v2326
        %v2328 = vpop.f32.mrb[0].mxu0
        %v2329 = vadd.f32 %v1633, %v2328
        %v2330 = vpop.f32.mrb[0].mxu0
        %v2331 = vadd.f32 %v1637, %v2330
        %2332 = vdwg.mxu0
        %2333 = vmatprep.subr.bf16.mxu0 %v1951
        %2334 = vmatpush1.bf16.msra.mxu0 %v1950
        %2335 = vmatprep.subr.bf16.mxu0 %v1957
        %2336 = vmatpush1.bf16.msra.mxu0 %v1956
        %2337 = vmatprep.subr.bf16.mxu0 %v1963
        %2338 = vmatpush1.bf16.msra.mxu0 %v1962
        %2339 = vmatprep.subr.bf16.mxu0 %v1969
        %2340 = vmatpush1.bf16.msra.mxu0 %v1968
        %2341 = vmatprep.subr.bf16.mxu0 %v1975
        %2342 = vmatpush1.bf16.msra.mxu0 %v1974
        %2343 = vmatprep.subr.bf16.mxu0 %v1981
        %2344 = vmatpush1.bf16.msra.mxu0 %v1980
        %2345 = vmatprep.subr.bf16.mxu0 %v1987
        %2346 = vmatpush1.bf16.msra.mxu0 %v1986
        %2347 = vmatprep.subr.bf16.mxu0 %v1993
        %2348 = vmatpush1.bf16.msra.mxu0 %v1992
        %2349 = vmatprep.subr.bf16.mxu0 %v1999
        %2350 = vmatpush1.bf16.msra.mxu0 %v1998
        %2351 = vmatprep.subr.bf16.mxu0 %v2005
        %2352 = vmatpush1.bf16.msra.mxu0 %v2004
        %2353 = vmatprep.subr.bf16.mxu0 %v2011
        %2354 = vmatpush1.bf16.msra.mxu0 %v2010
        %2355 = vmatprep.subr.bf16.mxu0 %v2017
        %2356 = vmatpush1.bf16.msra.mxu0 %v2016
        %2357 = vmatprep.subr.bf16.mxu0 %v2023
        %2358 = vmatpush1.bf16.msra.mxu0 %v2022
        %2359 = vmatprep.subr.bf16.mxu0 %v2029
        %2360 = vmatpush1.bf16.msra.mxu0 %v2028
        %2361 = vmatprep.subr.bf16.mxu0 %v2035
        %2362 = vmatpush1.bf16.msra.mxu0 %v2034
        %2363 = vmatprep.subr.bf16.mxu0 %v2041
        %2364 = vmatpush1.bf16.msra.mxu0 %v2040
        %2365 = vmatprep.mubr.bf16.mxu0 %v1501
        %2366 = vmatmul.mubr.bf16.gmra.mrb[0].mxu0 %v1500
        %v2367 = vpop.f32.mrb[0].mxu0
        %v2368 = vadd.f32 %v1641, %v2367
        %v2369 = vpop.f32.mrb[0].mxu0
        %v2370 = vadd.f32 %v1645, %v2369
        %v2371 = vpop.f32.mrb[0].mxu0
        %v2372 = vadd.f32 %v1641, %v2371
        %v2373 = vpop.f32.mrb[0].mxu0
        %v2374 = vadd.f32 %v1645, %v2373
        %2375 = vmatprep.mubr.bf16.mxu0 %v1503
        %2376 = vmatmul.mubr.bf16.gmra.mrb[0].mxu0 %v1502
        %v2377 = vpop.f32.mrb[0].mxu0
        %v2378 = vadd.f32 %v1641, %v2377
        %v2379 = vpop.f32.mrb[0].mxu0
        %v2380 = vadd.f32 %v1645, %v2379
        %v2381 = vpop.f32.mrb[0].mxu0
        %v2382 = vadd.f32 %v1641, %v2381
        %v2383 = vpop.f32.mrb[0].mxu0
        %v2384 = vadd.f32 %v1645, %v2383
        %2385 = vmatprep.mubr.bf16.mxu0 %v1505
        %2386 = vmatmul.mubr.bf16.gmra.mrb[0].mxu0 %v1504
        %v2387 = vpop.f32.mrb[0].mxu0
        %v2388 = vadd.f32 %v1641, %v2387
        %v2389 = vpop.f32.mrb[0].mxu0
        %v2390 = vadd.f32 %v1645, %v2389
        %v2391 = vpop.f32.mrb[0].mxu0
        %v2392 = vadd.f32 %v1641, %v2391
        %v2393 = vpop.f32.mrb[0].mxu0
        %v2394 = vadd.f32 %v1645, %v2393
        %2395 = vmatprep.mubr.bf16.mxu0 %v1507
        %2396 = vmatmul.mubr.bf16.gmra.mrb[0].mxu0 %v1506
        %v2397 = vpop.f32.mrb[0].mxu0
        %v2398 = vadd.f32 %v1641, %v2397
        %v2399 = vpop.f32.mrb[0].mxu0
        %v2400 = vadd.f32 %v1645, %v2399
        %v2401 = vpop.f32.mrb[0].mxu0
        %v2402 = vadd.f32 %v1641, %v2401
        %v2403 = vpop.f32.mrb[0].mxu0
        %v2404 = vadd.f32 %v1645, %v2403
        %2405 = vmatprep.mubr.bf16.mxu0 %v1509
        %2406 = vmatmul.mubr.bf16.gmra.mrb[0].mxu0 %v1508
        %v2407 = vpop.f32.mrb[0].mxu0
        %v2408 = vadd.f32 %v1641, %v2407
        %v2409 = vpop.f32.mrb[0].mxu0
        %v2410 = vadd.f32 %v1645, %v2409
        %v2411 = vpop.f32.mrb[0].mxu0
        %v2412 = vadd.f32 %v1641, %v2411
        %v2413 = vpop.f32.mrb[0].mxu0
        %v2414 = vadd.f32 %v1645, %v2413
        %2415 = vmatprep.mubr.bf16.mxu0 %v1511
        %2416 = vmatmul.mubr.bf16.gmra.mrb[0].mxu0 %v1510
        %v2417 = vpop.f32.mrb[0].mxu0
        %v2418 = vadd.f32 %v1641, %v2417
        %v2419 = vpop.f32.mrb[0].mxu0
        %v2420 = vadd.f32 %v1645, %v2419
        %v2421 = vpop.f32.mrb[0].mxu0
        %v2422 = vadd.f32 %v1641, %v2421
        %v2423 = vpop.f32.mrb[0].mxu0
        %v2424 = vadd.f32 %v1645, %v2423
        %2425 = vmatprep.mubr.bf16.mxu0 %v1513
        %2426 = vmatmul.mubr.bf16.gmra.mrb[0].mxu0 %v1512
        %v2427 = vpop.f32.mrb[0].mxu0
        %v2428 = vadd.f32 %v1641, %v2427
        %v2429 = vpop.f32.mrb[0].mxu0
        %v2430 = vadd.f32 %v1645, %v2429
        %v2431 = vpop.f32.mrb[0].mxu0
        %v2432 = vadd.f32 %v1641, %v2431
        %v2433 = vpop.f32.mrb[0].mxu0
        %v2434 = vadd.f32 %v1645, %v2433
        %2435 = vmatprep.mubr.bf16.mxu0 %v1515
        %2436 = vmatmul.mubr.bf16.gmra.mrb[0].mxu0 %v1514
        %v2437 = vpop.f32.mrb[0].mxu0
        %v2438 = vadd.f32 %v1641, %v2437
        %v2439 = vpop.f32.mrb[0].mxu0
        %v2440 = vadd.f32 %v1645, %v2439
        %v2441 = vpop.f32.mrb[0].mxu0
        %v2442 = vadd.f32 %v1641, %v2441
        %v2443 = vpop.f32.mrb[0].mxu0
        %v2444 = vadd.f32 %v1645, %v2443
        %2445 = vmatprep.mubr.bf16.mxu0 %v1517
        %2446 = vmatmul.mubr.bf16.gmra.mrb[0].mxu0 %v1516
        %v2447 = vpop.f32.mrb[0].mxu0
        %v2448 = vadd.f32 %v1641, %v2447
        %v2449 = vpop.f32.mrb[0].mxu0
        %v2450 = vadd.f32 %v1645, %v2449
        %v2451 = vpop.f32.mrb[0].mxu0
        %v2452 = vadd.f32 %v1641, %v2451
        %v2453 = vpop.f32.mrb[0].mxu0
        %v2454 = vadd.f32 %v1645, %v2453
        %2455 = vmatprep.mubr.bf16.mxu0 %v1519
        %2456 = vmatmul.mubr.bf16.gmra.mrb[0].mxu0 %v1518
        %v2457 = vpop.f32.mrb[0].mxu0
        %v2458 = vadd.f32 %v1641, %v2457
        %v2459 = vpop.f32.mrb[0].mxu0
        %v2460 = vadd.f32 %v1645, %v2459
        %v2461 = vpop.f32.mrb[0].mxu0
        %v2462 = vadd.f32 %v1641, %v2461
        %v2463 = vpop.f32.mrb[0].mxu0
        %v2464 = vadd.f32 %v1645, %v2463
        %2465 = vmatprep.mubr.bf16.mxu0 %v1521
        %2466 = vmatmul.mubr.bf16.gmra.mrb[0].mxu0 %v1520
        %v2467 = vpop.f32.mrb[0].mxu0
        %v2468 = vadd.f32 %v1641, %v2467
        %v2469 = vpop.f32.mrb[0].mxu0
        %v2470 = vadd.f32 %v1645, %v2469
        %v2471 = vpop.f32.mrb[0].mxu0
        %v2472 = vadd.f32 %v1641, %v2471
        %v2473 = vpop.f32.mrb[0].mxu0
        %v2474 = vadd.f32 %v1645, %v2473
        %2475 = vmatprep.mubr.bf16.mxu0 %v1523
        %2476 = vmatmul.mubr.bf16.gmra.mrb[0].mxu0 %v1522
        %v2477 = vpop.f32.mrb[0].mxu0
        %v2478 = vadd.f32 %v1641, %v2477
        %v2479 = vpop.f32.mrb[0].mxu0
        %v2480 = vadd.f32 %v1645, %v2479
        %v2481 = vpop.f32.mrb[0].mxu0
        %v2482 = vadd.f32 %v1641, %v2481
        %v2483 = vpop.f32.mrb[0].mxu0
        %v2484 = vadd.f32 %v1645, %v2483
        %2485 = vmatprep.mubr.bf16.mxu0 %v1525
        %2486 = vmatmul.mubr.bf16.gmra.mrb[0].mxu0 %v1524
        %v2487 = vpop.f32.mrb[0].mxu0
        %v2488 = vadd.f32 %v1641, %v2487
        %v2489 = vpop.f32.mrb[0].mxu0
        %v2490 = vadd.f32 %v1645, %v2489
        %v2491 = vpop.f32.mrb[0].mxu0
        %v2492 = vadd.f32 %v1641, %v2491
        %v2493 = vpop.f32.mrb[0].mxu0
        %v2494 = vadd.f32 %v1645, %v2493
        %2495 = vmatprep.mubr.bf16.mxu0 %v1527
        %2496 = vmatmul.mubr.bf16.gmra.mrb[0].mxu0 %v1526
        %v2497 = vpop.f32.mrb[0].mxu0
        %v2498 = vadd.f32 %v1641, %v2497
        %v2499 = vpop.f32.mrb[0].mxu0
        %v2500 = vadd.f32 %v1645, %v2499
        %v2501 = vpop.f32.mrb[0].mxu0
        %v2502 = vadd.f32 %v1641, %v2501
        %v2503 = vpop.f32.mrb[0].mxu0
        %v2504 = vadd.f32 %v1645, %v2503
        %2505 = vmatprep.mubr.bf16.mxu0 %v1529
        %2506 = vmatmul.mubr.bf16.gmra.mrb[0].mxu0 %v1528
        %v2507 = vpop.f32.mrb[0].mxu0
        %v2508 = vadd.f32 %v1641, %v2507
        %v2509 = vpop.f32.mrb[0].mxu0
        %v2510 = vadd.f32 %v1645, %v2509
        %v2511 = vpop.f32.mrb[0].mxu0
        %v2512 = vadd.f32 %v1641, %v2511
        %v2513 = vpop.f32.mrb[0].mxu0
        %v2514 = vadd.f32 %v1645, %v2513
        %2515 = vmatprep.mubr.bf16.mxu0 %v1531
        %2516 = vmatmul.mubr.bf16.gmra.mrb[0].mxu0 %v1530
        %v2517 = vpop.f32.mrb[0].mxu0
        %v2518 = vadd.f32 %v1641, %v2517
        %v2519 = vpop.f32.mrb[0].mxu0
        %v2520 = vadd.f32 %v1645, %v2519
        %v2521 = vpop.f32.mrb[0].mxu0
        %v2522 = vadd.f32 %v1641, %v2521
        %v2523 = vpop.f32.mrb[0].mxu0
        %v2524 = vadd.f32 %v1645, %v2523
        %2525 = vdwg.mxu0
        %2526 = vmatprep.subr.bf16.mxu0 %v1953
        %2527 = vmatpush1.bf16.msra.mxu0 %v1952
        %2528 = vmatprep.subr.bf16.mxu0 %v1959
        %2529 = vmatpush1.bf16.msra.mxu0 %v1958
        %2530 = vmatprep.subr.bf16.mxu0 %v1965
        %2531 = vmatpush1.bf16.msra.mxu0 %v1964
        %2532 = vmatprep.subr.bf16.mxu0 %v1971
        %2533 = vmatpush1.bf16.msra.mxu0 %v1970
        %2534 = vmatprep.subr.bf16.mxu0 %v1977
        %2535 = vmatpush1.bf16.msra.mxu0 %v1976
        %2536 = vmatprep.subr.bf16.mxu0 %v1983
        %2537 = vmatpush1.bf16.msra.mxu0 %v1982
        %2538 = vmatprep.subr.bf16.mxu0 %v1989
        %2539 = vmatpush1.bf16.msra.mxu0 %v1988
        %2540 = vmatprep.subr.bf16.mxu0 %v1995
        %2541 = vmatpush1.bf16.msra.mxu0 %v1994
        %2542 = vmatprep.subr.bf16.mxu0 %v2001
        %2543 = vmatpush1.bf16.msra.mxu0 %v2000
        %2544 = vmatprep.subr.bf16.mxu0 %v2007
        %2545 = vmatpush1.bf16.msra.mxu0 %v2006
        %2546 = vmatprep.subr.bf16.mxu0 %v2013
        %2547 = vmatpush1.bf16.msra.mxu0 %v2012
        %2548 = vmatprep.subr.bf16.mxu0 %v2019
        %2549 = vmatpush1.bf16.msra.mxu0 %v2018
        %2550 = vmatprep.subr.bf16.mxu0 %v2025
        %2551 = vmatpush1.bf16.msra.mxu0 %v2024
        %2552 = vmatprep.subr.bf16.mxu0 %v2031
        %2553 = vmatpush1.bf16.msra.mxu0 %v2030
        %2554 = vmatprep.subr.bf16.mxu0 %v2037
        %2555 = vmatpush1.bf16.msra.mxu0 %v2036
        %2556 = vmatprep.subr.bf16.mxu0 %v2043
        %2557 = vmatpush1.bf16.msra.mxu0 %v2042
        %2558 = vmatprep.mubr.bf16.mxu0 %v1501
        %2559 = vmatmul.mubr.bf16.gmra.mrb[0].mxu0 %v1500
        %v2560 = vpop.f32.mrb[0].mxu0
        %v2561 = vadd.f32 %v1649, %v2560
        %v2562 = vpop.f32.mrb[0].mxu0
        %v2563 = vadd.f32 %v1653, %v2562
        %v2564 = vpop.f32.mrb[0].mxu0
        %v2565 = vadd.f32 %v1649, %v2564
        %v2566 = vpop.f32.mrb[0].mxu0
        %v2567 = vadd.f32 %v1653, %v2566
        %2568 = vmatprep.mubr.bf16.mxu0 %v1503
        %2569 = vmatmul.mubr.bf16.gmra.mrb[0].mxu0 %v1502
        %v2570 = vpop.f32.mrb[0].mxu0
        %v2571 = vadd.f32 %v1649, %v2570
        %v2572 = vpop.f32.mrb[0].mxu0
        %v2573 = vadd.f32 %v1653, %v2572
        %v2574 = vpop.f32.mrb[0].mxu0
        %v2575 = vadd.f32 %v1649, %v2574
        %v2576 = vpop.f32.mrb[0].mxu0
        %v2577 = vadd.f32 %v1653, %v2576
        %2578 = vmatprep.mubr.bf16.mxu0 %v1505
        %2579 = vmatmul.mubr.bf16.gmra.mrb[0].mxu0 %v1504
        %v2580 = vpop.f32.mrb[0].mxu0
        %v2581 = vadd.f32 %v1649, %v2580
        %v2582 = vpop.f32.mrb[0].mxu0
        %v2583 = vadd.f32 %v1653, %v2582
        %v2584 = vpop.f32.mrb[0].mxu0
        %v2585 = vadd.f32 %v1649, %v2584
        %v2586 = vpop.f32.mrb[0].mxu0
        %v2587 = vadd.f32 %v1653, %v2586
        %2588 = vmatprep.mubr.bf16.mxu0 %v1507
        %2589 = vmatmul.mubr.bf16.gmra.mrb[0].mxu0 %v1506
        %v2590 = vpop.f32.mrb[0].mxu0
        %v2591 = vadd.f32 %v1649, %v2590
        %v2592 = vpop.f32.mrb[0].mxu0
        %v2593 = vadd.f32 %v1653, %v2592
        %v2594 = vpop.f32.mrb[0].mxu0
        %v2595 = vadd.f32 %v1649, %v2594
        %v2596 = vpop.f32.mrb[0].mxu0
        %v2597 = vadd.f32 %v1653, %v2596
        %2598 = vmatprep.mubr.bf16.mxu0 %v1509
        %2599 = vmatmul.mubr.bf16.gmra.mrb[0].mxu0 %v1508
        %v2600 = vpop.f32.mrb[0].mxu0
        %v2601 = vadd.f32 %v1649, %v2600
        %v2602 = vpop.f32.mrb[0].mxu0
        %v2603 = vadd.f32 %v1653, %v2602
        %v2604 = vpop.f32.mrb[0].mxu0
        %v2605 = vadd.f32 %v1649, %v2604
        %v2606 = vpop.f32.mrb[0].mxu0
        %v2607 = vadd.f32 %v1653, %v2606
        %2608 = vmatprep.mubr.bf16.mxu0 %v1511
        %2609 = vmatmul.mubr.bf16.gmra.mrb[0].mxu0 %v1510
        %v2610 = vpop.f32.mrb[0].mxu0
        %v2611 = vadd.f32 %v1649, %v2610
        %v2612 = vpop.f32.mrb[0].mxu0
        %v2613 = vadd.f32 %v1653, %v2612
        %v2614 = vpop.f32.mrb[0].mxu0
        %v2615 = vadd.f32 %v1649, %v2614
        %v2616 = vpop.f32.mrb[0].mxu0
        %v2617 = vadd.f32 %v1653, %v2616
        %2618 = vmatprep.mubr.bf16.mxu0 %v1513
        %2619 = vmatmul.mubr.bf16.gmra.mrb[0].mxu0 %v1512
        %v2620 = vpop.f32.mrb[0].mxu0
        %v2621 = vadd.f32 %v1649, %v2620
        %v2622 = vpop.f32.mrb[0].mxu0
        %v2623 = vadd.f32 %v1653, %v2622
        %v2624 = vpop.f32.mrb[0].mxu0
        %v2625 = vadd.f32 %v1649, %v2624
        %v2626 = vpop.f32.mrb[0].mxu0
        %v2627 = vadd.f32 %v1653, %v2626
        %2628 = vmatprep.mubr.bf16.mxu0 %v1515
        %2629 = vmatmul.mubr.bf16.gmra.mrb[0].mxu0 %v1514
        %v2630 = vpop.f32.mrb[0].mxu0
        %v2631 = vadd.f32 %v1649, %v2630
        %v2632 = vpop.f32.mrb[0].mxu0
        %v2633 = vadd.f32 %v1653, %v2632
        %v2634 = vpop.f32.mrb[0].mxu0
        %v2635 = vadd.f32 %v1649, %v2634
        %v2636 = vpop.f32.mrb[0].mxu0
        %v2637 = vadd.f32 %v1653, %v2636
        %2638 = vmatprep.mubr.bf16.mxu0 %v1517
        %2639 = vmatmul.mubr.bf16.gmra.mrb[0].mxu0 %v1516
        %v2640 = vpop.f32.mrb[0].mxu0
        %v2641 = vadd.f32 %v1649, %v2640
        %v2642 = vpop.f32.mrb[0].mxu0
        %v2643 = vadd.f32 %v1653, %v2642
        %v2644 = vpop.f32.mrb[0].mxu0
        %v2645 = vadd.f32 %v1649, %v2644
        %v2646 = vpop.f32.mrb[0].mxu0
        %v2647 = vadd.f32 %v1653, %v2646
        %2648 = vmatprep.mubr.bf16.mxu0 %v1519
        %2649 = vmatmul.mubr.bf16.gmra.mrb[0].mxu0 %v1518
        %v2650 = vpop.f32.mrb[0].mxu0
        %v2651 = vadd.f32 %v1649, %v2650
        %v2652 = vpop.f32.mrb[0].mxu0
        %v2653 = vadd.f32 %v1653, %v2652
        %v2654 = vpop.f32.mrb[0].mxu0
        %v2655 = vadd.f32 %v1649, %v2654
        %v2656 = vpop.f32.mrb[0].mxu0
        %v2657 = vadd.f32 %v1653, %v2656
        %2658 = vmatprep.mubr.bf16.mxu0 %v1521
        %2659 = vmatmul.mubr.bf16.gmra.mrb[0].mxu0 %v1520
        %v2660 = vpop.f32.mrb[0].mxu0
        %v2661 = vadd.f32 %v1649, %v2660
        %v2662 = vpop.f32.mrb[0].mxu0
        %v2663 = vadd.f32 %v1653, %v2662
        %v2664 = vpop.f32.mrb[0].mxu0
        %v2665 = vadd.f32 %v1649, %v2664
        %v2666 = vpop.f32.mrb[0].mxu0
        %v2667 = vadd.f32 %v1653, %v2666
        %2668 = vmatprep.mubr.bf16.mxu0 %v1523
        %2669 = vmatmul.mubr.bf16.gmra.mrb[0].mxu0 %v1522
        %v2670 = vpop.f32.mrb[0].mxu0
        %v2671 = vadd.f32 %v1649, %v2670
        %v2672 = vpop.f32.mrb[0].mxu0
        %v2673 = vadd.f32 %v1653, %v2672
        %v2674 = vpop.f32.mrb[0].mxu0
        %v2675 = vadd.f32 %v1649, %v2674
        %v2676 = vpop.f32.mrb[0].mxu0
        %v2677 = vadd.f32 %v1653, %v2676
        %2678 = vmatprep.mubr.bf16.mxu0 %v1525
        %2679 = vmatmul.mubr.bf16.gmra.mrb[0].mxu0 %v1524
        %v2680 = vpop.f32.mrb[0].mxu0
        %v2681 = vadd.f32 %v1649, %v2680
        %v2682 = vpop.f32.mrb[0].mxu0
        %v2683 = vadd.f32 %v1653, %v2682
        %v2684 = vpop.f32.mrb[0].mxu0
        %v2685 = vadd.f32 %v1649, %v2684
        %v2686 = vpop.f32.mrb[0].mxu0
        %v2687 = vadd.f32 %v1653, %v2686
        %2688 = vmatprep.mubr.bf16.mxu0 %v1527
        %2689 = vmatmul.mubr.bf16.gmra.mrb[0].mxu0 %v1526
        %v2690 = vpop.f32.mrb[0].mxu0
        %v2691 = vadd.f32 %v1649, %v2690
        %v2692 = vpop.f32.mrb[0].mxu0
        %v2693 = vadd.f32 %v1653, %v2692
        %v2694 = vpop.f32.mrb[0].mxu0
        %v2695 = vadd.f32 %v1649, %v2694
        %v2696 = vpop.f32.mrb[0].mxu0
        %v2697 = vadd.f32 %v1653, %v2696
        %2698 = vmatprep.mubr.bf16.mxu0 %v1529
        %2699 = vmatmul.mubr.bf16.gmra.mrb[0].mxu0 %v1528
        %v2700 = vpop.f32.mrb[0].mxu0
        %v2701 = vadd.f32 %v1649, %v2700
        %v2702 = vpop.f32.mrb[0].mxu0
        %v2703 = vadd.f32 %v1653, %v2702
        %v2704 = vpop.f32.mrb[0].mxu0
        %v2705 = vadd.f32 %v1649, %v2704
        %v2706 = vpop.f32.mrb[0].mxu0
        %v2707 = vadd.f32 %v1653, %v2706
        %2708 = vmatprep.mubr.bf16.mxu0 %v1531
        %2709 = vmatmul.mubr.bf16.gmra.mrb[0].mxu0 %v1530
        %v2710 = vpop.f32.mrb[0].mxu0
        %v2711 = vadd.f32 %v1649, %v2710
        %v2712 = vpop.f32.mrb[0].mxu0
        %v2713 = vadd.f32 %v1653, %v2712
        %v2714 = vpop.f32.mrb[0].mxu0
        %v2715 = vadd.f32 %v1649, %v2714
        %v2716 = vpop.f32.mrb[0].mxu0
        %v2717 = vadd.f32 %v1653, %v2716
        %2718 = vdwg.mxu0
        %v2719 = vpack.c.bf16 %v2179, %v2175
        %v2720 = vpack.c.bf16 %v2181, %v2177
        %v2721 = vpack.c.bf16 %v2372, %v2368
        %v2722 = vpack.c.bf16 %v2374, %v2370
        %v2723 = vpack.c.bf16 %v2565, %v2561
        %v2724 = vpack.c.bf16 %v2567, %v2563
        %v2725 = vpack.c.bf16 %v2189, %v2185
        %v2726 = vpack.c.bf16 %v2191, %v2187
        %v2727 = vpack.c.bf16 %v2382, %v2378
        %v2728 = vpack.c.bf16 %v2384, %v2380
        %v2729 = vpack.c.bf16 %v2575, %v2571
        %v2730 = vpack.c.bf16 %v2577, %v2573
        %v2731 = vpack.c.bf16 %v2199, %v2195
        %v2732 = vpack.c.bf16 %v2201, %v2197
        %v2733 = vpack.c.bf16 %v2392, %v2388
        %v2734 = vpack.c.bf16 %v2394, %v2390
        %v2735 = vpack.c.bf16 %v2585, %v2581
        %v2736 = vpack.c.bf16 %v2587, %v2583
        %v2737 = vpack.c.bf16 %v2209, %v2205
        %v2738 = vpack.c.bf16 %v2211, %v2207
        %v2739 = vpack.c.bf16 %v2402, %v2398
        %v2740 = vpack.c.bf16 %v2404, %v2400
        %v2741 = vpack.c.bf16 %v2595, %v2591
        %v2742 = vpack.c.bf16 %v2597, %v2593
        %v2743 = vpack.c.bf16 %v2219, %v2215
        %v2744 = vpack.c.bf16 %v2221, %v2217
        %v2745 = vpack.c.bf16 %v2412, %v2408
        %v2746 = vpack.c.bf16 %v2414, %v2410
        %v2747 = vpack.c.bf16 %v2605, %v2601
        %v2748 = vpack.c.bf16 %v2607, %v2603
        %v2749 = vpack.c.bf16 %v2229, %v2225
        %v2750 = vpack.c.bf16 %v2231, %v2227
        %v2751 = vpack.c.bf16 %v2422, %v2418
        %v2752 = vpack.c.bf16 %v2424, %v2420
        %v2753 = vpack.c.bf16 %v2615, %v2611
        %v2754 = vpack.c.bf16 %v2617, %v2613
        %v2755 = vpack.c.bf16 %v2239, %v2235
        %v2756 = vpack.c.bf16 %v2241, %v2237
        %v2757 = vpack.c.bf16 %v2432, %v2428
        %v2758 = vpack.c.bf16 %v2434, %v2430
        %v2759 = vpack.c.bf16 %v2625, %v2621
        %v2760 = vpack.c.bf16 %v2627, %v2623
        %v2761 = vpack.c.bf16 %v2249, %v2245
        %v2762 = vpack.c.bf16 %v2251, %v2247
        %v2763 = vpack.c.bf16 %v2442, %v2438
        %v2764 = vpack.c.bf16 %v2444, %v2440
        %v2765 = vpack.c.bf16 %v2635, %v2631
        %v2766 = vpack.c.bf16 %v2637, %v2633
        %v2767 = vpack.c.bf16 %v2259, %v2255
        %v2768 = vpack.c.bf16 %v2261, %v2257
        %v2769 = vpack.c.bf16 %v2452, %v2448
        %v2770 = vpack.c.bf16 %v2454, %v2450
        %v2771 = vpack.c.bf16 %v2645, %v2641
        %v2772 = vpack.c.bf16 %v2647, %v2643
        %v2773 = vpack.c.bf16 %v2269, %v2265
        %v2774 = vpack.c.bf16 %v2271, %v2267
        %v2775 = vpack.c.bf16 %v2462, %v2458
        %v2776 = vpack.c.bf16 %v2464, %v2460
        %v2777 = vpack.c.bf16 %v2655, %v2651
        %v2778 = vpack.c.bf16 %v2657, %v2653
        %v2779 = vpack.c.bf16 %v2279, %v2275
        %v2780 = vpack.c.bf16 %v2281, %v2277
        %v2781 = vpack.c.bf16 %v2472, %v2468
        %v2782 = vpack.c.bf16 %v2474, %v2470
        %v2783 = vpack.c.bf16 %v2665, %v2661
        %v2784 = vpack.c.bf16 %v2667, %v2663
        %v2785 = vpack.c.bf16 %v2289, %v2285
        %v2786 = vpack.c.bf16 %v2291, %v2287
        %v2787 = vpack.c.bf16 %v2482, %v2478
        %v2788 = vpack.c.bf16 %v2484, %v2480
        %v2789 = vpack.c.bf16 %v2675, %v2671
        %v2790 = vpack.c.bf16 %v2677, %v2673
        %v2791 = vpack.c.bf16 %v2299, %v2295
        %v2792 = vpack.c.bf16 %v2301, %v2297
        %v2793 = vpack.c.bf16 %v2492, %v2488
        %v2794 = vpack.c.bf16 %v2494, %v2490
        %v2795 = vpack.c.bf16 %v2685, %v2681
        %v2796 = vpack.c.bf16 %v2687, %v2683
        %v2797 = vpack.c.bf16 %v2309, %v2305
        %v2798 = vpack.c.bf16 %v2311, %v2307
        %v2799 = vpack.c.bf16 %v2502, %v2498
        %v2800 = vpack.c.bf16 %v2504, %v2500
        %v2801 = vpack.c.bf16 %v2695, %v2691
        %v2802 = vpack.c.bf16 %v2697, %v2693
        %v2803 = vpack.c.bf16 %v2319, %v2315
        %v2804 = vpack.c.bf16 %v2321, %v2317
        %v2805 = vpack.c.bf16 %v2512, %v2508
        %v2806 = vpack.c.bf16 %v2514, %v2510
        %v2807 = vpack.c.bf16 %v2705, %v2701
        %v2808 = vpack.c.bf16 %v2707, %v2703
        %v2809 = vpack.c.bf16 %v2329, %v2325
        %v2810 = vpack.c.bf16 %v2331, %v2327
        %v2811 = vpack.c.bf16 %v2522, %v2518
        %v2812 = vpack.c.bf16 %v2524, %v2520
        %v2813 = vpack.c.bf16 %v2715, %v2711
        %v2814 = vpack.c.bf16 %v2717, %v2713
        %v2911 = vunpack.c.l.b16 %v2719
        %v2912 = vunpack.c.l.b16 %v2720
        %v2913 = vunpack.c.l.b16 %v2721
        %v2914 = vunpack.c.l.b16 %v2722
        %v2915 = vunpack.c.l.b16 %v2723
        %v2916 = vunpack.c.l.b16 %v2724
        %v2917 = vunpack.c.h.b16 %v2719
        %v2918 = vunpack.c.h.b16 %v2720
        %v2919 = vunpack.c.h.b16 %v2721
        %v2920 = vunpack.c.h.b16 %v2722
        %v2921 = vunpack.c.h.b16 %v2723
        %v2922 = vunpack.c.h.b16 %v2724
        %v2923 = vunpack.c.l.b16 %v2725
        %v2924 = vunpack.c.l.b16 %v2726
        %v2925 = vunpack.c.l.b16 %v2727
        %v2926 = vunpack.c.l.b16 %v2728
        %v2927 = vunpack.c.l.b16 %v2729
        %v2928 = vunpack.c.l.b16 %v2730
        %v2929 = vunpack.c.h.b16 %v2725
        %v2930 = vunpack.c.h.b16 %v2726
        %v2931 = vunpack.c.h.b16 %v2727
        %v2932 = vunpack.c.h.b16 %v2728
        %v2933 = vunpack.c.h.b16 %v2729
        %v2934 = vunpack.c.h.b16 %v2730
        %v2935 = vunpack.c.l.b16 %v2731
        %v2936 = vunpack.c.l.b16 %v2732
        %v2937 = vunpack.c.l.b16 %v2733
        %v2938 = vunpack.c.l.b16 %v2734
        %v2939 = vunpack.c.l.b16 %v2735
        %v2940 = vunpack.c.l.b16 %v2736
        %v2941 = vunpack.c.h.b16 %v2731
        %v2942 = vunpack.c.h.b16 %v2732
        %v2943 = vunpack.c.h.b16 %v2733
        %v2944 = vunpack.c.h.b16 %v2734
        %v2945 = vunpack.c.h.b16 %v2735
        %v2946 = vunpack.c.h.b16 %v2736
        %v2947 = vunpack.c.l.b16 %v2737
        %v2948 = vunpack.c.l.b16 %v2738
        %v2949 = vunpack.c.l.b16 %v2739
        %v2950 = vunpack.c.l.b16 %v2740
        %v2951 = vunpack.c.l.b16 %v2741
        %v2952 = vunpack.c.l.b16 %v2742
        %v2953 = vunpack.c.h.b16 %v2737
        %v2954 = vunpack.c.h.b16 %v2738
        %v2955 = vunpack.c.h.b16 %v2739
        %v2956 = vunpack.c.h.b16 %v2740
        %v2957 = vunpack.c.h.b16 %v2741
        %v2958 = vunpack.c.h.b16 %v2742
        %v2959 = vunpack.c.l.b16 %v2743
        %v2960 = vunpack.c.l.b16 %v2744
        %v2961 = vunpack.c.l.b16 %v2745
        %v2962 = vunpack.c.l.b16 %v2746
        %v2963 = vunpack.c.l.b16 %v2747
        %v2964 = vunpack.c.l.b16 %v2748
        %v2965 = vunpack.c.h.b16 %v2743
        %v2966 = vunpack.c.h.b16 %v2744
        %v2967 = vunpack.c.h.b16 %v2745
        %v2968 = vunpack.c.h.b16 %v2746
        %v2969 = vunpack.c.h.b16 %v2747
        %v2970 = vunpack.c.h.b16 %v2748
        %v2971 = vunpack.c.l.b16 %v2749
        %v2972 = vunpack.c.l.b16 %v2750
        %v2973 = vunpack.c.l.b16 %v2751
        %v2974 = vunpack.c.l.b16 %v2752
        %v2975 = vunpack.c.l.b16 %v2753
        %v2976 = vunpack.c.l.b16 %v2754
        %v2977 = vunpack.c.h.b16 %v2749
        %v2978 = vunpack.c.h.b16 %v2750
        %v2979 = vunpack.c.h.b16 %v2751
        %v2980 = vunpack.c.h.b16 %v2752
        %v2981 = vunpack.c.h.b16 %v2753
        %v2982 = vunpack.c.h.b16 %v2754
        %v2983 = vunpack.c.l.b16 %v2755
        %v2984 = vunpack.c.l.b16 %v2756
        %v2985 = vunpack.c.l.b16 %v2757
        %v2986 = vunpack.c.l.b16 %v2758
        %v2987 = vunpack.c.l.b16 %v2759
        %v2988 = vunpack.c.l.b16 %v2760
        %v2989 = vunpack.c.h.b16 %v2755
        %v2990 = vunpack.c.h.b16 %v2756
        %v2991 = vunpack.c.h.b16 %v2757
        %v2992 = vunpack.c.h.b16 %v2758
        %v2993 = vunpack.c.h.b16 %v2759
        %v2994 = vunpack.c.h.b16 %v2760
        %v2995 = vunpack.c.l.b16 %v2761
        %v2996 = vunpack.c.l.b16 %v2762
        %v2997 = vunpack.c.l.b16 %v2763
        %v2998 = vunpack.c.l.b16 %v2764
        %v2999 = vunpack.c.l.b16 %v2765
        %v3000 = vunpack.c.l.b16 %v2766
        %v3001 = vunpack.c.h.b16 %v2761
        %v3002 = vunpack.c.h.b16 %v2762
        %v3003 = vunpack.c.h.b16 %v2763
        %v3004 = vunpack.c.h.b16 %v2764
        %v3005 = vunpack.c.h.b16 %v2765
        %v3006 = vunpack.c.h.b16 %v2766
        %v3007 = vunpack.c.l.b16 %v2767
        %v3008 = vunpack.c.l.b16 %v2768
        %v3009 = vunpack.c.l.b16 %v2769
        %v3010 = vunpack.c.l.b16 %v2770
        %v3011 = vunpack.c.l.b16 %v2771
        %v3012 = vunpack.c.l.b16 %v2772
        %v3013 = vunpack.c.h.b16 %v2767
        %v3014 = vunpack.c.h.b16 %v2768
        %v3015 = vunpack.c.h.b16 %v2769
        %v3016 = vunpack.c.h.b16 %v2770
        %v3017 = vunpack.c.h.b16 %v2771
        %v3018 = vunpack.c.h.b16 %v2772
        %v3019 = vunpack.c.l.b16 %v2773
        %v3020 = vunpack.c.l.b16 %v2774
        %v3021 = vunpack.c.l.b16 %v2775
        %v3022 = vunpack.c.l.b16 %v2776
        %v3023 = vunpack.c.l.b16 %v2777
        %v3024 = vunpack.c.l.b16 %v2778
        %v3025 = vunpack.c.h.b16 %v2773
        %v3026 = vunpack.c.h.b16 %v2774
        %v3027 = vunpack.c.h.b16 %v2775
        %v3028 = vunpack.c.h.b16 %v2776
        %v3029 = vunpack.c.h.b16 %v2777
        %v3030 = vunpack.c.h.b16 %v2778
        %v3031 = vunpack.c.l.b16 %v2779
        %v3032 = vunpack.c.l.b16 %v2780
        %v3033 = vunpack.c.l.b16 %v2781
        %v3034 = vunpack.c.l.b16 %v2782
        %v3035 = vunpack.c.l.b16 %v2783
        %v3036 = vunpack.c.l.b16 %v2784
        %v3037 = vunpack.c.h.b16 %v2779
        %v3038 = vunpack.c.h.b16 %v2780
        %v3039 = vunpack.c.h.b16 %v2781
        %v3040 = vunpack.c.h.b16 %v2782
        %v3041 = vunpack.c.h.b16 %v2783
        %v3042 = vunpack.c.h.b16 %v2784
        %v3043 = vunpack.c.l.b16 %v2785
        %v3044 = vunpack.c.l.b16 %v2786
        %v3045 = vunpack.c.l.b16 %v2787
        %v3046 = vunpack.c.l.b16 %v2788
        %v3047 = vunpack.c.l.b16 %v2789
        %v3048 = vunpack.c.l.b16 %v2790
        %v3049 = vunpack.c.h.b16 %v2785
        %v3050 = vunpack.c.h.b16 %v2786
        %v3051 = vunpack.c.h.b16 %v2787
        %v3052 = vunpack.c.h.b16 %v2788
        %v3053 = vunpack.c.h.b16 %v2789
        %v3054 = vunpack.c.h.b16 %v2790
        %v3055 = vunpack.c.l.b16 %v2791
        %v3056 = vunpack.c.l.b16 %v2792
        %v3057 = vunpack.c.l.b16 %v2793
        %v3058 = vunpack.c.l.b16 %v2794
        %v3059 = vunpack.c.l.b16 %v2795
        %v3060 = vunpack.c.l.b16 %v2796
        %v3061 = vunpack.c.h.b16 %v2791
        %v3062 = vunpack.c.h.b16 %v2792
        %v3063 = vunpack.c.h.b16 %v2793
        %v3064 = vunpack.c.h.b16 %v2794
        %v3065 = vunpack.c.h.b16 %v2795
        %v3066 = vunpack.c.h.b16 %v2796
        %v3067 = vunpack.c.l.b16 %v2797
        %v3068 = vunpack.c.l.b16 %v2798
        %v3069 = vunpack.c.l.b16 %v2799
        %v3070 = vunpack.c.l.b16 %v2800
        %v3071 = vunpack.c.l.b16 %v2801
        %v3072 = vunpack.c.l.b16 %v2802
        %v3073 = vunpack.c.h.b16 %v2797
        %v3074 = vunpack.c.h.b16 %v2798
        %v3075 = vunpack.c.h.b16 %v2799
        %v3076 = vunpack.c.h.b16 %v2800
        %v3077 = vunpack.c.h.b16 %v2801
        %v3078 = vunpack.c.h.b16 %v2802
        %v3079 = vunpack.c.l.b16 %v2803
        %v3080 = vunpack.c.l.b16 %v2804
        %v3081 = vunpack.c.l.b16 %v2805
        %v3082 = vunpack.c.l.b16 %v2806
        %v3083 = vunpack.c.l.b16 %v2807
        %v3084 = vunpack.c.l.b16 %v2808
        %v3085 = vunpack.c.h.b16 %v2803
        %v3086 = vunpack.c.h.b16 %v2804
        %v3087 = vunpack.c.h.b16 %v2805
        %v3088 = vunpack.c.h.b16 %v2806
        %v3089 = vunpack.c.h.b16 %v2807
        %v3090 = vunpack.c.h.b16 %v2808
        %v3091 = vunpack.c.l.b16 %v2809
        %v3092 = vunpack.c.l.b16 %v2810
        %v3093 = vunpack.c.l.b16 %v2811
        %v3094 = vunpack.c.l.b16 %v2812
        %v3095 = vunpack.c.l.b16 %v2813
        %v3096 = vunpack.c.l.b16 %v2814
        %v3097 = vunpack.c.h.b16 %v2809
        %v3098 = vunpack.c.h.b16 %v2810
        %v3099 = vunpack.c.h.b16 %v2811
        %v3100 = vunpack.c.h.b16 %v2812
        %v3101 = vunpack.c.h.b16 %v2813
        %v3102 = vunpack.c.h.b16 %v2814
        %v3103 = vpack.c.b16 %v2912, %v2911
        %v3104 = vpack.c.b16 %v2914, %v2913
        %v3105 = vpack.c.b16 %v2916, %v2915
        %v3106 = vpack.c.b16 %v2918, %v2917
        %v3107 = vpack.c.b16 %v2920, %v2919
        %v3108 = vpack.c.b16 %v2922, %v2921
        %v3109 = vpack.c.b16 %v2924, %v2923
        %v3110 = vpack.c.b16 %v2926, %v2925
        %v3111 = vpack.c.b16 %v2928, %v2927
        %v3112 = vpack.c.b16 %v2930, %v2929
        %v3113 = vpack.c.b16 %v2932, %v2931
        %v3114 = vpack.c.b16 %v2934, %v2933
        %v3115 = vpack.c.b16 %v2936, %v2935
        %v3116 = vpack.c.b16 %v2938, %v2937
        %v3117 = vpack.c.b16 %v2940, %v2939
        %v3118 = vpack.c.b16 %v2942, %v2941
        %v3119 = vpack.c.b16 %v2944, %v2943
        %v3120 = vpack.c.b16 %v2946, %v2945
        %v3121 = vpack.c.b16 %v2948, %v2947
        %v3122 = vpack.c.b16 %v2950, %v2949
        %v3123 = vpack.c.b16 %v2952, %v2951
        %v3124 = vpack.c.b16 %v2954, %v2953
        %v3125 = vpack.c.b16 %v2956, %v2955
        %v3126 = vpack.c.b16 %v2958, %v2957
        %v3127 = vpack.c.b16 %v2960, %v2959
        %v3128 = vpack.c.b16 %v2962, %v2961
        %v3129 = vpack.c.b16 %v2964, %v2963
        %v3130 = vpack.c.b16 %v2966, %v2965
        %v3131 = vpack.c.b16 %v2968, %v2967
        %v3132 = vpack.c.b16 %v2970, %v2969
        %v3133 = vpack.c.b16 %v2972, %v2971
        %v3134 = vpack.c.b16 %v2974, %v2973
        %v3135 = vpack.c.b16 %v2976, %v2975
        %v3136 = vpack.c.b16 %v2978, %v2977
        %v3137 = vpack.c.b16 %v2980, %v2979
        %v3138 = vpack.c.b16 %v2982, %v2981
        %v3139 = vpack.c.b16 %v2984, %v2983
        %v3140 = vpack.c.b16 %v2986, %v2985
        %v3141 = vpack.c.b16 %v2988, %v2987
        %v3142 = vpack.c.b16 %v2990, %v2989
        %v3143 = vpack.c.b16 %v2992, %v2991
        %v3144 = vpack.c.b16 %v2994, %v2993
        %v3145 = vpack.c.b16 %v2996, %v2995
        %v3146 = vpack.c.b16 %v2998, %v2997
        %v3147 = vpack.c.b16 %v3000, %v2999
        %v3148 = vpack.c.b16 %v3002, %v3001
        %v3149 = vpack.c.b16 %v3004, %v3003
        %v3150 = vpack.c.b16 %v3006, %v3005
        %v3151 = vpack.c.b16 %v3008, %v3007
        %v3152 = vpack.c.b16 %v3010, %v3009
        %v3153 = vpack.c.b16 %v3012, %v3011
        %v3154 = vpack.c.b16 %v3014, %v3013
        %v3155 = vpack.c.b16 %v3016, %v3015
        %v3156 = vpack.c.b16 %v3018, %v3017
        %v3157 = vpack.c.b16 %v3020, %v3019
        %v3158 = vpack.c.b16 %v3022, %v3021
        %v3159 = vpack.c.b16 %v3024, %v3023
        %v3160 = vpack.c.b16 %v3026, %v3025
        %v3161 = vpack.c.b16 %v3028, %v3027
        %v3162 = vpack.c.b16 %v3030, %v3029
        %v3163 = vpack.c.b16 %v3032, %v3031
        %v3164 = vpack.c.b16 %v3034, %v3033
        %v3165 = vpack.c.b16 %v3036, %v3035
        %v3166 = vpack.c.b16 %v3038, %v3037
        %v3167 = vpack.c.b16 %v3040, %v3039
        %v3168 = vpack.c.b16 %v3042, %v3041
        %v3169 = vpack.c.b16 %v3044, %v3043
        %v3170 = vpack.c.b16 %v3046, %v3045
        %v3171 = vpack.c.b16 %v3048, %v3047
        %v3172 = vpack.c.b16 %v3050, %v3049
        %v3173 = vpack.c.b16 %v3052, %v3051
        %v3174 = vpack.c.b16 %v3054, %v3053
        %v3175 = vpack.c.b16 %v3056, %v3055
        %v3176 = vpack.c.b16 %v3058, %v3057
        %v3177 = vpack.c.b16 %v3060, %v3059
        %v3178 = vpack.c.b16 %v3062, %v3061
        %v3179 = vpack.c.b16 %v3064, %v3063
        %v3180 = vpack.c.b16 %v3066, %v3065
        %v3181 = vpack.c.b16 %v3068, %v3067
        %v3182 = vpack.c.b16 %v3070, %v3069
        %v3183 = vpack.c.b16 %v3072, %v3071
        %v3184 = vpack.c.b16 %v3074, %v3073
        %v3185 = vpack.c.b16 %v3076, %v3075
        %v3186 = vpack.c.b16 %v3078, %v3077
        %v3187 = vpack.c.b16 %v3080, %v3079
        %v3188 = vpack.c.b16 %v3082, %v3081
        %v3189 = vpack.c.b16 %v3084, %v3083
        %v3190 = vpack.c.b16 %v3086, %v3085
        %v3191 = vpack.c.b16 %v3088, %v3087
        %v3192 = vpack.c.b16 %v3090, %v3089
        %v3193 = vpack.c.b16 %v3092, %v3091
        %v3194 = vpack.c.b16 %v3094, %v3093
        %v3195 = vpack.c.b16 %v3096, %v3095
        %v3196 = vpack.c.b16 %v3098, %v3097
        %v3197 = vpack.c.b16 %v3100, %v3099
        %v3198 = vpack.c.b16 %v3102, %v3101
        %3295 = vst [vmem:[%s446] sm:$0xff] %v3103
        %3296 = vst [vmem:[%s446 + $0x8] sm:$0xff] %v3104
        %3297 = vst [vmem:[%s446 + $0x10] sm:$0xff] %v3105
        %3298 = vst [vmem:[%s446 + $0x18] sm:$0xff] %v3106
        %3299 = vst [vmem:[%s446 + $0x20] sm:$0xff] %v3107
        %3300 = vst [vmem:[%s446 + $0x28] sm:$0xff] %v3108
        %3301 = vst [vmem:[%s446 + $0x30] sm:$0xff] %v3109
        %3302 = vst [vmem:[%s446 + $0x38] sm:$0xff] %v3110
        %3303 = vst [vmem:[%s446 + $0x40] sm:$0xff] %v3111
        %3304 = vst [vmem:[%s446 + $0x48] sm:$0xff] %v3112
        %3305 = vst [vmem:[%s446 + $0x50] sm:$0xff] %v3113
        %3306 = vst [vmem:[%s446 + $0x58] sm:$0xff] %v3114
        %3307 = vst [vmem:[%s446 + $0x60] sm:$0xff] %v3115
        %3308 = vst [vmem:[%s446 + $0x68] sm:$0xff] %v3116
        %3309 = vst [vmem:[%s446 + $0x70] sm:$0xff] %v3117
        %3310 = vst [vmem:[%s446 + $0x78] sm:$0xff] %v3118
        %3311 = vst [vmem:[%s446 + $0x80] sm:$0xff] %v3119
        %3312 = vst [vmem:[%s446 + $0x88] sm:$0xff] %v3120
        %3313 = vst [vmem:[%s446 + $0x90] sm:$0xff] %v3121
        %3314 = vst [vmem:[%s446 + $0x98] sm:$0xff] %v3122
        %3315 = vst [vmem:[%s446 + $0xa0] sm:$0xff] %v3123
        %3316 = vst [vmem:[%s446 + $0xa8] sm:$0xff] %v3124
        %3317 = vst [vmem:[%s446 + $0xb0] sm:$0xff] %v3125
        %3318 = vst [vmem:[%s446 + $0xb8] sm:$0xff] %v3126
        %3319 = vst [vmem:[%s446 + $0xc0] sm:$0xff] %v3127
        %3320 = vst [vmem:[%s446 + $0xc8] sm:$0xff] %v3128
        %3321 = vst [vmem:[%s446 + $0xd0] sm:$0xff] %v3129
        %3322 = vst [vmem:[%s446 + $0xd8] sm:$0xff] %v3130
        %3323 = vst [vmem:[%s446 + $0xe0] sm:$0xff] %v3131
        %3324 = vst [vmem:[%s446 + $0xe8] sm:$0xff] %v3132
        %3325 = vst [vmem:[%s446 + $0xf0] sm:$0xff] %v3133
        %3326 = vst [vmem:[%s446 + $0xf8] sm:$0xff] %v3134
        %3327 = vst [vmem:[%s446 + $0x100] sm:$0xff] %v3135
        %3328 = vst [vmem:[%s446 + $0x108] sm:$0xff] %v3136
        %3329 = vst [vmem:[%s446 + $0x110] sm:$0xff] %v3137
        %3330 = vst [vmem:[%s446 + $0x118] sm:$0xff] %v3138
        %3331 = vst [vmem:[%s446 + $0x120] sm:$0xff] %v3139
        %3332 = vst [vmem:[%s446 + $0x128] sm:$0xff] %v3140
        %3333 = vst [vmem:[%s446 + $0x130] sm:$0xff] %v3141
        %3334 = vst [vmem:[%s446 + $0x138] sm:$0xff] %v3142
        %3335 = vst [vmem:[%s446 + $0x140] sm:$0xff] %v3143
        %3336 = vst [vmem:[%s446 + $0x148] sm:$0xff] %v3144
        %3337 = vst [vmem:[%s446 + $0x150] sm:$0xff] %v3145
        %3338 = vst [vmem:[%s446 + $0x158] sm:$0xff] %v3146
        %3339 = vst [vmem:[%s446 + $0x160] sm:$0xff] %v3147
        %3340 = vst [vmem:[%s446 + $0x168] sm:$0xff] %v3148
        %3341 = vst [vmem:[%s446 + $0x170] sm:$0xff] %v3149
        %3342 = vst [vmem:[%s446 + $0x178] sm:$0xff] %v3150
        %3343 = vst [vmem:[%s446 + $0x180] sm:$0xff] %v3151
        %3344 = vst [vmem:[%s446 + $0x188] sm:$0xff] %v3152
        %3345 = vst [vmem:[%s446 + $0x190] sm:$0xff] %v3153
        %3346 = vst [vmem:[%s446 + $0x198] sm:$0xff] %v3154
        %3347 = vst [vmem:[%s446 + $0x1a0] sm:$0xff] %v3155
        %3348 = vst [vmem:[%s446 + $0x1a8] sm:$0xff] %v3156
        %3349 = vst [vmem:[%s446 + $0x1b0] sm:$0xff] %v3157
        %3350 = vst [vmem:[%s446 + $0x1b8] sm:$0xff] %v3158
        %3351 = vst [vmem:[%s446 + $0x1c0] sm:$0xff] %v3159
        %3352 = vst [vmem:[%s446 + $0x1c8] sm:$0xff] %v3160
        %3353 = vst [vmem:[%s446 + $0x1d0] sm:$0xff] %v3161
        %3354 = vst [vmem:[%s446 + $0x1d8] sm:$0xff] %v3162
        %3355 = vst [vmem:[%s446 + $0x1e0] sm:$0xff] %v3163
        %3356 = vst [vmem:[%s446 + $0x1e8] sm:$0xff] %v3164
        %3357 = vst [vmem:[%s446 + $0x1f0] sm:$0xff] %v3165
        %3358 = vst [vmem:[%s446 + $0x1f8] sm:$0xff] %v3166
        %3359 = vst [vmem:[%s446 + $0x200] sm:$0xff] %v3167
        %3360 = vst [vmem:[%s446 + $0x208] sm:$0xff] %v3168
        %3361 = vst [vmem:[%s446 + $0x210] sm:$0xff] %v3169
        %3362 = vst [vmem:[%s446 + $0x218] sm:$0xff] %v3170
        %3363 = vst [vmem:[%s446 + $0x220] sm:$0xff] %v3171
        %3364 = vst [vmem:[%s446 + $0x228] sm:$0xff] %v3172
        %3365 = vst [vmem:[%s446 + $0x230] sm:$0xff] %v3173
        %3366 = vst [vmem:[%s446 + $0x238] sm:$0xff] %v3174
        %3367 = vst [vmem:[%s446 + $0x240] sm:$0xff] %v3175
        %3368 = vst [vmem:[%s446 + $0x248] sm:$0xff] %v3176
        %3369 = vst [vmem:[%s446 + $0x250] sm:$0xff] %v3177
        %3370 = vst [vmem:[%s446 + $0x258] sm:$0xff] %v3178
        %3371 = vst [vmem:[%s446 + $0x260] sm:$0xff] %v3179
        %3372 = vst [vmem:[%s446 + $0x268] sm:$0xff] %v3180
        %3373 = vst [vmem:[%s446 + $0x270] sm:$0xff] %v3181
        %3374 = vst [vmem:[%s446 + $0x278] sm:$0xff] %v3182
        %3375 = vst [vmem:[%s446 + $0x280] sm:$0xff] %v3183
        %3376 = vst [vmem:[%s446 + $0x288] sm:$0xff] %v3184
        %3377 = vst [vmem:[%s446 + $0x290] sm:$0xff] %v3185
        %3378 = vst [vmem:[%s446 + $0x298] sm:$0xff] %v3186
        %3379 = vst [vmem:[%s446 + $0x2a0] sm:$0xff] %v3187
        %3380 = vst [vmem:[%s446 + $0x2a8] sm:$0xff] %v3188
        %3381 = vst [vmem:[%s446 + $0x2b0] sm:$0xff] %v3189
        %3382 = vst [vmem:[%s446 + $0x2b8] sm:$0xff] %v3190
        %3383 = vst [vmem:[%s446 + $0x2c0] sm:$0xff] %v3191
        %3384 = vst [vmem:[%s446 + $0x2c8] sm:$0xff] %v3192
        %3385 = vst [vmem:[%s446 + $0x2d0] sm:$0xff] %v3193
        %3386 = vst [vmem:[%s446 + $0x2d8] sm:$0xff] %v3194
        %3387 = vst [vmem:[%s446 + $0x2e0] sm:$0xff] %v3195
        %3388 = vst [vmem:[%s446 + $0x2e8] sm:$0xff] %v3196
        %3389 = vst [vmem:[%s446 + $0x2f0] sm:$0xff] %v3197
        %3390 = vst [vmem:[%s446 + $0x2f8] sm:$0xff] %v3198
        %s3391 = sand.u32 %s215, 1
        %s3392 = scalar_lea.sflag [#allocation4], %s3391
        %s3393 = sand.u32 %s215, 1
        %s3394 = smul.addr %s3393, 768
        %s3395 = scalar_lea.vmem [#allocation14], %s3394
        // Predicated region
        $region77: #{tpu_custom_call.1} parent=47 // pred_check
          %p3396 = pneg %p225
        $region78: #{tpu_custom_call.1} parent=47 // pred_check_branch
          %3398 = sbr.rel (%p3396) target = $region80
        $region79: #{tpu_custom_call.1} parent=47 // pred_region
          %s3399 = smul.u32 32, %s33
          %s3401 = ssub.s32 12288, 12288
          %3402 = vsyncadd %s3392, %s3401
          %s3403 = smul.addr %s3399, 6
          %s3404 = smul.addr %s34, 768
          %s3405 = sadd.s32 %s3403, %s3404
          %s3406 = smul.addr %s3405, 64
          %s3407 = scalar_lea.hbm %s7, %s3406
          %s3408 = sshll.u32 %s3395, 4
          %s3409 = int_to_ptr.vmem [resolvable:$true] %s3408
          %3414 = dma.vmem_to_hbm [thread:$0]  %s3409, 12288, %s3407, %s3392, 384, 384, 24
        $region80: #{tpu_custom_call.1} parent=47 // pred_fallthru
          _
      $region48: #{tpu_custom_call.1} parent=5 // pred_fallthru
        _
      %p3415 = scmp.le.s32.totalorder 2, %s24
      // Predicated region
      $region81: #{tpu_custom_call.1} parent=5 // pred_check
        %p3416 = pneg %p3415
      $region82: #{tpu_custom_call.1} parent=5 // pred_check_branch
        %3418 = sbr.rel (%p3416) target = $region84
      $region83: #{tpu_custom_call.1} parent=5 // pred_region
        %s3419 = ssub.s32 %s24, 2
        // Predicated region
        $region85: #{tpu_custom_call.1} parent=83 // pred_check
          %p3420 = pneg %p231
        $region86: #{tpu_custom_call.1} parent=83 // pred_check_branch
          %3422 = sbr.rel (%p3420) target = $region88
        $region87: #{tpu_custom_call.1} parent=83 // pred_region
          %s3423 = sand.u32 %s216, 1
          %s3424 = scalar_lea.sflag [#allocation4], %s3423
          %s3425 = sand.u32 %s216, 1
          %s3426 = smul.addr %s3425, 768
          %s3427 = scalar_lea.vmem [#allocation14], %s3426
          %3428 = dma.done %s3424, 12288
        $region88: #{tpu_custom_call.1} parent=83 // pred_fallthru
          _
      $region84: #{tpu_custom_call.1} parent=5 // pred_fallthru
        _
    $region6: #{tpu_custom_call.1} parent=1 // loop_footer
      %s28 = sadd.s32 1, %s24
    $region7: #{tpu_custom_call.1} parent=1 // loop_footer_branch
      %23 = sbr.rel target = $region3
    $region8: #{tpu_custom_call.1} parent=1 // loop_exit
      _
    %3429 = vsyncpa [#allocation3], 1
    %s3430 = scalar_lea.sflag [#allocation3], 1
    %3431 = vsyncpa %s3430, 1
    %3432 = vsyncpa [#allocation6], 1
    %3433 = vsyncpa [#allocation9], 1
    %s3434 = scalar_lea.sflag [#allocation9], 1
    %3435 = vsyncpa %s3434, 1
    %3436 = vsyncpa [#allocation12], 1
    %3437 = vsyncpa [#allocation4], 1
    %s3438 = scalar_lea.sflag [#allocation4], 1
    %3439 = vsyncpa %s3438, 1

</llo_original>
